<compile_context>
chip_gen: v6e
topology: v6e:2x2x1
jax: 0.10.0
libtpu: 0.0.40
codegen_flags: <defaults>
</compile_context>

<pallas_src>
import functools

import jax
import jax.numpy as jnp
from jax.experimental import pallas as pl
from jax.experimental.pallas import tpu as pltpu

# ----- tiny BERT config (synthetic, deterministic weights) -----
VOCAB = 100
HIDDEN = 32
N_HEADS = 2
HEAD_DIM = HIDDEN // N_HEADS
N_LAYERS = 2
INTER = 64
MAX_POS = 16
NUM_LABELS = 5
LN_EPS = 1e-12
PAD_NEG = -1e9          # value of the padded classifier-bias lanes (kills them in CE max/lse)

# ----- packed "vec slab" row layout (all (1,K) parameter vectors live here) -----
ROW_EMB_G, ROW_EMB_B, ROW_TYPE, ROW_BC = 0, 1, 2, 3
ROW_POS = 8                                   # rows 8..8+MAX_POS-1 : position embedding table
ROW_LAYER0 = ROW_POS + MAX_POS                # first per-layer block (8-aligned)
ROWS_PER_LAYER = 16                           # 13 used (+3 pad): bo, bi, bf, ln1_g/b, ln2_g/b,
                                              # then 3*N_HEADS per-head q/k/v biases
VEC_ROWS = ROW_LAYER0 + N_LAYERS * ROWS_PER_LAYER


# ---------------------------------------------------------------------------
# Single fused Pallas kernel: embeddings -> LN -> N x (MHA + add&LN + FFN + add&LN)
#                             -> classifier -> (logits slab, loss) in one output
# ---------------------------------------------------------------------------
def _ner_fused_kernel(tok_ref, key_ref, wemb_ref, vec_ref,
                      wqkv_ref, wo_ref, wi_ref, wf_ref, wc_ref, out_ref):
    f32 = jnp.float32
    M = tok_ref.shape[0]

    def vrow(r, width):
        return vec_ref[r:r + 1, :width]                 # (1, width) parameter vector

    def layernorm(x, g, b):
        mu = jnp.mean(x, axis=-1, keepdims=True)
        xc = x - mu
        var = jnp.mean(xc * xc, axis=-1, keepdims=True)
        return xc * jax.lax.rsqrt(var + LN_EPS) * g + b

    ids = tok_ref[:, 0:1]                               # (M,1) int32 token ids
    labels = tok_ref[:, 1:2]                            # (M,1) int32 labels (-100 = ignore)
    qbatch = tok_ref[:, 2:3]                            # (M,1) int32 batch id of each query
    pos_id = tok_ref[:, 3:4]                            # (M,1) int32 position id

    # ---- embeddings: word + position lookups as one-hot MXU matmuls, + type row ----
    oh_w = (jax.lax.broadcasted_iota(jnp.int32, (M, VOCAB), 1) == ids).astype(f32)
    emb = jnp.dot(oh_w, wemb_ref[...], preferred_element_type=f32)          # (M, H)
    oh_p = (jax.lax.broadcasted_iota(jnp.int32, (M, MAX_POS), 1) == pos_id).astype(f32)
    emb = emb + jnp.dot(oh_p, vec_ref[ROW_POS:ROW_POS + MAX_POS, :HIDDEN],
                        preferred_element_type=f32)
    # TODO(synk): token_type_ids assumed all-zero (matches the wrapper's call signature).
    emb = emb + vrow(ROW_TYPE, HIDDEN)
    h = layernorm(emb, vrow(ROW_EMB_G, HIDDEN), vrow(ROW_EMB_B, HIDDEN))

    # ---- block-diagonal additive attention bias, built in-kernel (no (M,M) operand) ----
    # key_ref[0, j] = batch id of key j if it is a valid (unpadded) token, else -1.
    bias = jnp.where(qbatch == key_ref[...], 0.0, -10000.0).astype(f32)     # (M, M)

    scale = 1.0 / float(HEAD_DIM) ** 0.5
    for l in range(N_LAYERS):                           # static unrolled loop (N_LAYERS = 2)
        lb = ROW_LAYER0 + l * ROWS_PER_LAYER
        o_acc = None
        for hh in range(N_HEADS):
            wb = (l * N_HEADS + hh) * 3                 # q/k/v weight slab indices
            bb = lb + 7 + hh * 3                        # q/k/v bias rows
            q = jnp.dot(h, wqkv_ref[wb + 0], preferred_element_type=f32) + vrow(bb + 0, HEAD_DIM)
            k = jnp.dot(h, wqkv_ref[wb + 1], preferred_element_type=f32) + vrow(bb + 1, HEAD_DIM)
            v = jnp.dot(h, wqkv_ref[wb + 2], preferred_element_type=f32) + vrow(bb + 2, HEAD_DIM)

            s = jnp.einsum("qd,kd->qk", q, k, preferred_element_type=f32) * scale + bias
            s = s - jnp.max(s, axis=-1, keepdims=True)
            p = jnp.exp(s)
            p = p / jnp.sum(p, axis=-1, keepdims=True)  # exact normalization (parity)
            ctx = jnp.dot(p, v, preferred_element_type=f32)                 # (M, dH)

            # concat-free output projection: ctx_full @ Wo == sum_h ctx_h @ Wo[rows of head h]
            contrib = jnp.dot(ctx, wo_ref[l * N_HEADS + hh], preferred_element_type=f32)
            o_acc = contrib if o_acc is None else o_acc + contrib
        attn = o_acc + vrow(lb + 0, HIDDEN)             # bo
        h1 = layernorm(attn + h, vrow(lb + 3, HIDDEN), vrow(lb + 4, HIDDEN))

        # ---- FFN ----
        inter = jnp.dot(h1, wi_ref[l], preferred_element_type=f32) + vrow(lb + 1, INTER)
        # TODO(synk): HF BERT default is exact erf-GELU; tanh approximation used here for
        # guaranteed Mosaic lowering (small deviation vs the PyTorch reference).
        c = jnp.float32(0.7978845608028654)             # sqrt(2/pi)
        inter = 0.5 * inter * (1.0 + jnp.tanh(c * (inter + 0.044715 * inter * inter * inter)))
        ffn = jnp.dot(inter, wf_ref[l], preferred_element_type=f32) + vrow(lb + 2, HIDDEN)
        h = layernorm(ffn + h1, vrow(lb + 5, HIDDEN), vrow(lb + 6, HIDDEN))

    # ---- classifier: lane-dense (M,128) logits slab; pad lanes forced to PAD_NEG by bc row ----
    logits = jnp.dot(h, wc_ref[...], preferred_element_type=f32) + vrow(ROW_BC, 128)
    out_ref[:M, :] = logits.astype(out_ref.dtype)

    # ---- fused token-level cross-entropy (ignore_index = -100), mean over valid tokens ----
    m = jnp.max(logits, axis=-1, keepdims=True)                      # pad lanes never win
    lse = m + jnp.log(jnp.sum(jnp.exp(logits - m), axis=-1, keepdims=True))
    oh_l = (jax.lax.broadcasted_iota(jnp.int32, (M, 128), 1) == labels).astype(f32)
    picked = jnp.sum(oh_l * logits, axis=-1, keepdims=True)
    valid = labels != -100
    per_tok = jnp.where(valid, lse - picked, 0.0)
    total = jnp.sum(per_tok, axis=0, keepdims=True)                  # (1,1)
    count = jnp.sum(valid.astype(f32), axis=0, keepdims=True)        # (1,1)
    # NOTE: 0/0 -> NaN when every label is -100, matching torch CrossEntropyLoss.
    loss11 = total / count
    out_ref[M:M + 1, :] = (loss11 + jnp.zeros((1, 128), f32)).astype(out_ref.dtype)


def _ner_fused_pallas(tok_meta, key_code, params):
    M = tok_meta.shape[0]
    inputs = (tok_meta, key_code, params["word_emb"], params["vec_slab"],
              params["w_qkv"], params["w_o"], params["w_i"], params["w_f"], params["w_cls"])
    # Whole model in one invocation: every operand is a full-array VMEM block (no grid).
    return pl.pallas_call(
        _ner_fused_kernel,
        out_shape=jax.ShapeDtypeStruct((M + 1, 128), jnp.float32),
        in_specs=[pl.BlockSpec(memory_space=pltpu.MemorySpace.VMEM) for _ in inputs],
        out_specs=pl.BlockSpec(memory_space=pltpu.MemorySpace.VMEM),
    )(*inputs)


# ---------------------------------------------------------------------------
# Parameters: deterministic synthetic init in "logical" BERT layout, packed once
# into the stacked slabs the kernel consumes (pure re-layout, same math).
# ---------------------------------------------------------------------------
def _pack_params(word_emb, pos_emb, type_emb, emb_ln_g, emb_ln_b, layers, wc, bc):
    def set_row(v, r, vals, fill=0.0):
        row = jnp.full((128,), fill, jnp.float32).at[:vals.shape[0]].set(vals.astype(jnp.float32))
        return v.at[r].set(row)

    vec = jnp.zeros((VEC_ROWS, 128), jnp.float32)
    vec = set_row(vec, ROW_EMB_G, emb_ln_g)
    vec = set_row(vec, ROW_EMB_B, emb_ln_b)
    vec = set_row(vec, ROW_TYPE, type_emb[0])
    vec = set_row(vec, ROW_BC, bc, fill=PAD_NEG)     # pad lanes -> large negative
    vec = vec.at[ROW_POS:ROW_POS + MAX_POS, :HIDDEN].set(pos_emb)

    wqkv_list, wo_list, wi_list, wf_list = [], [], [], []
    for l, lp in enumerate(layers):
        base = ROW_LAYER0 + l * ROWS_PER_LAYER
        vec = set_row(vec, base + 0, lp["bo"])
        vec = set_row(vec, base + 1, lp["bi"])
        vec = set_row(vec, base + 2, lp["bf"])
        vec = set_row(vec, base + 3, lp["ln1_g"])
        vec = set_row(vec, base + 4, lp["ln1_b"])
        vec = set_row(vec, base + 5, lp["ln2_g"])
        vec = set_row(vec, base + 6, lp["ln2_b"])
        for hh in range(N_HEADS):
            sl = slice(hh * HEAD_DIM, (hh + 1) * HEAD_DIM)
            vec = set_row(vec, base + 7 + hh * 3 + 0, lp["bq"][sl])
            vec = set_row(vec, base + 7 + hh * 3 + 1, lp["bk"][sl])
            vec = set_row(vec, base + 7 + hh * 3 + 2, lp["bv"][sl])
            wqkv_list += [lp["wq"][:, sl], lp["wk"][:, sl], lp["wv"][:, sl]]
            wo_list.append(lp["wo"][sl, :])
        wi_list.append(lp["wi"])
        wf_list.append(lp["wf"])

    w_cls = jnp.zeros((HIDDEN, 128), jnp.float32).at[:, :NUM_LABELS].set(wc)

    return {
        "word_emb": word_emb,                          # (VOCAB, HIDDEN)
        "vec_slab": vec,                               # (VEC_ROWS, 128)
        "w_qkv": jnp.stack(wqkv_list),                 # (N_LAYERS*N_HEADS*3, HIDDEN, HEAD_DIM)
        "w_o": jnp.stack(wo_list),                     # (N_LAYERS*N_HEADS, HEAD_DIM, HIDDEN)
        "w_i": jnp.stack(wi_list),                     # (N_LAYERS, HIDDEN, INTER)
        "w_f": jnp.stack(wf_list),                     # (N_LAYERS, INTER, HIDDEN)
        "w_cls": w_cls,                                # (HIDDEN, 128) zero-padded
    }


def init_params(key):
    def normal(k, shape):
        return (0.02 * jax.random.normal(k, shape)).astype(jnp.float32)

    ks = iter(jax.random.split(key, 3 + 6 * N_LAYERS + 1))
    word_emb = normal(next(ks), (VOCAB, HIDDEN))
    pos_emb = normal(next(ks), (MAX_POS, HIDDEN))
    type_emb = normal(next(ks), (2, HIDDEN))
    emb_ln_g = jnp.ones((HIDDEN,), jnp.float32)
    emb_ln_b = jnp.zeros((HIDDEN,), jnp.float32)

    layers = []
    for _ in range(N_LAYERS):
        layers.append(dict(
            wq=normal(next(ks), (HIDDEN, HIDDEN)), bq=jnp.zeros((HIDDEN,), jnp.float32),
            wk=normal(next(ks), (HIDDEN, HIDDEN)), bk=jnp.zeros((HIDDEN,), jnp.float32),
            wv=normal(next(ks), (HIDDEN, HIDDEN)), bv=jnp.zeros((HIDDEN,), jnp.float32),
            wo=normal(next(ks), (HIDDEN, HIDDEN)), bo=jnp.zeros((HIDDEN,), jnp.float32),
            wi=normal(next(ks), (HIDDEN, INTER)), bi=jnp.zeros((INTER,), jnp.float32),
            wf=normal(next(ks), (INTER, HIDDEN)), bf=jnp.zeros((HIDDEN,), jnp.float32),
            ln1_g=jnp.ones((HIDDEN,), jnp.float32), ln1_b=jnp.zeros((HIDDEN,), jnp.float32),
            ln2_g=jnp.ones((HIDDEN,), jnp.float32), ln2_b=jnp.zeros((HIDDEN,), jnp.float32)))
    wc = normal(next(ks), (HIDDEN, NUM_LABELS))
    bc = jnp.zeros((NUM_LABELS,), jnp.float32)

    return _pack_params(word_emb, pos_emb, type_emb, emb_ln_g, emb_ln_b, layers, wc, bc)


# ---------------------------------------------------------------------------
# Forward pass (mirrors BertForTokenClassification.forward: returns (loss, logits))
# ---------------------------------------------------------------------------
def ner_forward(params, input_ids, attention_mask, labels=None):
    B, S = input_ids.shape
    M = B * S

    ids = input_ids.reshape(M).astype(jnp.int32)
    lab = (labels.reshape(M).astype(jnp.int32) if labels is not None
           else jnp.zeros((M,), jnp.int32))                     # dummy; loss discarded
    flat = jnp.arange(M, dtype=jnp.int32)
    batch_id = flat // S
    pos_id = flat % S
    tok_meta = jnp.stack([ids, lab, batch_id, pos_id], axis=1)  # (M, 4) int32

    mask_flat = attention_mask.reshape(M).astype(jnp.int32)
    key_code = jnp.where(mask_flat > 0, batch_id, -1).reshape(1, M)  # (1, M) int32

    out = _ner_fused_pallas(tok_meta, key_code, params)         # (M+1, 128)
    logits = out[:M, :NUM_LABELS].reshape(B, S, NUM_LABELS)
    loss = out[M, 0] if labels is not None else None
    return loss, logits


# ---------------------------------------------------------------------------
if __name__ == "__main__":
    key = jax.random.PRNGKey(0)
    pk, ik, lk = jax.random.split(key, 3)

    params = init_params(pk)

    B, S = 2, 8
    input_ids = jax.random.randint(ik, (B, S), 0, VOCAB, dtype=jnp.int32)
    attention_mask = jnp.array([[1, 1, 1, 1, 1, 1, 1, 1],
                                [1, 1, 1, 1, 1, 0, 0, 0]], dtype=jnp.int32)
    labels = jax.random.randint(lk, (B, S), 0, NUM_LABELS, dtype=jnp.int32)
    labels = jnp.where(attention_mask == 1, labels, -100)       # ignore padded tokens

    fwd = jax.jit(ner_forward)
    loss, logits = fwd(params, input_ids, attention_mask, labels)
    jax.block_until_ready((loss, logits))
    assert logits.shape == (B, S, NUM_LABELS)
    assert loss.shape == ()
    print("KERNEL_OK")
</pallas_src>

<mosaic_0001>
module attributes {stable_mosaic.version = 11 : i64} {
  func.func @_ner_fused_kernel(%arg0: memref<16x4xi32, #tpu.memory_space<vmem>>, %arg1: memref<1x16xi32, #tpu.memory_space<vmem>>, %arg2: memref<100x32xf32, #tpu.memory_space<vmem>>, %arg3: memref<56x128xf32, #tpu.memory_space<vmem>>, %arg4: memref<12x32x16xf32, #tpu.memory_space<vmem>>, %arg5: memref<4x16x32xf32, #tpu.memory_space<vmem>>, %arg6: memref<2x32x64xf32, #tpu.memory_space<vmem>>, %arg7: memref<2x64x32xf32, #tpu.memory_space<vmem>>, %arg8: memref<32x128xf32, #tpu.memory_space<vmem>>, %arg9: memref<17x128xf32, #tpu.memory_space<vmem>>) attributes {dimension_semantics = [], scalar_prefetch = 0 : i64, scratch_operands = 0 : i64, tpu.core_type = #tpu.core_type<tc>} {
    %c0 = arith.constant 0 : index
    %c0_0 = arith.constant 0 : index
    %0 = vector.load %arg0[%c0, %c0_0] : memref<16x4xi32, #tpu.memory_space<vmem>>, vector<16x1xi32>
    %c0_1 = arith.constant 0 : index
    %c1 = arith.constant 1 : index
    %1 = vector.load %arg0[%c0_1, %c1] : memref<16x4xi32, #tpu.memory_space<vmem>>, vector<16x1xi32>
    %c0_2 = arith.constant 0 : index
    %c2 = arith.constant 2 : index
    %2 = vector.load %arg0[%c0_2, %c2] : memref<16x4xi32, #tpu.memory_space<vmem>>, vector<16x1xi32>
    %c0_3 = arith.constant 0 : index
    %c3 = arith.constant 3 : index
    %3 = vector.load %arg0[%c0_3, %c3] : memref<16x4xi32, #tpu.memory_space<vmem>>, vector<16x1xi32>
    %4 = tpu.iota {dimensions = array<i32: 1>} : vector<16x100xi32>
    %5 = vector.broadcast %0 : vector<16x1xi32> to vector<16x100xi32>
    %6 = arith.cmpi eq, %4, %5 : vector<16x100xi32>
    %7 = arith.extui %6 : vector<16x100xi1> to vector<16x100xi32>
    %8 = arith.sitofp %7 : vector<16x100xi32> to vector<16x100xf32>
    %c0_4 = arith.constant 0 : index
    %c0_5 = arith.constant 0 : index
    %9 = vector.load %arg2[%c0_4, %c0_5] : memref<100x32xf32, #tpu.memory_space<vmem>>, vector<100x32xf32>
    %cst = arith.constant dense<0.000000e+00> : vector<16x32xf32>
    %10 = tpu.matmul %8, %9, %cst {dimension_numbers = #tpu.dot_dimension_numbers<[1], [0], [0], [1], [0, 0, 1, 1], [], []>} : vector<16x100xf32>, vector<100x32xf32>, vector<16x32xf32> -> vector<16x32xf32>
    %11 = tpu.iota {dimensions = array<i32: 1>} : vector<16x16xi32>
    %12 = vector.broadcast %3 : vector<16x1xi32> to vector<16x16xi32>
    %13 = arith.cmpi eq, %11, %12 : vector<16x16xi32>
    %14 = arith.extui %13 : vector<16x16xi1> to vector<16x16xi32>
    %15 = arith.sitofp %14 : vector<16x16xi32> to vector<16x16xf32>
    %c8 = arith.constant 8 : index
    %c0_6 = arith.constant 0 : index
    %16 = vector.load %arg3[%c8, %c0_6] : memref<56x128xf32, #tpu.memory_space<vmem>>, vector<16x32xf32>
    %cst_7 = arith.constant dense<0.000000e+00> : vector<16x32xf32>
    %17 = tpu.matmul %15, %16, %cst_7 {dimension_numbers = #tpu.dot_dimension_numbers<[1], [0], [0], [1], [0, 0, 1, 1], [], []>} : vector<16x16xf32>, vector<16x32xf32>, vector<16x32xf32> -> vector<16x32xf32>
    %18 = arith.addf %10, %17 : vector<16x32xf32>
    %c2_8 = arith.constant 2 : index
    %c0_9 = arith.constant 0 : index
    %19 = vector.load %arg3[%c2_8, %c0_9] : memref<56x128xf32, #tpu.memory_space<vmem>>, vector<1x32xf32>
    %20 = vector.broadcast %19 : vector<1x32xf32> to vector<16x32xf32>
    %21 = arith.addf %18, %20 : vector<16x32xf32>
    %c0_10 = arith.constant 0 : index
    %c0_11 = arith.constant 0 : index
    %22 = vector.load %arg3[%c0_10, %c0_11] : memref<56x128xf32, #tpu.memory_space<vmem>>, vector<1x32xf32>
    %c1_12 = arith.constant 1 : index
    %c0_13 = arith.constant 0 : index
    %23 = vector.load %arg3[%c1_12, %c0_13] : memref<56x128xf32, #tpu.memory_space<vmem>>, vector<1x32xf32>
    %cst_14 = arith.constant dense<0.000000e+00> : vector<16xf32>
    %24 = vector.multi_reduction <add>, %21, %cst_14 [1] : vector<16x32xf32> to vector<16xf32>
    %25 = vector.shape_cast %24 : vector<16xf32> to vector<16x1xf32>
    %cst_15 = arith.constant 3.200000e+01 : f32
    %26 = vector.broadcast %cst_15 : f32 to vector<16x1xf32>
    %27 = arith.divf %25, %26 : vector<16x1xf32>
    %28 = vector.broadcast %27 : vector<16x1xf32> to vector<16x32xf32>
    %29 = arith.subf %21, %28 : vector<16x32xf32>
    %30 = arith.mulf %29, %29 : vector<16x32xf32>
    %cst_16 = arith.constant dense<0.000000e+00> : vector<16xf32>
    %31 = vector.multi_reduction <add>, %30, %cst_16 [1] : vector<16x32xf32> to vector<16xf32>
    %32 = vector.shape_cast %31 : vector<16xf32> to vector<16x1xf32>
    %cst_17 = arith.constant 3.200000e+01 : f32
    %33 = vector.broadcast %cst_17 : f32 to vector<16x1xf32>
    %34 = arith.divf %32, %33 : vector<16x1xf32>
    %cst_18 = arith.constant 9.99999996E-13 : f32
    %35 = vector.broadcast %cst_18 : f32 to vector<16x1xf32>
    %36 = arith.addf %34, %35 : vector<16x1xf32>
    %37 = math.rsqrt %36 : vector<16x1xf32>
    %38 = vector.broadcast %37 : vector<16x1xf32> to vector<16x32xf32>
    %39 = arith.mulf %29, %38 : vector<16x32xf32>
    %40 = vector.broadcast %22 : vector<1x32xf32> to vector<16x32xf32>
    %41 = arith.mulf %39, %40 : vector<16x32xf32>
    %42 = vector.broadcast %23 : vector<1x32xf32> to vector<16x32xf32>
    %43 = arith.addf %41, %42 : vector<16x32xf32>
    %c0_19 = arith.constant 0 : index
    %c0_20 = arith.constant 0 : index
    %44 = vector.load %arg1[%c0_19, %c0_20] : memref<1x16xi32, #tpu.memory_space<vmem>>, vector<1x16xi32>
    %45 = vector.broadcast %2 : vector<16x1xi32> to vector<16x16xi32>
    %46 = vector.broadcast %44 : vector<1x16xi32> to vector<16x16xi32>
    %47 = arith.cmpi eq, %45, %46 : vector<16x16xi32>
    %cst_21 = arith.constant 0.000000e+00 : f32
    %cst_22 = arith.constant -1.000000e+04 : f32
    %48 = vector.broadcast %cst_21 : f32 to vector<16x16xf32>
    %49 = vector.broadcast %cst_22 : f32 to vector<16x16xf32>
    %50 = arith.select %47, %48, %49 : vector<16x16xi1>, vector<16x16xf32>
    %c0_23 = arith.constant 0 : index
    %c0_24 = arith.constant 0 : index
    %c0_25 = arith.constant 0 : index
    %51 = vector.load %arg4[%c0_23, %c0_24, %c0_25] : memref<12x32x16xf32, #tpu.memory_space<vmem>>, vector<1x32x16xf32>
    %52 = vector.shape_cast %51 : vector<1x32x16xf32> to vector<32x16xf32>
    %cst_26 = arith.constant dense<0.000000e+00> : vector<16x16xf32>
    %53 = tpu.matmul %43, %52, %cst_26 {dimension_numbers = #tpu.dot_dimension_numbers<[1], [0], [0], [1], [0, 0, 1, 1], [], []>} : vector<16x32xf32>, vector<32x16xf32>, vector<16x16xf32> -> vector<16x16xf32>
    %c31 = arith.constant 31 : index
    %c0_27 = arith.constant 0 : index
    %54 = vector.load %arg3[%c31, %c0_27] : memref<56x128xf32, #tpu.memory_space<vmem>>, vector<1x16xf32>
    %55 = vector.broadcast %54 : vector<1x16xf32> to vector<16x16xf32>
    %56 = arith.addf %53, %55 : vector<16x16xf32>
    %c1_28 = arith.constant 1 : index
    %c0_29 = arith.constant 0 : index
    %c0_30 = arith.constant 0 : index
    %57 = vector.load %arg4[%c1_28, %c0_29, %c0_30] : memref<12x32x16xf32, #tpu.memory_space<vmem>>, vector<1x32x16xf32>
    %58 = vector.shape_cast %57 : vector<1x32x16xf32> to vector<32x16xf32>
    %cst_31 = arith.constant dense<0.000000e+00> : vector<16x16xf32>
    %59 = tpu.matmul %43, %58, %cst_31 {dimension_numbers = #tpu.dot_dimension_numbers<[1], [0], [0], [1], [0, 0, 1, 1], [], []>} : vector<16x32xf32>, vector<32x16xf32>, vector<16x16xf32> -> vector<16x16xf32>
    %c32 = arith.constant 32 : index
    %c0_32 = arith.constant 0 : index
    %60 = vector.load %arg3[%c32, %c0_32] : memref<56x128xf32, #tpu.memory_space<vmem>>, vector<1x16xf32>
    %61 = vector.broadcast %60 : vector<1x16xf32> to vector<16x16xf32>
    %62 = arith.addf %59, %61 : vector<16x16xf32>
    %c2_33 = arith.constant 2 : index
    %c0_34 = arith.constant 0 : index
    %c0_35 = arith.constant 0 : index
    %63 = vector.load %arg4[%c2_33, %c0_34, %c0_35] : memref<12x32x16xf32, #tpu.memory_space<vmem>>, vector<1x32x16xf32>
    %64 = vector.shape_cast %63 : vector<1x32x16xf32> to vector<32x16xf32>
    %cst_36 = arith.constant dense<0.000000e+00> : vector<16x16xf32>
    %65 = tpu.matmul %43, %64, %cst_36 {dimension_numbers = #tpu.dot_dimension_numbers<[1], [0], [0], [1], [0, 0, 1, 1], [], []>} : vector<16x32xf32>, vector<32x16xf32>, vector<16x16xf32> -> vector<16x16xf32>
    %c33 = arith.constant 33 : index
    %c0_37 = arith.constant 0 : index
    %66 = vector.load %arg3[%c33, %c0_37] : memref<56x128xf32, #tpu.memory_space<vmem>>, vector<1x16xf32>
    %67 = vector.broadcast %66 : vector<1x16xf32> to vector<16x16xf32>
    %68 = arith.addf %65, %67 : vector<16x16xf32>
    "tpu.trace_start"() <{level = 10 : i32, message = "qd,kd->qk"}> : () -> ()
    %cst_38 = arith.constant dense<0.000000e+00> : vector<16x16xf32>
    %69 = tpu.matmul %56, %62, %cst_38 {dimension_numbers = #tpu.dot_dimension_numbers<[1], [1], [0], [0], [0, 0, 1, 0], [], []>} : vector<16x16xf32>, vector<16x16xf32>, vector<16x16xf32> -> vector<16x16xf32>
    "tpu.trace_stop"() : () -> ()
    %cst_39 = arith.constant 2.500000e-01 : f32
    %70 = vector.broadcast %cst_39 : f32 to vector<16x16xf32>
    %71 = arith.mulf %69, %70 : vector<16x16xf32>
    %72 = arith.addf %71, %50 : vector<16x16xf32>
    %cst_40 = arith.constant dense<0xFF800000> : vector<16xf32>
    %73 = vector.multi_reduction <maximumf>, %72, %cst_40 [1] : vector<16x16xf32> to vector<16xf32>
    %74 = vector.shape_cast %73 : vector<16xf32> to vector<16x1xf32>
    %75 = vector.broadcast %74 : vector<16x1xf32> to vector<16x16xf32>
    %76 = arith.subf %72, %75 : vector<16x16xf32>
    %77 = math.exp %76 : vector<16x16xf32>
    %cst_41 = arith.constant dense<0.000000e+00> : vector<16xf32>
    %78 = vector.multi_reduction <add>, %77, %cst_41 [1] : vector<16x16xf32> to vector<16xf32>
    %79 = vector.shape_cast %78 : vector<16xf32> to vector<16x1xf32>
    %80 = vector.broadcast %79 : vector<16x1xf32> to vector<16x16xf32>
    %81 = arith.divf %77, %80 : vector<16x16xf32>
    %cst_42 = arith.constant dense<0.000000e+00> : vector<16x16xf32>
    %82 = tpu.matmul %81, %68, %cst_42 {dimension_numbers = #tpu.dot_dimension_numbers<[1], [0], [0], [1], [0, 0, 1, 1], [], []>} : vector<16x16xf32>, vector<16x16xf32>, vector<16x16xf32> -> vector<16x16xf32>
    %c0_43 = arith.constant 0 : index
    %c0_44 = arith.constant 0 : index
    %c0_45 = arith.constant 0 : index
    %83 = vector.load %arg5[%c0_43, %c0_44, %c0_45] : memref<4x16x32xf32, #tpu.memory_space<vmem>>, vector<1x16x32xf32>
    %84 = vector.shape_cast %83 : vector<1x16x32xf32> to vector<16x32xf32>
    %cst_46 = arith.constant dense<0.000000e+00> : vector<16x32xf32>
    %85 = tpu.matmul %82, %84, %cst_46 {dimension_numbers = #tpu.dot_dimension_numbers<[1], [0], [0], [1], [0, 0, 1, 1], [], []>} : vector<16x16xf32>, vector<16x32xf32>, vector<16x32xf32> -> vector<16x32xf32>
    %c3_47 = arith.constant 3 : index
    %c0_48 = arith.constant 0 : index
    %c0_49 = arith.constant 0 : index
    %86 = vector.load %arg4[%c3_47, %c0_48, %c0_49] : memref<12x32x16xf32, #tpu.memory_space<vmem>>, vector<1x32x16xf32>
    %87 = vector.shape_cast %86 : vector<1x32x16xf32> to vector<32x16xf32>
    %cst_50 = arith.constant dense<0.000000e+00> : vector<16x16xf32>
    %88 = tpu.matmul %43, %87, %cst_50 {dimension_numbers = #tpu.dot_dimension_numbers<[1], [0], [0], [1], [0, 0, 1, 1], [], []>} : vector<16x32xf32>, vector<32x16xf32>, vector<16x16xf32> -> vector<16x16xf32>
    %c34 = arith.constant 34 : index
    %c0_51 = arith.constant 0 : index
    %89 = vector.load %arg3[%c34, %c0_51] : memref<56x128xf32, #tpu.memory_space<vmem>>, vector<1x16xf32>
    %90 = vector.broadcast %89 : vector<1x16xf32> to vector<16x16xf32>
    %91 = arith.addf %88, %90 : vector<16x16xf32>
    %c4 = arith.constant 4 : index
    %c0_52 = arith.constant 0 : index
    %c0_53 = arith.constant 0 : index
    %92 = vector.load %arg4[%c4, %c0_52, %c0_53] : memref<12x32x16xf32, #tpu.memory_space<vmem>>, vector<1x32x16xf32>
    %93 = vector.shape_cast %92 : vector<1x32x16xf32> to vector<32x16xf32>
    %cst_54 = arith.constant dense<0.000000e+00> : vector<16x16xf32>
    %94 = tpu.matmul %43, %93, %cst_54 {dimension_numbers = #tpu.dot_dimension_numbers<[1], [0], [0], [1], [0, 0, 1, 1], [], []>} : vector<16x32xf32>, vector<32x16xf32>, vector<16x16xf32> -> vector<16x16xf32>
    %c35 = arith.constant 35 : index
    %c0_55 = arith.constant 0 : index
    %95 = vector.load %arg3[%c35, %c0_55] : memref<56x128xf32, #tpu.memory_space<vmem>>, vector<1x16xf32>
    %96 = vector.broadcast %95 : vector<1x16xf32> to vector<16x16xf32>
    %97 = arith.addf %94, %96 : vector<16x16xf32>
    %c5 = arith.constant 5 : index
    %c0_56 = arith.constant 0 : index
    %c0_57 = arith.constant 0 : index
    %98 = vector.load %arg4[%c5, %c0_56, %c0_57] : memref<12x32x16xf32, #tpu.memory_space<vmem>>, vector<1x32x16xf32>
    %99 = vector.shape_cast %98 : vector<1x32x16xf32> to vector<32x16xf32>
    %cst_58 = arith.constant dense<0.000000e+00> : vector<16x16xf32>
    %100 = tpu.matmul %43, %99, %cst_58 {dimension_numbers = #tpu.dot_dimension_numbers<[1], [0], [0], [1], [0, 0, 1, 1], [], []>} : vector<16x32xf32>, vector<32x16xf32>, vector<16x16xf32> -> vector<16x16xf32>
    %c36 = arith.constant 36 : index
    %c0_59 = arith.constant 0 : index
    %101 = vector.load %arg3[%c36, %c0_59] : memref<56x128xf32, #tpu.memory_space<vmem>>, vector<1x16xf32>
    %102 = vector.broadcast %101 : vector<1x16xf32> to vector<16x16xf32>
    %103 = arith.addf %100, %102 : vector<16x16xf32>
    "tpu.trace_start"() <{level = 10 : i32, message = "qd,kd->qk"}> : () -> ()
    %cst_60 = arith.constant dense<0.000000e+00> : vector<16x16xf32>
    %104 = tpu.matmul %91, %97, %cst_60 {dimension_numbers = #tpu.dot_dimension_numbers<[1], [1], [0], [0], [0, 0, 1, 0], [], []>} : vector<16x16xf32>, vector<16x16xf32>, vector<16x16xf32> -> vector<16x16xf32>
    "tpu.trace_stop"() : () -> ()
    %cst_61 = arith.constant 2.500000e-01 : f32
    %105 = vector.broadcast %cst_61 : f32 to vector<16x16xf32>
    %106 = arith.mulf %104, %105 : vector<16x16xf32>
    %107 = arith.addf %106, %50 : vector<16x16xf32>
    %cst_62 = arith.constant dense<0xFF800000> : vector<16xf32>
    %108 = vector.multi_reduction <maximumf>, %107, %cst_62 [1] : vector<16x16xf32> to vector<16xf32>
    %109 = vector.shape_cast %108 : vector<16xf32> to vector<16x1xf32>
    %110 = vector.broadcast %109 : vector<16x1xf32> to vector<16x16xf32>
    %111 = arith.subf %107, %110 : vector<16x16xf32>
    %112 = math.exp %111 : vector<16x16xf32>
    %cst_63 = arith.constant dense<0.000000e+00> : vector<16xf32>
    %113 = vector.multi_reduction <add>, %112, %cst_63 [1] : vector<16x16xf32> to vector<16xf32>
    %114 = vector.shape_cast %113 : vector<16xf32> to vector<16x1xf32>
    %115 = vector.broadcast %114 : vector<16x1xf32> to vector<16x16xf32>
    %116 = arith.divf %112, %115 : vector<16x16xf32>
    %cst_64 = arith.constant dense<0.000000e+00> : vector<16x16xf32>
    %117 = tpu.matmul %116, %103, %cst_64 {dimension_numbers = #tpu.dot_dimension_numbers<[1], [0], [0], [1], [0, 0, 1, 1], [], []>} : vector<16x16xf32>, vector<16x16xf32>, vector<16x16xf32> -> vector<16x16xf32>
    %c1_65 = arith.constant 1 : index
    %c0_66 = arith.constant 0 : index
    %c0_67 = arith.constant 0 : index
    %118 = vector.load %arg5[%c1_65, %c0_66, %c0_67] : memref<4x16x32xf32, #tpu.memory_space<vmem>>, vector<1x16x32xf32>
    %119 = vector.shape_cast %118 : vector<1x16x32xf32> to vector<16x32xf32>
    %cst_68 = arith.constant dense<0.000000e+00> : vector<16x32xf32>
    %120 = tpu.matmul %117, %119, %cst_68 {dimension_numbers = #tpu.dot_dimension_numbers<[1], [0], [0], [1], [0, 0, 1, 1], [], []>} : vector<16x16xf32>, vector<16x32xf32>, vector<16x32xf32> -> vector<16x32xf32>
    %121 = arith.addf %85, %120 : vector<16x32xf32>
    %c24 = arith.constant 24 : index
    %c0_69 = arith.constant 0 : index
    %122 = vector.load %arg3[%c24, %c0_69] : memref<56x128xf32, #tpu.memory_space<vmem>>, vector<1x32xf32>
    %123 = vector.broadcast %122 : vector<1x32xf32> to vector<16x32xf32>
    %124 = arith.addf %121, %123 : vector<16x32xf32>
    %125 = arith.addf %124, %43 : vector<16x32xf32>
    %c27 = arith.constant 27 : index
    %c0_70 = arith.constant 0 : index
    %126 = vector.load %arg3[%c27, %c0_70] : memref<56x128xf32, #tpu.memory_space<vmem>>, vector<1x32xf32>
    %c28 = arith.constant 28 : index
    %c0_71 = arith.constant 0 : index
    %127 = vector.load %arg3[%c28, %c0_71] : memref<56x128xf32, #tpu.memory_space<vmem>>, vector<1x32xf32>
    %cst_72 = arith.constant dense<0.000000e+00> : vector<16xf32>
    %128 = vector.multi_reduction <add>, %125, %cst_72 [1] : vector<16x32xf32> to vector<16xf32>
    %129 = vector.shape_cast %128 : vector<16xf32> to vector<16x1xf32>
    %cst_73 = arith.constant 3.200000e+01 : f32
    %130 = vector.broadcast %cst_73 : f32 to vector<16x1xf32>
    %131 = arith.divf %129, %130 : vector<16x1xf32>
    %132 = vector.broadcast %131 : vector<16x1xf32> to vector<16x32xf32>
    %133 = arith.subf %125, %132 : vector<16x32xf32>
    %134 = arith.mulf %133, %133 : vector<16x32xf32>
    %cst_74 = arith.constant dense<0.000000e+00> : vector<16xf32>
    %135 = vector.multi_reduction <add>, %134, %cst_74 [1] : vector<16x32xf32> to vector<16xf32>
    %136 = vector.shape_cast %135 : vector<16xf32> to vector<16x1xf32>
    %cst_75 = arith.constant 3.200000e+01 : f32
    %137 = vector.broadcast %cst_75 : f32 to vector<16x1xf32>
    %138 = arith.divf %136, %137 : vector<16x1xf32>
    %cst_76 = arith.constant 9.99999996E-13 : f32
    %139 = vector.broadcast %cst_76 : f32 to vector<16x1xf32>
    %140 = arith.addf %138, %139 : vector<16x1xf32>
    %141 = math.rsqrt %140 : vector<16x1xf32>
    %142 = vector.broadcast %141 : vector<16x1xf32> to vector<16x32xf32>
    %143 = arith.mulf %133, %142 : vector<16x32xf32>
    %144 = vector.broadcast %126 : vector<1x32xf32> to vector<16x32xf32>
    %145 = arith.mulf %143, %144 : vector<16x32xf32>
    %146 = vector.broadcast %127 : vector<1x32xf32> to vector<16x32xf32>
    %147 = arith.addf %145, %146 : vector<16x32xf32>
    %c0_77 = arith.constant 0 : index
    %c0_78 = arith.constant 0 : index
    %c0_79 = arith.constant 0 : index
    %148 = vector.load %arg6[%c0_77, %c0_78, %c0_79] : memref<2x32x64xf32, #tpu.memory_space<vmem>>, vector<1x32x64xf32>
    %149 = vector.shape_cast %148 : vector<1x32x64xf32> to vector<32x64xf32>
    %cst_80 = arith.constant dense<0.000000e+00> : vector<16x64xf32>
    %150 = tpu.matmul %147, %149, %cst_80 {dimension_numbers = #tpu.dot_dimension_numbers<[1], [0], [0], [1], [0, 0, 1, 1], [], []>} : vector<16x32xf32>, vector<32x64xf32>, vector<16x64xf32> -> vector<16x64xf32>
    %c25 = arith.constant 25 : index
    %c0_81 = arith.constant 0 : index
    %151 = vector.load %arg3[%c25, %c0_81] : memref<56x128xf32, #tpu.memory_space<vmem>>, vector<1x64xf32>
    %152 = vector.broadcast %151 : vector<1x64xf32> to vector<16x64xf32>
    %153 = arith.addf %150, %152 : vector<16x64xf32>
    %cst_82 = arith.constant 5.000000e-01 : f32
    %154 = vector.broadcast %cst_82 : f32 to vector<16x64xf32>
    %155 = arith.mulf %154, %153 : vector<16x64xf32>
    %cst_83 = arith.constant 4.471500e-02 : f32
    %156 = vector.broadcast %cst_83 : f32 to vector<16x64xf32>
    %157 = arith.mulf %156, %153 : vector<16x64xf32>
    %158 = arith.mulf %157, %153 : vector<16x64xf32>
    %159 = arith.mulf %158, %153 : vector<16x64xf32>
    %160 = arith.addf %153, %159 : vector<16x64xf32>
    %cst_84 = arith.constant 0.797884583 : f32
    %161 = vector.broadcast %cst_84 : f32 to vector<16x64xf32>
    %162 = arith.mulf %161, %160 : vector<16x64xf32>
    %163 = math.tanh %162 : vector<16x64xf32>
    %cst_85 = arith.constant 1.000000e+00 : f32
    %164 = vector.broadcast %cst_85 : f32 to vector<16x64xf32>
    %165 = arith.addf %164, %163 : vector<16x64xf32>
    %166 = arith.mulf %155, %165 : vector<16x64xf32>
    %c0_86 = arith.constant 0 : index
    %c0_87 = arith.constant 0 : index
    %c0_88 = arith.constant 0 : index
    %167 = vector.load %arg7[%c0_86, %c0_87, %c0_88] : memref<2x64x32xf32, #tpu.memory_space<vmem>>, vector<1x64x32xf32>
    %168 = vector.shape_cast %167 : vector<1x64x32xf32> to vector<64x32xf32>
    %cst_89 = arith.constant dense<0.000000e+00> : vector<16x32xf32>
    %169 = tpu.matmul %166, %168, %cst_89 {dimension_numbers = #tpu.dot_dimension_numbers<[1], [0], [0], [1], [0, 0, 1, 1], [], []>} : vector<16x64xf32>, vector<64x32xf32>, vector<16x32xf32> -> vector<16x32xf32>
    %c26 = arith.constant 26 : index
    %c0_90 = arith.constant 0 : index
    %170 = vector.load %arg3[%c26, %c0_90] : memref<56x128xf32, #tpu.memory_space<vmem>>, vector<1x32xf32>
    %171 = vector.broadcast %170 : vector<1x32xf32> to vector<16x32xf32>
    %172 = arith.addf %169, %171 : vector<16x32xf32>
    %173 = arith.addf %172, %147 : vector<16x32xf32>
    %c29 = arith.constant 29 : index
    %c0_91 = arith.constant 0 : index
    %174 = vector.load %arg3[%c29, %c0_91] : memref<56x128xf32, #tpu.memory_space<vmem>>, vector<1x32xf32>
    %c30 = arith.constant 30 : index
    %c0_92 = arith.constant 0 : index
    %175 = vector.load %arg3[%c30, %c0_92] : memref<56x128xf32, #tpu.memory_space<vmem>>, vector<1x32xf32>
    %cst_93 = arith.constant dense<0.000000e+00> : vector<16xf32>
    %176 = vector.multi_reduction <add>, %173, %cst_93 [1] : vector<16x32xf32> to vector<16xf32>
    %177 = vector.shape_cast %176 : vector<16xf32> to vector<16x1xf32>
    %cst_94 = arith.constant 3.200000e+01 : f32
    %178 = vector.broadcast %cst_94 : f32 to vector<16x1xf32>
    %179 = arith.divf %177, %178 : vector<16x1xf32>
    %180 = vector.broadcast %179 : vector<16x1xf32> to vector<16x32xf32>
    %181 = arith.subf %173, %180 : vector<16x32xf32>
    %182 = arith.mulf %181, %181 : vector<16x32xf32>
    %cst_95 = arith.constant dense<0.000000e+00> : vector<16xf32>
    %183 = vector.multi_reduction <add>, %182, %cst_95 [1] : vector<16x32xf32> to vector<16xf32>
    %184 = vector.shape_cast %183 : vector<16xf32> to vector<16x1xf32>
    %cst_96 = arith.constant 3.200000e+01 : f32
    %185 = vector.broadcast %cst_96 : f32 to vector<16x1xf32>
    %186 = arith.divf %184, %185 : vector<16x1xf32>
    %cst_97 = arith.constant 9.99999996E-13 : f32
    %187 = vector.broadcast %cst_97 : f32 to vector<16x1xf32>
    %188 = arith.addf %186, %187 : vector<16x1xf32>
    %189 = math.rsqrt %188 : vector<16x1xf32>
    %190 = vector.broadcast %189 : vector<16x1xf32> to vector<16x32xf32>
    %191 = arith.mulf %181, %190 : vector<16x32xf32>
    %192 = vector.broadcast %174 : vector<1x32xf32> to vector<16x32xf32>
    %193 = arith.mulf %191, %192 : vector<16x32xf32>
    %194 = vector.broadcast %175 : vector<1x32xf32> to vector<16x32xf32>
    %195 = arith.addf %193, %194 : vector<16x32xf32>
    %c6 = arith.constant 6 : index
    %c0_98 = arith.constant 0 : index
    %c0_99 = arith.constant 0 : index
    %196 = vector.load %arg4[%c6, %c0_98, %c0_99] : memref<12x32x16xf32, #tpu.memory_space<vmem>>, vector<1x32x16xf32>
    %197 = vector.shape_cast %196 : vector<1x32x16xf32> to vector<32x16xf32>
    %cst_100 = arith.constant dense<0.000000e+00> : vector<16x16xf32>
    %198 = tpu.matmul %195, %197, %cst_100 {dimension_numbers = #tpu.dot_dimension_numbers<[1], [0], [0], [1], [0, 0, 1, 1], [], []>} : vector<16x32xf32>, vector<32x16xf32>, vector<16x16xf32> -> vector<16x16xf32>
    %c47 = arith.constant 47 : index
    %c0_101 = arith.constant 0 : index
    %199 = vector.load %arg3[%c47, %c0_101] : memref<56x128xf32, #tpu.memory_space<vmem>>, vector<1x16xf32>
    %200 = vector.broadcast %199 : vector<1x16xf32> to vector<16x16xf32>
    %201 = arith.addf %198, %200 : vector<16x16xf32>
    %c7 = arith.constant 7 : index
    %c0_102 = arith.constant 0 : index
    %c0_103 = arith.constant 0 : index
    %202 = vector.load %arg4[%c7, %c0_102, %c0_103] : memref<12x32x16xf32, #tpu.memory_space<vmem>>, vector<1x32x16xf32>
    %203 = vector.shape_cast %202 : vector<1x32x16xf32> to vector<32x16xf32>
    %cst_104 = arith.constant dense<0.000000e+00> : vector<16x16xf32>
    %204 = tpu.matmul %195, %203, %cst_104 {dimension_numbers = #tpu.dot_dimension_numbers<[1], [0], [0], [1], [0, 0, 1, 1], [], []>} : vector<16x32xf32>, vector<32x16xf32>, vector<16x16xf32> -> vector<16x16xf32>
    %c48 = arith.constant 48 : index
    %c0_105 = arith.constant 0 : index
    %205 = vector.load %arg3[%c48, %c0_105] : memref<56x128xf32, #tpu.memory_space<vmem>>, vector<1x16xf32>
    %206 = vector.broadcast %205 : vector<1x16xf32> to vector<16x16xf32>
    %207 = arith.addf %204, %206 : vector<16x16xf32>
    %c8_106 = arith.constant 8 : index
    %c0_107 = arith.constant 0 : index
    %c0_108 = arith.constant 0 : index
    %208 = vector.load %arg4[%c8_106, %c0_107, %c0_108] : memref<12x32x16xf32, #tpu.memory_space<vmem>>, vector<1x32x16xf32>
    %209 = vector.shape_cast %208 : vector<1x32x16xf32> to vector<32x16xf32>
    %cst_109 = arith.constant dense<0.000000e+00> : vector<16x16xf32>
    %210 = tpu.matmul %195, %209, %cst_109 {dimension_numbers = #tpu.dot_dimension_numbers<[1], [0], [0], [1], [0, 0, 1, 1], [], []>} : vector<16x32xf32>, vector<32x16xf32>, vector<16x16xf32> -> vector<16x16xf32>
    %c49 = arith.constant 49 : index
    %c0_110 = arith.constant 0 : index
    %211 = vector.load %arg3[%c49, %c0_110] : memref<56x128xf32, #tpu.memory_space<vmem>>, vector<1x16xf32>
    %212 = vector.broadcast %211 : vector<1x16xf32> to vector<16x16xf32>
    %213 = arith.addf %210, %212 : vector<16x16xf32>
    "tpu.trace_start"() <{level = 10 : i32, message = "qd,kd->qk"}> : () -> ()
    %cst_111 = arith.constant dense<0.000000e+00> : vector<16x16xf32>
    %214 = tpu.matmul %201, %207, %cst_111 {dimension_numbers = #tpu.dot_dimension_numbers<[1], [1], [0], [0], [0, 0, 1, 0], [], []>} : vector<16x16xf32>, vector<16x16xf32>, vector<16x16xf32> -> vector<16x16xf32>
    "tpu.trace_stop"() : () -> ()
    %cst_112 = arith.constant 2.500000e-01 : f32
    %215 = vector.broadcast %cst_112 : f32 to vector<16x16xf32>
    %216 = arith.mulf %214, %215 : vector<16x16xf32>
    %217 = arith.addf %216, %50 : vector<16x16xf32>
    %cst_113 = arith.constant dense<0xFF800000> : vector<16xf32>
    %218 = vector.multi_reduction <maximumf>, %217, %cst_113 [1] : vector<16x16xf32> to vector<16xf32>
    %219 = vector.shape_cast %218 : vector<16xf32> to vector<16x1xf32>
    %220 = vector.broadcast %219 : vector<16x1xf32> to vector<16x16xf32>
    %221 = arith.subf %217, %220 : vector<16x16xf32>
    %222 = math.exp %221 : vector<16x16xf32>
    %cst_114 = arith.constant dense<0.000000e+00> : vector<16xf32>
    %223 = vector.multi_reduction <add>, %222, %cst_114 [1] : vector<16x16xf32> to vector<16xf32>
    %224 = vector.shape_cast %223 : vector<16xf32> to vector<16x1xf32>
    %225 = vector.broadcast %224 : vector<16x1xf32> to vector<16x16xf32>
    %226 = arith.divf %222, %225 : vector<16x16xf32>
    %cst_115 = arith.constant dense<0.000000e+00> : vector<16x16xf32>
    %227 = tpu.matmul %226, %213, %cst_115 {dimension_numbers = #tpu.dot_dimension_numbers<[1], [0], [0], [1], [0, 0, 1, 1], [], []>} : vector<16x16xf32>, vector<16x16xf32>, vector<16x16xf32> -> vector<16x16xf32>
    %c2_116 = arith.constant 2 : index
    %c0_117 = arith.constant 0 : index
    %c0_118 = arith.constant 0 : index
    %228 = vector.load %arg5[%c2_116, %c0_117, %c0_118] : memref<4x16x32xf32, #tpu.memory_space<vmem>>, vector<1x16x32xf32>
    %229 = vector.shape_cast %228 : vector<1x16x32xf32> to vector<16x32xf32>
    %cst_119 = arith.constant dense<0.000000e+00> : vector<16x32xf32>
    %230 = tpu.matmul %227, %229, %cst_119 {dimension_numbers = #tpu.dot_dimension_numbers<[1], [0], [0], [1], [0, 0, 1, 1], [], []>} : vector<16x16xf32>, vector<16x32xf32>, vector<16x32xf32> -> vector<16x32xf32>
    %c9 = arith.constant 9 : index
    %c0_120 = arith.constant 0 : index
    %c0_121 = arith.constant 0 : index
    %231 = vector.load %arg4[%c9, %c0_120, %c0_121] : memref<12x32x16xf32, #tpu.memory_space<vmem>>, vector<1x32x16xf32>
    %232 = vector.shape_cast %231 : vector<1x32x16xf32> to vector<32x16xf32>
    %cst_122 = arith.constant dense<0.000000e+00> : vector<16x16xf32>
    %233 = tpu.matmul %195, %232, %cst_122 {dimension_numbers = #tpu.dot_dimension_numbers<[1], [0], [0], [1], [0, 0, 1, 1], [], []>} : vector<16x32xf32>, vector<32x16xf32>, vector<16x16xf32> -> vector<16x16xf32>
    %c50 = arith.constant 50 : index
    %c0_123 = arith.constant 0 : index
    %234 = vector.load %arg3[%c50, %c0_123] : memref<56x128xf32, #tpu.memory_space<vmem>>, vector<1x16xf32>
    %235 = vector.broadcast %234 : vector<1x16xf32> to vector<16x16xf32>
    %236 = arith.addf %233, %235 : vector<16x16xf32>
    %c10 = arith.constant 10 : index
    %c0_124 = arith.constant 0 : index
    %c0_125 = arith.constant 0 : index
    %237 = vector.load %arg4[%c10, %c0_124, %c0_125] : memref<12x32x16xf32, #tpu.memory_space<vmem>>, vector<1x32x16xf32>
    %238 = vector.shape_cast %237 : vector<1x32x16xf32> to vector<32x16xf32>
    %cst_126 = arith.constant dense<0.000000e+00> : vector<16x16xf32>
    %239 = tpu.matmul %195, %238, %cst_126 {dimension_numbers = #tpu.dot_dimension_numbers<[1], [0], [0], [1], [0, 0, 1, 1], [], []>} : vector<16x32xf32>, vector<32x16xf32>, vector<16x16xf32> -> vector<16x16xf32>
    %c51 = arith.constant 51 : index
    %c0_127 = arith.constant 0 : index
    %240 = vector.load %arg3[%c51, %c0_127] : memref<56x128xf32, #tpu.memory_space<vmem>>, vector<1x16xf32>
    %241 = vector.broadcast %240 : vector<1x16xf32> to vector<16x16xf32>
    %242 = arith.addf %239, %241 : vector<16x16xf32>
    %c11 = arith.constant 11 : index
    %c0_128 = arith.constant 0 : index
    %c0_129 = arith.constant 0 : index
    %243 = vector.load %arg4[%c11, %c0_128, %c0_129] : memref<12x32x16xf32, #tpu.memory_space<vmem>>, vector<1x32x16xf32>
    %244 = vector.shape_cast %243 : vector<1x32x16xf32> to vector<32x16xf32>
    %cst_130 = arith.constant dense<0.000000e+00> : vector<16x16xf32>
    %245 = tpu.matmul %195, %244, %cst_130 {dimension_numbers = #tpu.dot_dimension_numbers<[1], [0], [0], [1], [0, 0, 1, 1], [], []>} : vector<16x32xf32>, vector<32x16xf32>, vector<16x16xf32> -> vector<16x16xf32>
    %c52 = arith.constant 52 : index
    %c0_131 = arith.constant 0 : index
    %246 = vector.load %arg3[%c52, %c0_131] : memref<56x128xf32, #tpu.memory_space<vmem>>, vector<1x16xf32>
    %247 = vector.broadcast %246 : vector<1x16xf32> to vector<16x16xf32>
    %248 = arith.addf %245, %247 : vector<16x16xf32>
    "tpu.trace_start"() <{level = 10 : i32, message = "qd,kd->qk"}> : () -> ()
    %cst_132 = arith.constant dense<0.000000e+00> : vector<16x16xf32>
    %249 = tpu.matmul %236, %242, %cst_132 {dimension_numbers = #tpu.dot_dimension_numbers<[1], [1], [0], [0], [0, 0, 1, 0], [], []>} : vector<16x16xf32>, vector<16x16xf32>, vector<16x16xf32> -> vector<16x16xf32>
    "tpu.trace_stop"() : () -> ()
    %cst_133 = arith.constant 2.500000e-01 : f32
    %250 = vector.broadcast %cst_133 : f32 to vector<16x16xf32>
    %251 = arith.mulf %249, %250 : vector<16x16xf32>
    %252 = arith.addf %251, %50 : vector<16x16xf32>
    %cst_134 = arith.constant dense<0xFF800000> : vector<16xf32>
    %253 = vector.multi_reduction <maximumf>, %252, %cst_134 [1] : vector<16x16xf32> to vector<16xf32>
    %254 = vector.shape_cast %253 : vector<16xf32> to vector<16x1xf32>
    %255 = vector.broadcast %254 : vector<16x1xf32> to vector<16x16xf32>
    %256 = arith.subf %252, %255 : vector<16x16xf32>
    %257 = math.exp %256 : vector<16x16xf32>
    %cst_135 = arith.constant dense<0.000000e+00> : vector<16xf32>
    %258 = vector.multi_reduction <add>, %257, %cst_135 [1] : vector<16x16xf32> to vector<16xf32>
    %259 = vector.shape_cast %258 : vector<16xf32> to vector<16x1xf32>
    %260 = vector.broadcast %259 : vector<16x1xf32> to vector<16x16xf32>
    %261 = arith.divf %257, %260 : vector<16x16xf32>
    %cst_136 = arith.constant dense<0.000000e+00> : vector<16x16xf32>
    %262 = tpu.matmul %261, %248, %cst_136 {dimension_numbers = #tpu.dot_dimension_numbers<[1], [0], [0], [1], [0, 0, 1, 1], [], []>} : vector<16x16xf32>, vector<16x16xf32>, vector<16x16xf32> -> vector<16x16xf32>
    %c3_137 = arith.constant 3 : index
    %c0_138 = arith.constant 0 : index
    %c0_139 = arith.constant 0 : index
    %263 = vector.load %arg5[%c3_137, %c0_138, %c0_139] : memref<4x16x32xf32, #tpu.memory_space<vmem>>, vector<1x16x32xf32>
    %264 = vector.shape_cast %263 : vector<1x16x32xf32> to vector<16x32xf32>
    %cst_140 = arith.constant dense<0.000000e+00> : vector<16x32xf32>
    %265 = tpu.matmul %262, %264, %cst_140 {dimension_numbers = #tpu.dot_dimension_numbers<[1], [0], [0], [1], [0, 0, 1, 1], [], []>} : vector<16x16xf32>, vector<16x32xf32>, vector<16x32xf32> -> vector<16x32xf32>
    %266 = arith.addf %230, %265 : vector<16x32xf32>
    %c40 = arith.constant 40 : index
    %c0_141 = arith.constant 0 : index
    %267 = vector.load %arg3[%c40, %c0_141] : memref<56x128xf32, #tpu.memory_space<vmem>>, vector<1x32xf32>
    %268 = vector.broadcast %267 : vector<1x32xf32> to vector<16x32xf32>
    %269 = arith.addf %266, %268 : vector<16x32xf32>
    %270 = arith.addf %269, %195 : vector<16x32xf32>
    %c43 = arith.constant 43 : index
    %c0_142 = arith.constant 0 : index
    %271 = vector.load %arg3[%c43, %c0_142] : memref<56x128xf32, #tpu.memory_space<vmem>>, vector<1x32xf32>
    %c44 = arith.constant 44 : index
    %c0_143 = arith.constant 0 : index
    %272 = vector.load %arg3[%c44, %c0_143] : memref<56x128xf32, #tpu.memory_space<vmem>>, vector<1x32xf32>
    %cst_144 = arith.constant dense<0.000000e+00> : vector<16xf32>
    %273 = vector.multi_reduction <add>, %270, %cst_144 [1] : vector<16x32xf32> to vector<16xf32>
    %274 = vector.shape_cast %273 : vector<16xf32> to vector<16x1xf32>
    %cst_145 = arith.constant 3.200000e+01 : f32
    %275 = vector.broadcast %cst_145 : f32 to vector<16x1xf32>
    %276 = arith.divf %274, %275 : vector<16x1xf32>
    %277 = vector.broadcast %276 : vector<16x1xf32> to vector<16x32xf32>
    %278 = arith.subf %270, %277 : vector<16x32xf32>
    %279 = arith.mulf %278, %278 : vector<16x32xf32>
    %cst_146 = arith.constant dense<0.000000e+00> : vector<16xf32>
    %280 = vector.multi_reduction <add>, %279, %cst_146 [1] : vector<16x32xf32> to vector<16xf32>
    %281 = vector.shape_cast %280 : vector<16xf32> to vector<16x1xf32>
    %cst_147 = arith.constant 3.200000e+01 : f32
    %282 = vector.broadcast %cst_147 : f32 to vector<16x1xf32>
    %283 = arith.divf %281, %282 : vector<16x1xf32>
    %cst_148 = arith.constant 9.99999996E-13 : f32
    %284 = vector.broadcast %cst_148 : f32 to vector<16x1xf32>
    %285 = arith.addf %283, %284 : vector<16x1xf32>
    %286 = math.rsqrt %285 : vector<16x1xf32>
    %287 = vector.broadcast %286 : vector<16x1xf32> to vector<16x32xf32>
    %288 = arith.mulf %278, %287 : vector<16x32xf32>
    %289 = vector.broadcast %271 : vector<1x32xf32> to vector<16x32xf32>
    %290 = arith.mulf %288, %289 : vector<16x32xf32>
    %291 = vector.broadcast %272 : vector<1x32xf32> to vector<16x32xf32>
    %292 = arith.addf %290, %291 : vector<16x32xf32>
    %c1_149 = arith.constant 1 : index
    %c0_150 = arith.constant 0 : index
    %c0_151 = arith.constant 0 : index
    %293 = vector.load %arg6[%c1_149, %c0_150, %c0_151] : memref<2x32x64xf32, #tpu.memory_space<vmem>>, vector<1x32x64xf32>
    %294 = vector.shape_cast %293 : vector<1x32x64xf32> to vector<32x64xf32>
    %cst_152 = arith.constant dense<0.000000e+00> : vector<16x64xf32>
    %295 = tpu.matmul %292, %294, %cst_152 {dimension_numbers = #tpu.dot_dimension_numbers<[1], [0], [0], [1], [0, 0, 1, 1], [], []>} : vector<16x32xf32>, vector<32x64xf32>, vector<16x64xf32> -> vector<16x64xf32>
    %c41 = arith.constant 41 : index
    %c0_153 = arith.constant 0 : index
    %296 = vector.load %arg3[%c41, %c0_153] : memref<56x128xf32, #tpu.memory_space<vmem>>, vector<1x64xf32>
    %297 = vector.broadcast %296 : vector<1x64xf32> to vector<16x64xf32>
    %298 = arith.addf %295, %297 : vector<16x64xf32>
    %cst_154 = arith.constant 5.000000e-01 : f32
    %299 = vector.broadcast %cst_154 : f32 to vector<16x64xf32>
    %300 = arith.mulf %299, %298 : vector<16x64xf32>
    %cst_155 = arith.constant 4.471500e-02 : f32
    %301 = vector.broadcast %cst_155 : f32 to vector<16x64xf32>
    %302 = arith.mulf %301, %298 : vector<16x64xf32>
    %303 = arith.mulf %302, %298 : vector<16x64xf32>
    %304 = arith.mulf %303, %298 : vector<16x64xf32>
    %305 = arith.addf %298, %304 : vector<16x64xf32>
    %cst_156 = arith.constant 0.797884583 : f32
    %306 = vector.broadcast %cst_156 : f32 to vector<16x64xf32>
    %307 = arith.mulf %306, %305 : vector<16x64xf32>
    %308 = math.tanh %307 : vector<16x64xf32>
    %cst_157 = arith.constant 1.000000e+00 : f32
    %309 = vector.broadcast %cst_157 : f32 to vector<16x64xf32>
    %310 = arith.addf %309, %308 : vector<16x64xf32>
    %311 = arith.mulf %300, %310 : vector<16x64xf32>
    %c1_158 = arith.constant 1 : index
    %c0_159 = arith.constant 0 : index
    %c0_160 = arith.constant 0 : index
    %312 = vector.load %arg7[%c1_158, %c0_159, %c0_160] : memref<2x64x32xf32, #tpu.memory_space<vmem>>, vector<1x64x32xf32>
    %313 = vector.shape_cast %312 : vector<1x64x32xf32> to vector<64x32xf32>
    %cst_161 = arith.constant dense<0.000000e+00> : vector<16x32xf32>
    %314 = tpu.matmul %311, %313, %cst_161 {dimension_numbers = #tpu.dot_dimension_numbers<[1], [0], [0], [1], [0, 0, 1, 1], [], []>} : vector<16x64xf32>, vector<64x32xf32>, vector<16x32xf32> -> vector<16x32xf32>
    %c42 = arith.constant 42 : index
    %c0_162 = arith.constant 0 : index
    %315 = vector.load %arg3[%c42, %c0_162] : memref<56x128xf32, #tpu.memory_space<vmem>>, vector<1x32xf32>
    %316 = vector.broadcast %315 : vector<1x32xf32> to vector<16x32xf32>
    %317 = arith.addf %314, %316 : vector<16x32xf32>
    %318 = arith.addf %317, %292 : vector<16x32xf32>
    %c45 = arith.constant 45 : index
    %c0_163 = arith.constant 0 : index
    %319 = vector.load %arg3[%c45, %c0_163] : memref<56x128xf32, #tpu.memory_space<vmem>>, vector<1x32xf32>
    %c46 = arith.constant 46 : index
    %c0_164 = arith.constant 0 : index
    %320 = vector.load %arg3[%c46, %c0_164] : memref<56x128xf32, #tpu.memory_space<vmem>>, vector<1x32xf32>
    %cst_165 = arith.constant dense<0.000000e+00> : vector<16xf32>
    %321 = vector.multi_reduction <add>, %318, %cst_165 [1] : vector<16x32xf32> to vector<16xf32>
    %322 = vector.shape_cast %321 : vector<16xf32> to vector<16x1xf32>
    %cst_166 = arith.constant 3.200000e+01 : f32
    %323 = vector.broadcast %cst_166 : f32 to vector<16x1xf32>
    %324 = arith.divf %322, %323 : vector<16x1xf32>
    %325 = vector.broadcast %324 : vector<16x1xf32> to vector<16x32xf32>
    %326 = arith.subf %318, %325 : vector<16x32xf32>
    %327 = arith.mulf %326, %326 : vector<16x32xf32>
    %cst_167 = arith.constant dense<0.000000e+00> : vector<16xf32>
    %328 = vector.multi_reduction <add>, %327, %cst_167 [1] : vector<16x32xf32> to vector<16xf32>
    %329 = vector.shape_cast %328 : vector<16xf32> to vector<16x1xf32>
    %cst_168 = arith.constant 3.200000e+01 : f32
    %330 = vector.broadcast %cst_168 : f32 to vector<16x1xf32>
    %331 = arith.divf %329, %330 : vector<16x1xf32>
    %cst_169 = arith.constant 9.99999996E-13 : f32
    %332 = vector.broadcast %cst_169 : f32 to vector<16x1xf32>
    %333 = arith.addf %331, %332 : vector<16x1xf32>
    %334 = math.rsqrt %333 : vector<16x1xf32>
    %335 = vector.broadcast %334 : vector<16x1xf32> to vector<16x32xf32>
    %336 = arith.mulf %326, %335 : vector<16x32xf32>
    %337 = vector.broadcast %319 : vector<1x32xf32> to vector<16x32xf32>
    %338 = arith.mulf %336, %337 : vector<16x32xf32>
    %339 = vector.broadcast %320 : vector<1x32xf32> to vector<16x32xf32>
    %340 = arith.addf %338, %339 : vector<16x32xf32>
    %c0_170 = arith.constant 0 : index
    %c0_171 = arith.constant 0 : index
    %341 = vector.load %arg8[%c0_170, %c0_171] : memref<32x128xf32, #tpu.memory_space<vmem>>, vector<32x128xf32>
    %cst_172 = arith.constant dense<0.000000e+00> : vector<16x128xf32>
    %342 = tpu.matmul %340, %341, %cst_172 {dimension_numbers = #tpu.dot_dimension_numbers<[1], [0], [0], [1], [0, 0, 1, 1], [], []>} : vector<16x32xf32>, vector<32x128xf32>, vector<16x128xf32> -> vector<16x128xf32>
    %c3_173 = arith.constant 3 : index
    %c0_174 = arith.constant 0 : index
    %343 = vector.load %arg3[%c3_173, %c0_174] : memref<56x128xf32, #tpu.memory_space<vmem>>, vector<1x128xf32>
    %344 = vector.broadcast %343 : vector<1x128xf32> to vector<16x128xf32>
    %345 = arith.addf %342, %344 : vector<16x128xf32>
    %c0_175 = arith.constant 0 : index
    %c0_176 = arith.constant 0 : index
    %346 = vector.load %arg9[%c0_175, %c0_176] : memref<17x128xf32, #tpu.memory_space<vmem>>, vector<16x128xf32>
    tpu.vector_store %arg9[%c0_175, %c0_176], %345 {strides = array<i32>} : memref<17x128xf32, #tpu.memory_space<vmem>>, vector<16x128xf32>,
    %cst_177 = arith.constant dense<0xFF800000> : vector<16xf32>
    %347 = vector.multi_reduction <maximumf>, %345, %cst_177 [1] : vector<16x128xf32> to vector<16xf32>
    %348 = vector.shape_cast %347 : vector<16xf32> to vector<16x1xf32>
    %349 = vector.broadcast %348 : vector<16x1xf32> to vector<16x128xf32>
    %350 = arith.subf %345, %349 : vector<16x128xf32>
    %351 = math.exp %350 : vector<16x128xf32>
    %cst_178 = arith.constant dense<0.000000e+00> : vector<16xf32>
    %352 = vector.multi_reduction <add>, %351, %cst_178 [1] : vector<16x128xf32> to vector<16xf32>
    %353 = vector.shape_cast %352 : vector<16xf32> to vector<16x1xf32>
    %354 = math.log %353 : vector<16x1xf32>
    %355 = arith.addf %348, %354 : vector<16x1xf32>
    %356 = tpu.iota {dimensions = array<i32: 1>} : vector<16x128xi32>
    %357 = vector.broadcast %1 : vector<16x1xi32> to vector<16x128xi32>
    %358 = arith.cmpi eq, %356, %357 : vector<16x128xi32>
    %359 = arith.extui %358 : vector<16x128xi1> to vector<16x128xi32>
    %360 = arith.sitofp %359 : vector<16x128xi32> to vector<16x128xf32>
    %361 = arith.mulf %360, %345 : vector<16x128xf32>
    %cst_179 = arith.constant dense<0.000000e+00> : vector<16xf32>
    %362 = vector.multi_reduction <add>, %361, %cst_179 [1] : vector<16x128xf32> to vector<16xf32>
    %363 = vector.shape_cast %362 : vector<16xf32> to vector<16x1xf32>
    %c-100_i32 = arith.constant -100 : i32
    %364 = vector.broadcast %c-100_i32 : i32 to vector<16x1xi32>
    %365 = arith.cmpi ne, %1, %364 : vector<16x1xi32>
    %366 = arith.subf %355, %363 : vector<16x1xf32>
    %cst_180 = arith.constant 0.000000e+00 : f32
    %367 = vector.broadcast %cst_180 : f32 to vector<16x1xf32>
    %368 = arith.select %365, %366, %367 : vector<16x1xi1>, vector<16x1xf32>
    %cst_181 = arith.constant dense<0.000000e+00> : vector<1xf32>
    %369 = vector.multi_reduction <add>, %368, %cst_181 [0] : vector<16x1xf32> to vector<1xf32>
    %370 = vector.shape_cast %369 : vector<1xf32> to vector<1x1xf32>
    %371 = arith.extui %365 : vector<16x1xi1> to vector<16x1xi32>
    %372 = arith.sitofp %371 : vector<16x1xi32> to vector<16x1xf32>
    %cst_182 = arith.constant dense<0.000000e+00> : vector<1xf32>
    %373 = vector.multi_reduction <add>, %372, %cst_182 [0] : vector<16x1xf32> to vector<1xf32>
    %374 = vector.shape_cast %373 : vector<1xf32> to vector<1x1xf32>
    %375 = arith.divf %370, %374 : vector<1x1xf32>
    %cst_183 = arith.constant 0.000000e+00 : f32
    %376 = vector.broadcast %cst_183 : f32 to vector<1x128xf32>
    %377 = vector.broadcast %375 : vector<1x1xf32> to vector<1x128xf32>
    %378 = arith.addf %377, %376 : vector<1x128xf32>
    %c16 = arith.constant 16 : index
    %c0_184 = arith.constant 0 : index
    %379 = vector.load %arg9[%c16, %c0_184] : memref<17x128xf32, #tpu.memory_space<vmem>>, vector<1x128xf32>
    tpu.vector_store %arg9[%c16, %c0_184], %378 {strides = array<i32>} : memref<17x128xf32, #tpu.memory_space<vmem>>, vector<1x128xf32>,
    return
  }
}

</mosaic_0001>

<llo_original>
// kernel: ner_forward.1
$region0: #{ner_forward.1}
  #allocation0 [shape = 'u32[]', space=smem, size = 0x4, offset = 0x4, fixed_abs, tag = 'smem constant byte address 0x4 - core index']
  #allocation1 [shape = 'u32[144,128]{1,0:T(1,128)}', space=vmem, size = 0x12000, scoped, tag = 'internal scratch']
  %s0 = inlined_call_operand.vmem [shape: s32[16,4], index: 0, kind: input, shape index: {}]
  %s1 = inlined_call_operand.vmem [shape: s32[1,16], index: 1, kind: input, shape index: {}]
  %s2 = inlined_call_operand.vmem [shape: f32[100,32], index: 2, kind: input, shape index: {}]
  %s3 = inlined_call_operand.vmem [shape: f32[56,128], index: 3, kind: input, shape index: {}]
  %s4 = inlined_call_operand.vmem [shape: f32[12,32,16], index: 4, kind: input, shape index: {}]
  %s5 = inlined_call_operand.vmem [shape: f32[4,16,32], index: 5, kind: input, shape index: {}]
  %s6 = inlined_call_operand.vmem [shape: f32[2,32,64], index: 6, kind: input, shape index: {}]
  %s7 = inlined_call_operand.vmem [shape: f32[2,64,32], index: 7, kind: input, shape index: {}]
  %s8 = inlined_call_operand.vmem [shape: f32[32,128], index: 8, kind: input, shape index: {}]
  %s9 = inlined_call_operand.vmem [shape: f32[17,128], index: 9, kind: output, shape index: {}]
  %s10 = sld [smem:[#allocation0]]
  $region46: #{ner_forward.1} parent=0
    _
  %s12 = ssub.s32 1, %s10
  %s13 = scalar_select 0, %s12, %s10
  // Predicated region
  $region2: #{ner_forward.1} parent=0 // pred_check
    _
  $region3: #{ner_forward.1} parent=0 // pred_check_branch
    %15 = sbr.rel (0) target = $region5
  $region4: #{ner_forward.1} parent=0 // pred_region
    _
  $region5: #{ner_forward.1} parent=0 // pred_fallthru
    _
  // Predicated region
  $region6: #{ner_forward.1} parent=0 // pred_check
    _
  $region7: #{ner_forward.1} parent=0 // pred_check_branch
    %17 = sbr.rel (0) target = $region9
  $region8: #{ner_forward.1} parent=0 // pred_region
    _
  $region9: #{ner_forward.1} parent=0 // pred_fallthru
    _
  // Predicated region
  $region10: #{ner_forward.1} parent=0 // pred_check
    _
  $region11: #{ner_forward.1} parent=0 // pred_check_branch
    %19 = sbr.rel (0) target = $region13
  $region12: #{ner_forward.1} parent=0 // pred_region
    _
  $region13: #{ner_forward.1} parent=0 // pred_fallthru
    _
  // Predicated region
  $region14: #{ner_forward.1} parent=0 // pred_check
    _
  $region15: #{ner_forward.1} parent=0 // pred_check_branch
    %21 = sbr.rel (0) target = $region17
  $region16: #{ner_forward.1} parent=0 // pred_region
    _
  $region17: #{ner_forward.1} parent=0 // pred_fallthru
    _
  // Predicated region
  $region18: #{ner_forward.1} parent=0 // pred_check
    _
  $region19: #{ner_forward.1} parent=0 // pred_check_branch
    %23 = sbr.rel (0) target = $region21
  $region20: #{ner_forward.1} parent=0 // pred_region
    _
  $region21: #{ner_forward.1} parent=0 // pred_fallthru
    _
  // Predicated region
  $region22: #{ner_forward.1} parent=0 // pred_check
    _
  $region23: #{ner_forward.1} parent=0 // pred_check_branch
    %25 = sbr.rel (0) target = $region25
  $region24: #{ner_forward.1} parent=0 // pred_region
    _
  $region25: #{ner_forward.1} parent=0 // pred_fallthru
    _
  // Predicated region
  $region26: #{ner_forward.1} parent=0 // pred_check
    _
  $region27: #{ner_forward.1} parent=0 // pred_check_branch
    %27 = sbr.rel (0) target = $region29
  $region28: #{ner_forward.1} parent=0 // pred_region
    _
  $region29: #{ner_forward.1} parent=0 // pred_fallthru
    _
  // Predicated region
  $region30: #{ner_forward.1} parent=0 // pred_check
    _
  $region31: #{ner_forward.1} parent=0 // pred_check_branch
    %29 = sbr.rel (0) target = $region33
  $region32: #{ner_forward.1} parent=0 // pred_region
    _
  $region33: #{ner_forward.1} parent=0 // pred_fallthru
    _
  // Predicated region
  $region34: #{ner_forward.1} parent=0 // pred_check
    _
  $region35: #{ner_forward.1} parent=0 // pred_check_branch
    %31 = sbr.rel (0) target = $region37
  $region36: #{ner_forward.1} parent=0 // pred_region
    _
  $region37: #{ner_forward.1} parent=0 // pred_fallthru
    _
  %v32 = vld [vmem:[%s0] sm:$0xff]
  %v33 = vld [vmem:[%s0 + $0x8] sm:$0xff]
  %v34 = vlaneseq
  %v35 = vand.u32 %v34, 127
  %36 = vset.pattern.permute.xlu0 0
  %37 = vperm.xlu0 %36, %v32
  %v38 = vpop.permute.xlu0 %37
  %39 = vset.pattern.permute.xlu0 0
  %40 = vperm.xlu0 %39, %v33
  %v41 = vpop.permute.xlu0 %40
  %vm42 = vcmp.eq.s32.totalorder %v35, %v38
  %vm43 = vcmp.eq.s32.totalorder %v35, %v41
  %v44 = vsel %vm42, 1, 0
  %v45 = vsel %vm43, 1, 0
  %v46 = vcvt.s32.f32 %v44
  %v47 = vcvt.s32.f32 %v45
  %v48 = vld [vmem:[%s2] sm:$0xff]
  %v49 = vld [vmem:[%s2 + $0x8] sm:$0xff]
  %v50 = vld [vmem:[%s2 + $0x10] sm:$0xff]
  %v51 = vld [vmem:[%s2 + $0x18] sm:$0xff]
  %v52 = vld [vmem:[%s2 + $0x20] sm:$0xff]
  %v53 = vld [vmem:[%s2 + $0x28] sm:$0xff]
  %v54 = vld [vmem:[%s2 + $0x30] sm:$0xff]
  %v55 = vld [vmem:[%s2 + $0x38] sm:$0xff]
  %v56 = vld [vmem:[%s2 + $0x40] sm:$0xff]
  %v57 = vld [vmem:[%s2 + $0x48] sm:$0xff]
  %v58 = vld [vmem:[%s2 + $0x50] sm:$0xff]
  %v59 = vld [vmem:[%s2 + $0x58] sm:$0xff]
  %v60 = vld [vmem:[%s2 + $0x60] sm:$0xf]
  %61 = vset.pattern.permute.xlu0 3
  %62 = vperm.xlu0 %61, %v32
  %v63 = vpop.permute.xlu0 %62
  %64 = vset.pattern.permute.xlu0 3
  %65 = vperm.xlu0 %64, %v33
  %v66 = vpop.permute.xlu0 %65
  %vm67 = vcmp.eq.s32.totalorder %v35, %v63
  %vm68 = vcmp.eq.s32.totalorder %v35, %v66
  %v69 = vsel %vm67, 1, 0
  %v70 = vsel %vm68, 1, 0
  %v71 = vcvt.s32.f32 %v69
  %v72 = vcvt.s32.f32 %v70
  %v73 = vld [vmem:[%s3 + $0x8] sm:$0xff]
  %v74 = vld [vmem:[%s3 + $0x10] sm:$0xff]
  %vm75 = vcmask 130048
  %v77 = vsel %vm75, %v71, 0
  %v80 = vsel %vm75, %v72, 0
  %82 = vmatprep.subr.mxu0 0.0
  %83 = vmatpush1.msra.mxu0 0.0
  %84 = vmatprep.subr.mxu0 0.0
  %85 = vmatpush1.msra.mxu0 0.0
  %86 = vmatprep.subr.mxu0 0.0
  %87 = vmatpush1.msra.mxu0 0.0
  %88 = vmatprep.subr.mxu0 0.0
  %89 = vmatpush1.msra.mxu0 0.0
  %90 = vmatprep.subr.mxu0 0.0
  %91 = vmatpush1.msra.mxu0 0.0
  %92 = vmatprep.subr.mxu0 0.0
  %93 = vmatpush1.msra.mxu0 0.0
  %94 = vmatprep.subr.mxu0 0.0
  %95 = vmatpush1.msra.mxu0 0.0
  %96 = vmatprep.subr.mxu0 0.0
  %97 = vmatpush1.msra.mxu0 0.0
  %98 = vmatprep.subr.mxu0 0.0
  %99 = vmatpush1.msra.mxu0 0.0
  %100 = vmatprep.subr.mxu0 0.0
  %101 = vmatpush1.msra.mxu0 0.0
  %102 = vmatprep.subr.mxu0 0.0
  %103 = vmatpush1.msra.mxu0 0.0
  %104 = vmatprep.subr.mxu0 0.0
  %105 = vmatpush1.msra.mxu0 0.0
  %106 = vmatprep.subr.mxu0 0.0
  %107 = vmatpush1.msra.mxu0 0.0
  %108 = vmatprep.subr.mxu0 0.0
  %109 = vmatpush1.msra.mxu0 0.0
  %110 = vmatprep.subr.mxu0 0.0
  %111 = vmatpush1.msra.mxu0 %v74
  %112 = vmatprep.subr.mxu0 0.0
  %113 = vmatpush1.msra.mxu0 %v73
  %114 = vmatprep.subr.mxu0 0.0
  %115 = vmatpush2.msra.mxu0 0.0
  %116 = vmatprep.subr.mxu0 0.0
  %117 = vmatpush2.msra.mxu0 0.0
  %118 = vmatprep.subr.mxu0 0.0
  %119 = vmatpush2.msra.mxu0 0.0
  %120 = vmatprep.subr.mxu0 0.0
  %121 = vmatpush2.msra.mxu0 0.0
  %122 = vmatprep.subr.mxu0 0.0
  %123 = vmatpush2.msra.mxu0 0.0
  %124 = vmatprep.subr.mxu0 0.0
  %125 = vmatpush2.msra.mxu0 0.0
  %126 = vmatprep.subr.mxu0 0.0
  %127 = vmatpush2.msra.mxu0 0.0
  %128 = vmatprep.subr.mxu0 0.0
  %129 = vmatpush2.msra.mxu0 0.0
  %130 = vmatprep.subr.mxu0 0.0
  %131 = vmatpush2.msra.mxu0 0.0
  %132 = vmatprep.subr.mxu0 0.0
  %133 = vmatpush2.msra.mxu0 0.0
  %134 = vmatprep.subr.mxu0 0.0
  %135 = vmatpush2.msra.mxu0 0.0
  %136 = vmatprep.subr.mxu0 0.0
  %137 = vmatpush2.msra.mxu0 0.0
  %138 = vmatprep.subr.mxu0 0.0
  %139 = vmatpush2.msra.mxu0 0.0
  %140 = vmatprep.subr.mxu0 0.0
  %141 = vmatpush2.msra.mxu0 0.0
  %142 = vmatprep.subr.mxu0 0.0
  %143 = vmatpush2.msra.mxu0 0.0
  %144 = vmatprep.subr.mxu0 0.0
  %145 = vmatpush2.msra.mxu0 0.0
  %146 = vmatprep.mubr.f32.mxu0 0.0
  %147 = vmatmul.mubr.f32.gmra.mxu0 %v77
  %v148 = vpop.f32.mrf.mxu0
  %v149 = vadd.f32 0.0, %v148
  %v150 = vpop.f32.mrf.mxu0
  %151 = vmatprep.mubr.f32.mxu0 0.0
  %152 = vmatmul.mubr.f32.gmra.mxu0 %v80
  %v153 = vpop.f32.mrf.mxu0
  %v154 = vadd.f32 0.0, %v153
  %v155 = vpop.f32.mrf.mxu0
  %156 = vdwg.mxu0
  %vm157 = vcmask 818176
  %v159 = vsel %vm157, %v46, 0
  %v162 = vsel %vm157, %v47, 0
  %vm164 = vcmask 1043456
  %v166 = vsel %vm164, %v60, 0
  %168 = vmatprep.subr.mxu0 0.0
  %169 = vmatpush1.msra.mxu0 0.0
  %170 = vmatprep.subr.mxu0 0.0
  %171 = vmatpush1.msra.mxu0 0.0
  %172 = vmatprep.subr.mxu0 0.0
  %173 = vmatpush1.msra.mxu0 0.0
  %174 = vmatprep.subr.mxu0 0.0
  %175 = vmatpush1.msra.mxu0 %v166
  %176 = vmatprep.subr.mxu0 0.0
  %177 = vmatpush1.msra.mxu0 %v59
  %178 = vmatprep.subr.mxu0 0.0
  %179 = vmatpush1.msra.mxu0 %v58
  %180 = vmatprep.subr.mxu0 0.0
  %181 = vmatpush1.msra.mxu0 %v57
  %182 = vmatprep.subr.mxu0 0.0
  %183 = vmatpush1.msra.mxu0 %v56
  %184 = vmatprep.subr.mxu0 0.0
  %185 = vmatpush1.msra.mxu0 %v55
  %186 = vmatprep.subr.mxu0 0.0
  %187 = vmatpush1.msra.mxu0 %v54
  %188 = vmatprep.subr.mxu0 0.0
  %189 = vmatpush1.msra.mxu0 %v53
  %190 = vmatprep.subr.mxu0 0.0
  %191 = vmatpush1.msra.mxu0 %v52
  %192 = vmatprep.subr.mxu0 0.0
  %193 = vmatpush1.msra.mxu0 %v51
  %194 = vmatprep.subr.mxu0 0.0
  %195 = vmatpush1.msra.mxu0 %v50
  %196 = vmatprep.subr.mxu0 0.0
  %197 = vmatpush1.msra.mxu0 %v49
  %198 = vmatprep.subr.mxu0 0.0
  %199 = vmatpush1.msra.mxu0 %v48
  %200 = vmatprep.subr.mxu0 0.0
  %201 = vmatpush2.msra.mxu0 0.0
  %202 = vmatprep.subr.mxu0 0.0
  %203 = vmatpush2.msra.mxu0 0.0
  %204 = vmatprep.subr.mxu0 0.0
  %205 = vmatpush2.msra.mxu0 0.0
  %206 = vmatprep.subr.mxu0 0.0
  %207 = vmatpush2.msra.mxu0 0.0
  %208 = vmatprep.subr.mxu0 0.0
  %209 = vmatpush2.msra.mxu0 0.0
  %210 = vmatprep.subr.mxu0 0.0
  %211 = vmatpush2.msra.mxu0 0.0
  %212 = vmatprep.subr.mxu0 0.0
  %213 = vmatpush2.msra.mxu0 0.0
  %214 = vmatprep.subr.mxu0 0.0
  %215 = vmatpush2.msra.mxu0 0.0
  %216 = vmatprep.subr.mxu0 0.0
  %217 = vmatpush2.msra.mxu0 0.0
  %218 = vmatprep.subr.mxu0 0.0
  %219 = vmatpush2.msra.mxu0 0.0
  %220 = vmatprep.subr.mxu0 0.0
  %221 = vmatpush2.msra.mxu0 0.0
  %222 = vmatprep.subr.mxu0 0.0
  %223 = vmatpush2.msra.mxu0 0.0
  %224 = vmatprep.subr.mxu0 0.0
  %225 = vmatpush2.msra.mxu0 0.0
  %226 = vmatprep.subr.mxu0 0.0
  %227 = vmatpush2.msra.mxu0 0.0
  %228 = vmatprep.subr.mxu0 0.0
  %229 = vmatpush2.msra.mxu0 0.0
  %230 = vmatprep.subr.mxu0 0.0
  %231 = vmatpush2.msra.mxu0 0.0
  %232 = vmatprep.mubr.f32.mxu0 0.0
  %233 = vmatmul.mubr.f32.gmra.mxu0 %v159
  %v234 = vpop.f32.mrf.mxu0
  %v235 = vadd.f32 %v149, %v234
  %v236 = vpop.f32.mrf.mxu0
  %237 = vmatprep.mubr.f32.mxu0 0.0
  %238 = vmatmul.mubr.f32.gmra.mxu0 %v162
  %v239 = vpop.f32.mrf.mxu0
  %v240 = vadd.f32 %v154, %v239
  %v241 = vpop.f32.mrf.mxu0
  %242 = vdwg.mxu0
  %v243 = vld [vmem:[%s3 + $0x2] sm:$0x1]
  %v244 = vlaneseq
  %v245 = vshrl.u32 %v244, 7
  %v246 = vsub.s32 0, %v245
  %v247 = vrot.slane %v243, %v246
  %v248 = vadd.f32 %v235, %v247
  %v249 = vadd.f32 %v240, %v247
  %v250 = vld [vmem:[%s3] sm:$0x1]
  %v251 = vld [vmem:[%s3 + $0x1] sm:$0x1]
  %vm252 = vcmask 261120
  %v253 = vsel %vm252, %v248, 0.0
  %254 = vadd.xlane.f32.xlu0 %v253
  %v255 = vpop.xlane.xlu0 %254
  %v256 = vsel %vm252, %v249, 0.0
  %257 = vadd.xlane.f32.xlu0 %v256
  %v258 = vpop.xlane.xlu0 %257
  %v259 = vrcp.pop 32.0
  %v260 = vmul.f32 %v255, %v259
  %v261 = vmul.f32 %v258, %v259
  %v262 = vsub.f32 %v248, %v260
  %v263 = vsub.f32 %v249, %v261
  %v264 = vmul.f32 %v262, %v262
  %v265 = vmul.f32 %v263, %v263
  %v266 = vsel %vm252, %v264, 0.0
  %267 = vadd.xlane.f32.xlu0 %v266
  %v268 = vpop.xlane.xlu0 %267
  %v269 = vsel %vm252, %v265, 0.0
  %270 = vadd.xlane.f32.xlu0 %v269
  %v271 = vpop.xlane.xlu0 %270
  %v272 = vmul.f32 %v268, %v259
  %v273 = vmul.f32 %v271, %v259
  %v274 = vadd.f32 %v272, 1e-12
  %v275 = vadd.f32 %v273, 1e-12
  %v276 = vrsqrt.pop %v274
  %v277 = vrsqrt.pop %v275
  %v278 = vmul.f32 %v262, %v276
  %v279 = vmul.f32 %v263, %v277
  %v280 = vlaneseq
  %v281 = vshrl.u32 %v280, 7
  %v282 = vsub.s32 0, %v281
  %v283 = vrot.slane %v250, %v282
  %v284 = vmul.f32 %v278, %v283
  %v285 = vmul.f32 %v279, %v283
  %v286 = vlaneseq
  %v287 = vshrl.u32 %v286, 7
  %v288 = vsub.s32 0, %v287
  %v289 = vrot.slane %v251, %v288
  %v290 = vadd.f32 %v284, %v289
  %v291 = vadd.f32 %v285, %v289
  %v292 = vld [vmem:[%s1] sm:$0x1]
  %293 = vset.pattern.permute.xlu0 2
  %294 = vperm.xlu0 %293, %v32
  %v295 = vpop.permute.xlu0 %294
  %296 = vset.pattern.permute.xlu0 2
  %297 = vperm.xlu0 %296, %v33
  %v298 = vpop.permute.xlu0 %297
  %v299 = vlaneseq
  %v300 = vshrl.u32 %v299, 7
  %v301 = vsub.s32 0, %v300
  %v302 = vrot.slane %v292, %v301
  %vm303 = vcmp.eq.s32.totalorder %v295, %v302
  %vm304 = vcmp.eq.s32.totalorder %v298, %v302
  %v305 = vsel %vm303, 0.0, -10000.0
  %v306 = vsel %vm304, 0.0, -10000.0
  %v307 = vld [vmem:[%s4] sm:$0xff]
  %v308 = vld [vmem:[%s4 + $0x8] sm:$0xff]
  %v309 = vld [vmem:[%s4 + $0x10] sm:$0xff]
  %v310 = vld [vmem:[%s4 + $0x18] sm:$0xff]
  %v311 = vld [vmem:[%s3 + $0x1f] sm:$0x1]
  %v312 = vlaneseq
  %v313 = vshrl.u32 %v312, 7
  %v314 = vsub.s32 0, %v313
  %v315 = vrot.slane %v311, %v314
  %v317 = vsel %vm252, %v290, 0
  %v320 = vsel %vm252, %v291, 0
  %322 = vmatprep.subr.mxu0 0.0
  %323 = vmatpush1.msra.mxu0 0.0
  %324 = vmatprep.subr.mxu0 0.0
  %325 = vmatpush1.msra.mxu0 0.0
  %326 = vmatprep.subr.mxu0 0.0
  %327 = vmatpush1.msra.mxu0 0.0
  %328 = vmatprep.subr.mxu0 0.0
  %329 = vmatpush1.msra.mxu0 0.0
  %330 = vmatprep.subr.mxu0 0.0
  %331 = vmatpush1.msra.mxu0 0.0
  %332 = vmatprep.subr.mxu0 0.0
  %333 = vmatpush1.msra.mxu0 0.0
  %334 = vmatprep.subr.mxu0 0.0
  %335 = vmatpush1.msra.mxu0 0.0
  %336 = vmatprep.subr.mxu0 0.0
  %337 = vmatpush1.msra.mxu0 0.0
  %338 = vmatprep.subr.mxu0 0.0
  %339 = vmatpush1.msra.mxu0 0.0
  %340 = vmatprep.subr.mxu0 0.0
  %341 = vmatpush1.msra.mxu0 0.0
  %342 = vmatprep.subr.mxu0 0.0
  %343 = vmatpush1.msra.mxu0 0.0
  %344 = vmatprep.subr.mxu0 0.0
  %345 = vmatpush1.msra.mxu0 0.0
  %346 = vmatprep.subr.mxu0 0.0
  %347 = vmatpush1.msra.mxu0 %v310
  %348 = vmatprep.subr.mxu0 0.0
  %349 = vmatpush1.msra.mxu0 %v309
  %350 = vmatprep.subr.mxu0 0.0
  %351 = vmatpush1.msra.mxu0 %v308
  %352 = vmatprep.subr.mxu0 0.0
  %353 = vmatpush1.msra.mxu0 %v307
  %354 = vmatprep.subr.mxu0 0.0
  %355 = vmatpush2.msra.mxu0 0.0
  %356 = vmatprep.subr.mxu0 0.0
  %357 = vmatpush2.msra.mxu0 0.0
  %358 = vmatprep.subr.mxu0 0.0
  %359 = vmatpush2.msra.mxu0 0.0
  %360 = vmatprep.subr.mxu0 0.0
  %361 = vmatpush2.msra.mxu0 0.0
  %362 = vmatprep.subr.mxu0 0.0
  %363 = vmatpush2.msra.mxu0 0.0
  %364 = vmatprep.subr.mxu0 0.0
  %365 = vmatpush2.msra.mxu0 0.0
  %366 = vmatprep.subr.mxu0 0.0
  %367 = vmatpush2.msra.mxu0 0.0
  %368 = vmatprep.subr.mxu0 0.0
  %369 = vmatpush2.msra.mxu0 0.0
  %370 = vmatprep.subr.mxu0 0.0
  %371 = vmatpush2.msra.mxu0 0.0
  %372 = vmatprep.subr.mxu0 0.0
  %373 = vmatpush2.msra.mxu0 0.0
  %374 = vmatprep.subr.mxu0 0.0
  %375 = vmatpush2.msra.mxu0 0.0
  %376 = vmatprep.subr.mxu0 0.0
  %377 = vmatpush2.msra.mxu0 0.0
  %378 = vmatprep.subr.mxu0 0.0
  %379 = vmatpush2.msra.mxu0 0.0
  %380 = vmatprep.subr.mxu0 0.0
  %381 = vmatpush2.msra.mxu0 0.0
  %382 = vmatprep.subr.mxu0 0.0
  %383 = vmatpush2.msra.mxu0 0.0
  %384 = vmatprep.subr.mxu0 0.0
  %385 = vmatpush2.msra.mxu0 0.0
  %386 = vmatprep.mubr.f32.mxu0 0.0
  %387 = vmatmul.mubr.f32.gmra.mxu0 %v317
  %v388 = vpop.f32.mrf.mxu0
  %v389 = vadd.f32 %v315, %v388
  %v390 = vpop.f32.mrf.mxu0
  %391 = vmatprep.mubr.f32.mxu0 0.0
  %392 = vmatmul.mubr.f32.gmra.mxu0 %v320
  %v393 = vpop.f32.mrf.mxu0
  %v394 = vadd.f32 %v315, %v393
  %v395 = vpop.f32.mrf.mxu0
  %396 = vdwg.mxu0
  %s397 = scalar_lea.vmem %s4, 32
  %v398 = vld [vmem:[%s397] sm:$0xff]
  %v399 = vld [vmem:[%s397 + $0x8] sm:$0xff]
  %v400 = vld [vmem:[%s397 + $0x10] sm:$0xff]
  %v401 = vld [vmem:[%s397 + $0x18] sm:$0xff]
  %v402 = vld [vmem:[%s3 + $0x20] sm:$0x1]
  %v403 = vlaneseq
  %v404 = vshrl.u32 %v403, 7
  %v405 = vsub.s32 0, %v404
  %v406 = vrot.slane %v402, %v405
  %407 = vmatprep.subr.mxu0 0.0
  %408 = vmatpush1.msra.mxu0 0.0
  %409 = vmatprep.subr.mxu0 0.0
  %410 = vmatpush1.msra.mxu0 0.0
  %411 = vmatprep.subr.mxu0 0.0
  %412 = vmatpush1.msra.mxu0 0.0
  %413 = vmatprep.subr.mxu0 0.0
  %414 = vmatpush1.msra.mxu0 0.0
  %415 = vmatprep.subr.mxu0 0.0
  %416 = vmatpush1.msra.mxu0 0.0
  %417 = vmatprep.subr.mxu0 0.0
  %418 = vmatpush1.msra.mxu0 0.0
  %419 = vmatprep.subr.mxu0 0.0
  %420 = vmatpush1.msra.mxu0 0.0
  %421 = vmatprep.subr.mxu0 0.0
  %422 = vmatpush1.msra.mxu0 0.0
  %423 = vmatprep.subr.mxu0 0.0
  %424 = vmatpush1.msra.mxu0 0.0
  %425 = vmatprep.subr.mxu0 0.0
  %426 = vmatpush1.msra.mxu0 0.0
  %427 = vmatprep.subr.mxu0 0.0
  %428 = vmatpush1.msra.mxu0 0.0
  %429 = vmatprep.subr.mxu0 0.0
  %430 = vmatpush1.msra.mxu0 0.0
  %431 = vmatprep.subr.mxu0 0.0
  %432 = vmatpush1.msra.mxu0 %v401
  %433 = vmatprep.subr.mxu0 0.0
  %434 = vmatpush1.msra.mxu0 %v400
  %435 = vmatprep.subr.mxu0 0.0
  %436 = vmatpush1.msra.mxu0 %v399
  %437 = vmatprep.subr.mxu0 0.0
  %438 = vmatpush1.msra.mxu0 %v398
  %439 = vmatprep.subr.mxu0 0.0
  %440 = vmatpush2.msra.mxu0 0.0
  %441 = vmatprep.subr.mxu0 0.0
  %442 = vmatpush2.msra.mxu0 0.0
  %443 = vmatprep.subr.mxu0 0.0
  %444 = vmatpush2.msra.mxu0 0.0
  %445 = vmatprep.subr.mxu0 0.0
  %446 = vmatpush2.msra.mxu0 0.0
  %447 = vmatprep.subr.mxu0 0.0
  %448 = vmatpush2.msra.mxu0 0.0
  %449 = vmatprep.subr.mxu0 0.0
  %450 = vmatpush2.msra.mxu0 0.0
  %451 = vmatprep.subr.mxu0 0.0
  %452 = vmatpush2.msra.mxu0 0.0
  %453 = vmatprep.subr.mxu0 0.0
  %454 = vmatpush2.msra.mxu0 0.0
  %455 = vmatprep.subr.mxu0 0.0
  %456 = vmatpush2.msra.mxu0 0.0
  %457 = vmatprep.subr.mxu0 0.0
  %458 = vmatpush2.msra.mxu0 0.0
  %459 = vmatprep.subr.mxu0 0.0
  %460 = vmatpush2.msra.mxu0 0.0
  %461 = vmatprep.subr.mxu0 0.0
  %462 = vmatpush2.msra.mxu0 0.0
  %463 = vmatprep.subr.mxu0 0.0
  %464 = vmatpush2.msra.mxu0 0.0
  %465 = vmatprep.subr.mxu0 0.0
  %466 = vmatpush2.msra.mxu0 0.0
  %467 = vmatprep.subr.mxu0 0.0
  %468 = vmatpush2.msra.mxu0 0.0
  %469 = vmatprep.subr.mxu0 0.0
  %470 = vmatpush2.msra.mxu0 0.0
  %471 = vmatprep.mubr.f32.mxu0 0.0
  %472 = vmatmul.mubr.f32.gmra.mxu0 %v317
  %v473 = vpop.f32.mrf.mxu0
  %v474 = vadd.f32 %v406, %v473
  %v475 = vpop.f32.mrf.mxu0
  %476 = vmatprep.mubr.f32.mxu0 0.0
  %477 = vmatmul.mubr.f32.gmra.mxu0 %v320
  %v478 = vpop.f32.mrf.mxu0
  %v479 = vadd.f32 %v406, %v478
  %v480 = vpop.f32.mrf.mxu0
  %481 = vdwg.mxu0
  %s482 = scalar_lea.vmem %s4, 64
  %v483 = vld [vmem:[%s482] sm:$0xff]
  %v484 = vld [vmem:[%s482 + $0x8] sm:$0xff]
  %v485 = vld [vmem:[%s482 + $0x10] sm:$0xff]
  %v486 = vld [vmem:[%s482 + $0x18] sm:$0xff]
  %v487 = vld [vmem:[%s3 + $0x21] sm:$0x1]
  %v488 = vlaneseq
  %v489 = vshrl.u32 %v488, 7
  %v490 = vsub.s32 0, %v489
  %v491 = vrot.slane %v487, %v490
  %492 = vmatprep.subr.mxu0 0.0
  %493 = vmatpush1.msra.mxu0 0.0
  %494 = vmatprep.subr.mxu0 0.0
  %495 = vmatpush1.msra.mxu0 0.0
  %496 = vmatprep.subr.mxu0 0.0
  %497 = vmatpush1.msra.mxu0 0.0
  %498 = vmatprep.subr.mxu0 0.0
  %499 = vmatpush1.msra.mxu0 0.0
  %500 = vmatprep.subr.mxu0 0.0
  %501 = vmatpush1.msra.mxu0 0.0
  %502 = vmatprep.subr.mxu0 0.0
  %503 = vmatpush1.msra.mxu0 0.0
  %504 = vmatprep.subr.mxu0 0.0
  %505 = vmatpush1.msra.mxu0 0.0
  %506 = vmatprep.subr.mxu0 0.0
  %507 = vmatpush1.msra.mxu0 0.0
  %508 = vmatprep.subr.mxu0 0.0
  %509 = vmatpush1.msra.mxu0 0.0
  %510 = vmatprep.subr.mxu0 0.0
  %511 = vmatpush1.msra.mxu0 0.0
  %512 = vmatprep.subr.mxu0 0.0
  %513 = vmatpush1.msra.mxu0 0.0
  %514 = vmatprep.subr.mxu0 0.0
  %515 = vmatpush1.msra.mxu0 0.0
  %516 = vmatprep.subr.mxu0 0.0
  %517 = vmatpush1.msra.mxu0 %v486
  %518 = vmatprep.subr.mxu0 0.0
  %519 = vmatpush1.msra.mxu0 %v485
  %520 = vmatprep.subr.mxu0 0.0
  %521 = vmatpush1.msra.mxu0 %v484
  %522 = vmatprep.subr.mxu0 0.0
  %523 = vmatpush1.msra.mxu0 %v483
  %524 = vmatprep.subr.mxu0 0.0
  %525 = vmatpush2.msra.mxu0 0.0
  %526 = vmatprep.subr.mxu0 0.0
  %527 = vmatpush2.msra.mxu0 0.0
  %528 = vmatprep.subr.mxu0 0.0
  %529 = vmatpush2.msra.mxu0 0.0
  %530 = vmatprep.subr.mxu0 0.0
  %531 = vmatpush2.msra.mxu0 0.0
  %532 = vmatprep.subr.mxu0 0.0
  %533 = vmatpush2.msra.mxu0 0.0
  %534 = vmatprep.subr.mxu0 0.0
  %535 = vmatpush2.msra.mxu0 0.0
  %536 = vmatprep.subr.mxu0 0.0
  %537 = vmatpush2.msra.mxu0 0.0
  %538 = vmatprep.subr.mxu0 0.0
  %539 = vmatpush2.msra.mxu0 0.0
  %540 = vmatprep.subr.mxu0 0.0
  %541 = vmatpush2.msra.mxu0 0.0
  %542 = vmatprep.subr.mxu0 0.0
  %543 = vmatpush2.msra.mxu0 0.0
  %544 = vmatprep.subr.mxu0 0.0
  %545 = vmatpush2.msra.mxu0 0.0
  %546 = vmatprep.subr.mxu0 0.0
  %547 = vmatpush2.msra.mxu0 0.0
  %548 = vmatprep.subr.mxu0 0.0
  %549 = vmatpush2.msra.mxu0 0.0
  %550 = vmatprep.subr.mxu0 0.0
  %551 = vmatpush2.msra.mxu0 0.0
  %552 = vmatprep.subr.mxu0 0.0
  %553 = vmatpush2.msra.mxu0 0.0
  %554 = vmatprep.subr.mxu0 0.0
  %555 = vmatpush2.msra.mxu0 0.0
  %556 = vmatprep.mubr.f32.mxu0 0.0
  %557 = vmatmul.mubr.f32.gmra.mxu0 %v317
  %v558 = vpop.f32.mrf.mxu0
  %v559 = vadd.f32 %v491, %v558
  %v560 = vpop.f32.mrf.mxu0
  %561 = vmatprep.mubr.f32.mxu0 0.0
  %562 = vmatmul.mubr.f32.gmra.mxu0 %v320
  %v563 = vpop.f32.mrf.mxu0
  %v564 = vadd.f32 %v491, %v563
  %v565 = vpop.f32.mrf.mxu0
  %566 = vdwg.mxu0
  %v568 = vsel %vm75, %v389, 0
  %v571 = vsel %vm75, %v394, 0
  %v574 = vsel %vm75, %v474, 0
  %v577 = vsel %vm75, %v479, 0
  %579 = vmatprep.subr.mxu0 0.0
  %580 = vmatpush1.xpose.msra.mxu0 0.0
  %581 = vmatprep.subr.mxu0 0.0
  %582 = vmatpush1.xpose.msra.mxu0 0.0
  %583 = vmatprep.subr.mxu0 0.0
  %584 = vmatpush1.xpose.msra.mxu0 0.0
  %585 = vmatprep.subr.mxu0 0.0
  %586 = vmatpush1.xpose.msra.mxu0 0.0
  %587 = vmatprep.subr.mxu0 0.0
  %588 = vmatpush1.xpose.msra.mxu0 0.0
  %589 = vmatprep.subr.mxu0 0.0
  %590 = vmatpush1.xpose.msra.mxu0 0.0
  %591 = vmatprep.subr.mxu0 0.0
  %592 = vmatpush1.xpose.msra.mxu0 0.0
  %593 = vmatprep.subr.mxu0 0.0
  %594 = vmatpush1.xpose.msra.mxu0 0.0
  %595 = vmatprep.subr.mxu0 0.0
  %596 = vmatpush1.xpose.msra.mxu0 0.0
  %597 = vmatprep.subr.mxu0 0.0
  %598 = vmatpush1.xpose.msra.mxu0 0.0
  %599 = vmatprep.subr.mxu0 0.0
  %600 = vmatpush1.xpose.msra.mxu0 0.0
  %601 = vmatprep.subr.mxu0 0.0
  %602 = vmatpush1.xpose.msra.mxu0 0.0
  %603 = vmatprep.subr.mxu0 0.0
  %604 = vmatpush1.xpose.msra.mxu0 0.0
  %605 = vmatprep.subr.mxu0 0.0
  %606 = vmatpush1.xpose.msra.mxu0 0.0
  %607 = vmatprep.subr.mxu0 0.0
  %608 = vmatpush1.xpose.msra.mxu0 %v577
  %609 = vmatprep.subr.mxu0 0.0
  %610 = vmatpush1.xpose.msra.mxu0 %v574
  %611 = vmatprep.subr.mxu0 0.0
  %612 = vmatpush2.xpose.msra.mxu0 0.0
  %613 = vmatprep.subr.mxu0 0.0
  %614 = vmatpush2.xpose.msra.mxu0 0.0
  %615 = vmatprep.subr.mxu0 0.0
  %616 = vmatpush2.xpose.msra.mxu0 0.0
  %617 = vmatprep.subr.mxu0 0.0
  %618 = vmatpush2.xpose.msra.mxu0 0.0
  %619 = vmatprep.subr.mxu0 0.0
  %620 = vmatpush2.xpose.msra.mxu0 0.0
  %621 = vmatprep.subr.mxu0 0.0
  %622 = vmatpush2.xpose.msra.mxu0 0.0
  %623 = vmatprep.subr.mxu0 0.0
  %624 = vmatpush2.xpose.msra.mxu0 0.0
  %625 = vmatprep.subr.mxu0 0.0
  %626 = vmatpush2.xpose.msra.mxu0 0.0
  %627 = vmatprep.subr.mxu0 0.0
  %628 = vmatpush2.xpose.msra.mxu0 0.0
  %629 = vmatprep.subr.mxu0 0.0
  %630 = vmatpush2.xpose.msra.mxu0 0.0
  %631 = vmatprep.subr.mxu0 0.0
  %632 = vmatpush2.xpose.msra.mxu0 0.0
  %633 = vmatprep.subr.mxu0 0.0
  %634 = vmatpush2.xpose.msra.mxu0 0.0
  %635 = vmatprep.subr.mxu0 0.0
  %636 = vmatpush2.xpose.msra.mxu0 0.0
  %637 = vmatprep.subr.mxu0 0.0
  %638 = vmatpush2.xpose.msra.mxu0 0.0
  %639 = vmatprep.subr.mxu0 0.0
  %640 = vmatpush2.xpose.msra.mxu0 0.0
  %641 = vmatprep.subr.mxu0 0.0
  %642 = vmatpush2.xpose.msra.mxu0 0.0
  %643 = vmatprep.mubr.f32.mxu0 0.0
  %644 = vmatmul.mubr.f32.gmra.mxu0 %v568
  %v645 = vpop.f32.mrf.mxu0
  %v646 = vadd.f32 0.0, %v645
  %v647 = vpop.f32.mrf.mxu0
  %648 = vmatprep.mubr.f32.mxu0 0.0
  %649 = vmatmul.mubr.f32.gmra.mxu0 %v571
  %v650 = vpop.f32.mrf.mxu0
  %v651 = vadd.f32 0.0, %v650
  %v652 = vpop.f32.mrf.mxu0
  %653 = vdwg.mxu0
  %v654 = vmul.f32 %v646, 0.25
  %v655 = vmul.f32 %v651, 0.25
  %v656 = vadd.f32 %v654, %v305
  %v657 = vadd.f32 %v655, %v306
  %v658 = vsel %vm75, %v656, -inf
  %659 = vmax.xlane.f32.xlu0 %v658
  %v660 = vpop.xlane.xlu0 %659
  %v661 = vsel %vm75, %v657, -inf
  %662 = vmax.xlane.f32.xlu0 %v661
  %v663 = vpop.xlane.xlu0 %662
  %v664 = vsub.f32 %v656, %v660
  %v665 = vsub.f32 %v657, %v663
  %v666 = vmul.f32 %v664, 1.442695
  %v667 = vpow.pop %v666
  %v668 = vmul.f32 %v665, 1.442695
  %v669 = vpow.pop %v668
  %v670 = vsel %vm75, %v667, 0.0
  %671 = vadd.xlane.f32.xlu0 %v670
  %v672 = vpop.xlane.xlu0 %671
  %v673 = vsel %vm75, %v669, 0.0
  %674 = vadd.xlane.f32.xlu0 %v673
  %v675 = vpop.xlane.xlu0 %674
  %v676 = vrcp.pop %v672
  %v677 = vmul.f32 %v667, %v676
  %v678 = vrcp.pop %v675
  %v679 = vmul.f32 %v669, %v678
  %v681 = vsel %vm75, %v677, 0
  %v684 = vsel %vm75, %v679, 0
  %686 = vmatprep.subr.mxu0 0.0
  %687 = vmatpush1.msra.mxu0 0.0
  %688 = vmatprep.subr.mxu0 0.0
  %689 = vmatpush1.msra.mxu0 0.0
  %690 = vmatprep.subr.mxu0 0.0
  %691 = vmatpush1.msra.mxu0 0.0
  %692 = vmatprep.subr.mxu0 0.0
  %693 = vmatpush1.msra.mxu0 0.0
  %694 = vmatprep.subr.mxu0 0.0
  %695 = vmatpush1.msra.mxu0 0.0
  %696 = vmatprep.subr.mxu0 0.0
  %697 = vmatpush1.msra.mxu0 0.0
  %698 = vmatprep.subr.mxu0 0.0
  %699 = vmatpush1.msra.mxu0 0.0
  %700 = vmatprep.subr.mxu0 0.0
  %701 = vmatpush1.msra.mxu0 0.0
  %702 = vmatprep.subr.mxu0 0.0
  %703 = vmatpush1.msra.mxu0 0.0
  %704 = vmatprep.subr.mxu0 0.0
  %705 = vmatpush1.msra.mxu0 0.0
  %706 = vmatprep.subr.mxu0 0.0
  %707 = vmatpush1.msra.mxu0 0.0
  %708 = vmatprep.subr.mxu0 0.0
  %709 = vmatpush1.msra.mxu0 0.0
  %710 = vmatprep.subr.mxu0 0.0
  %711 = vmatpush1.msra.mxu0 0.0
  %712 = vmatprep.subr.mxu0 0.0
  %713 = vmatpush1.msra.mxu0 0.0
  %714 = vmatprep.subr.mxu0 0.0
  %715 = vmatpush1.msra.mxu0 %v564
  %716 = vmatprep.subr.mxu0 0.0
  %717 = vmatpush1.msra.mxu0 %v559
  %718 = vmatprep.subr.mxu0 0.0
  %719 = vmatpush2.msra.mxu0 0.0
  %720 = vmatprep.subr.mxu0 0.0
  %721 = vmatpush2.msra.mxu0 0.0
  %722 = vmatprep.subr.mxu0 0.0
  %723 = vmatpush2.msra.mxu0 0.0
  %724 = vmatprep.subr.mxu0 0.0
  %725 = vmatpush2.msra.mxu0 0.0
  %726 = vmatprep.subr.mxu0 0.0
  %727 = vmatpush2.msra.mxu0 0.0
  %728 = vmatprep.subr.mxu0 0.0
  %729 = vmatpush2.msra.mxu0 0.0
  %730 = vmatprep.subr.mxu0 0.0
  %731 = vmatpush2.msra.mxu0 0.0
  %732 = vmatprep.subr.mxu0 0.0
  %733 = vmatpush2.msra.mxu0 0.0
  %734 = vmatprep.subr.mxu0 0.0
  %735 = vmatpush2.msra.mxu0 0.0
  %736 = vmatprep.subr.mxu0 0.0
  %737 = vmatpush2.msra.mxu0 0.0
  %738 = vmatprep.subr.mxu0 0.0
  %739 = vmatpush2.msra.mxu0 0.0
  %740 = vmatprep.subr.mxu0 0.0
  %741 = vmatpush2.msra.mxu0 0.0
  %742 = vmatprep.subr.mxu0 0.0
  %743 = vmatpush2.msra.mxu0 0.0
  %744 = vmatprep.subr.mxu0 0.0
  %745 = vmatpush2.msra.mxu0 0.0
  %746 = vmatprep.subr.mxu0 0.0
  %747 = vmatpush2.msra.mxu0 0.0
  %748 = vmatprep.subr.mxu0 0.0
  %749 = vmatpush2.msra.mxu0 0.0
  %750 = vmatprep.mubr.f32.mxu0 0.0
  %751 = vmatmul.mubr.f32.gmra.mxu0 %v681
  %v752 = vpop.f32.mrf.mxu0
  %v753 = vadd.f32 0.0, %v752
  %v754 = vpop.f32.mrf.mxu0
  %755 = vmatprep.mubr.f32.mxu0 0.0
  %756 = vmatmul.mubr.f32.gmra.mxu0 %v684
  %v757 = vpop.f32.mrf.mxu0
  %v758 = vadd.f32 0.0, %v757
  %v759 = vpop.f32.mrf.mxu0
  %760 = vdwg.mxu0
  %v761 = vld [vmem:[%s5] sm:$0xff]
  %v762 = vld [vmem:[%s5 + $0x8] sm:$0xff]
  %s763 = scalar_lea.vmem %s4, 96
  %v764 = vld [vmem:[%s763] sm:$0xff]
  %v765 = vld [vmem:[%s763 + $0x8] sm:$0xff]
  %v766 = vld [vmem:[%s763 + $0x10] sm:$0xff]
  %v767 = vld [vmem:[%s763 + $0x18] sm:$0xff]
  %v768 = vld [vmem:[%s3 + $0x22] sm:$0x1]
  %v769 = vlaneseq
  %v770 = vshrl.u32 %v769, 7
  %v771 = vsub.s32 0, %v770
  %v772 = vrot.slane %v768, %v771
  %773 = vmatprep.subr.mxu0 0.0
  %774 = vmatpush1.msra.mxu0 0.0
  %775 = vmatprep.subr.mxu0 0.0
  %776 = vmatpush1.msra.mxu0 0.0
  %777 = vmatprep.subr.mxu0 0.0
  %778 = vmatpush1.msra.mxu0 0.0
  %779 = vmatprep.subr.mxu0 0.0
  %780 = vmatpush1.msra.mxu0 0.0
  %781 = vmatprep.subr.mxu0 0.0
  %782 = vmatpush1.msra.mxu0 0.0
  %783 = vmatprep.subr.mxu0 0.0
  %784 = vmatpush1.msra.mxu0 0.0
  %785 = vmatprep.subr.mxu0 0.0
  %786 = vmatpush1.msra.mxu0 0.0
  %787 = vmatprep.subr.mxu0 0.0
  %788 = vmatpush1.msra.mxu0 0.0
  %789 = vmatprep.subr.mxu0 0.0
  %790 = vmatpush1.msra.mxu0 0.0
  %791 = vmatprep.subr.mxu0 0.0
  %792 = vmatpush1.msra.mxu0 0.0
  %793 = vmatprep.subr.mxu0 0.0
  %794 = vmatpush1.msra.mxu0 0.0
  %795 = vmatprep.subr.mxu0 0.0
  %796 = vmatpush1.msra.mxu0 0.0
  %797 = vmatprep.subr.mxu0 0.0
  %798 = vmatpush1.msra.mxu0 %v767
  %799 = vmatprep.subr.mxu0 0.0
  %800 = vmatpush1.msra.mxu0 %v766
  %801 = vmatprep.subr.mxu0 0.0
  %802 = vmatpush1.msra.mxu0 %v765
  %803 = vmatprep.subr.mxu0 0.0
  %804 = vmatpush1.msra.mxu0 %v764
  %805 = vmatprep.subr.mxu0 0.0
  %806 = vmatpush2.msra.mxu0 0.0
  %807 = vmatprep.subr.mxu0 0.0
  %808 = vmatpush2.msra.mxu0 0.0
  %809 = vmatprep.subr.mxu0 0.0
  %810 = vmatpush2.msra.mxu0 0.0
  %811 = vmatprep.subr.mxu0 0.0
  %812 = vmatpush2.msra.mxu0 0.0
  %813 = vmatprep.subr.mxu0 0.0
  %814 = vmatpush2.msra.mxu0 0.0
  %815 = vmatprep.subr.mxu0 0.0
  %816 = vmatpush2.msra.mxu0 0.0
  %817 = vmatprep.subr.mxu0 0.0
  %818 = vmatpush2.msra.mxu0 0.0
  %819 = vmatprep.subr.mxu0 0.0
  %820 = vmatpush2.msra.mxu0 0.0
  %821 = vmatprep.subr.mxu0 0.0
  %822 = vmatpush2.msra.mxu0 0.0
  %823 = vmatprep.subr.mxu0 0.0
  %824 = vmatpush2.msra.mxu0 0.0
  %825 = vmatprep.subr.mxu0 0.0
  %826 = vmatpush2.msra.mxu0 0.0
  %827 = vmatprep.subr.mxu0 0.0
  %828 = vmatpush2.msra.mxu0 0.0
  %829 = vmatprep.subr.mxu0 0.0
  %830 = vmatpush2.msra.mxu0 0.0
  %831 = vmatprep.subr.mxu0 0.0
  %832 = vmatpush2.msra.mxu0 0.0
  %833 = vmatprep.subr.mxu0 0.0
  %834 = vmatpush2.msra.mxu0 0.0
  %835 = vmatprep.subr.mxu0 0.0
  %836 = vmatpush2.msra.mxu0 0.0
  %837 = vmatprep.mubr.f32.mxu0 0.0
  %838 = vmatmul.mubr.f32.gmra.mxu0 %v317
  %v839 = vpop.f32.mrf.mxu0
  %v840 = vadd.f32 %v772, %v839
  %v841 = vpop.f32.mrf.mxu0
  %842 = vmatprep.mubr.f32.mxu0 0.0
  %843 = vmatmul.mubr.f32.gmra.mxu0 %v320
  %v844 = vpop.f32.mrf.mxu0
  %v845 = vadd.f32 %v772, %v844
  %v846 = vpop.f32.mrf.mxu0
  %847 = vdwg.mxu0
  %s848 = scalar_lea.vmem %s4, 128
  %v849 = vld [vmem:[%s848] sm:$0xff]
  %v850 = vld [vmem:[%s848 + $0x8] sm:$0xff]
  %v851 = vld [vmem:[%s848 + $0x10] sm:$0xff]
  %v852 = vld [vmem:[%s848 + $0x18] sm:$0xff]
  %v853 = vld [vmem:[%s3 + $0x23] sm:$0x1]
  %v854 = vlaneseq
  %v855 = vshrl.u32 %v854, 7
  %v856 = vsub.s32 0, %v855
  %v857 = vrot.slane %v853, %v856
  %858 = vmatprep.subr.mxu0 0.0
  %859 = vmatpush1.msra.mxu0 0.0
  %860 = vmatprep.subr.mxu0 0.0
  %861 = vmatpush1.msra.mxu0 0.0
  %862 = vmatprep.subr.mxu0 0.0
  %863 = vmatpush1.msra.mxu0 0.0
  %864 = vmatprep.subr.mxu0 0.0
  %865 = vmatpush1.msra.mxu0 0.0
  %866 = vmatprep.subr.mxu0 0.0
  %867 = vmatpush1.msra.mxu0 0.0
  %868 = vmatprep.subr.mxu0 0.0
  %869 = vmatpush1.msra.mxu0 0.0
  %870 = vmatprep.subr.mxu0 0.0
  %871 = vmatpush1.msra.mxu0 0.0
  %872 = vmatprep.subr.mxu0 0.0
  %873 = vmatpush1.msra.mxu0 0.0
  %874 = vmatprep.subr.mxu0 0.0
  %875 = vmatpush1.msra.mxu0 0.0
  %876 = vmatprep.subr.mxu0 0.0
  %877 = vmatpush1.msra.mxu0 0.0
  %878 = vmatprep.subr.mxu0 0.0
  %879 = vmatpush1.msra.mxu0 0.0
  %880 = vmatprep.subr.mxu0 0.0
  %881 = vmatpush1.msra.mxu0 0.0
  %882 = vmatprep.subr.mxu0 0.0
  %883 = vmatpush1.msra.mxu0 %v852
  %884 = vmatprep.subr.mxu0 0.0
  %885 = vmatpush1.msra.mxu0 %v851
  %886 = vmatprep.subr.mxu0 0.0
  %887 = vmatpush1.msra.mxu0 %v850
  %888 = vmatprep.subr.mxu0 0.0
  %889 = vmatpush1.msra.mxu0 %v849
  %890 = vmatprep.subr.mxu0 0.0
  %891 = vmatpush2.msra.mxu0 0.0
  %892 = vmatprep.subr.mxu0 0.0
  %893 = vmatpush2.msra.mxu0 0.0
  %894 = vmatprep.subr.mxu0 0.0
  %895 = vmatpush2.msra.mxu0 0.0
  %896 = vmatprep.subr.mxu0 0.0
  %897 = vmatpush2.msra.mxu0 0.0
  %898 = vmatprep.subr.mxu0 0.0
  %899 = vmatpush2.msra.mxu0 0.0
  %900 = vmatprep.subr.mxu0 0.0
  %901 = vmatpush2.msra.mxu0 0.0
  %902 = vmatprep.subr.mxu0 0.0
  %903 = vmatpush2.msra.mxu0 0.0
  %904 = vmatprep.subr.mxu0 0.0
  %905 = vmatpush2.msra.mxu0 0.0
  %906 = vmatprep.subr.mxu0 0.0
  %907 = vmatpush2.msra.mxu0 0.0
  %908 = vmatprep.subr.mxu0 0.0
  %909 = vmatpush2.msra.mxu0 0.0
  %910 = vmatprep.subr.mxu0 0.0
  %911 = vmatpush2.msra.mxu0 0.0
  %912 = vmatprep.subr.mxu0 0.0
  %913 = vmatpush2.msra.mxu0 0.0
  %914 = vmatprep.subr.mxu0 0.0
  %915 = vmatpush2.msra.mxu0 0.0
  %916 = vmatprep.subr.mxu0 0.0
  %917 = vmatpush2.msra.mxu0 0.0
  %918 = vmatprep.subr.mxu0 0.0
  %919 = vmatpush2.msra.mxu0 0.0
  %920 = vmatprep.subr.mxu0 0.0
  %921 = vmatpush2.msra.mxu0 0.0
  %922 = vmatprep.mubr.f32.mxu0 0.0
  %923 = vmatmul.mubr.f32.gmra.mxu0 %v317
  %v924 = vpop.f32.mrf.mxu0
  %v925 = vadd.f32 %v857, %v924
  %v926 = vpop.f32.mrf.mxu0
  %927 = vmatprep.mubr.f32.mxu0 0.0
  %928 = vmatmul.mubr.f32.gmra.mxu0 %v320
  %v929 = vpop.f32.mrf.mxu0
  %v930 = vadd.f32 %v857, %v929
  %v931 = vpop.f32.mrf.mxu0
  %932 = vdwg.mxu0
  %s933 = scalar_lea.vmem %s4, 160
  %v934 = vld [vmem:[%s933] sm:$0xff]
  %v935 = vld [vmem:[%s933 + $0x8] sm:$0xff]
  %v936 = vld [vmem:[%s933 + $0x10] sm:$0xff]
  %v937 = vld [vmem:[%s933 + $0x18] sm:$0xff]
  %v938 = vld [vmem:[%s3 + $0x24] sm:$0x1]
  %v939 = vlaneseq
  %v940 = vshrl.u32 %v939, 7
  %v941 = vsub.s32 0, %v940
  %v942 = vrot.slane %v938, %v941
  %943 = vmatprep.subr.mxu0 0.0
  %944 = vmatpush1.msra.mxu0 0.0
  %945 = vmatprep.subr.mxu0 0.0
  %946 = vmatpush1.msra.mxu0 0.0
  %947 = vmatprep.subr.mxu0 0.0
  %948 = vmatpush1.msra.mxu0 0.0
  %949 = vmatprep.subr.mxu0 0.0
  %950 = vmatpush1.msra.mxu0 0.0
  %951 = vmatprep.subr.mxu0 0.0
  %952 = vmatpush1.msra.mxu0 0.0
  %953 = vmatprep.subr.mxu0 0.0
  %954 = vmatpush1.msra.mxu0 0.0
  %955 = vmatprep.subr.mxu0 0.0
  %956 = vmatpush1.msra.mxu0 0.0
  %957 = vmatprep.subr.mxu0 0.0
  %958 = vmatpush1.msra.mxu0 0.0
  %959 = vmatprep.subr.mxu0 0.0
  %960 = vmatpush1.msra.mxu0 0.0
  %961 = vmatprep.subr.mxu0 0.0
  %962 = vmatpush1.msra.mxu0 0.0
  %963 = vmatprep.subr.mxu0 0.0
  %964 = vmatpush1.msra.mxu0 0.0
  %965 = vmatprep.subr.mxu0 0.0
  %966 = vmatpush1.msra.mxu0 0.0
  %967 = vmatprep.subr.mxu0 0.0
  %968 = vmatpush1.msra.mxu0 %v937
  %969 = vmatprep.subr.mxu0 0.0
  %970 = vmatpush1.msra.mxu0 %v936
  %971 = vmatprep.subr.mxu0 0.0
  %972 = vmatpush1.msra.mxu0 %v935
  %973 = vmatprep.subr.mxu0 0.0
  %974 = vmatpush1.msra.mxu0 %v934
  %975 = vmatprep.subr.mxu0 0.0
  %976 = vmatpush2.msra.mxu0 0.0
  %977 = vmatprep.subr.mxu0 0.0
  %978 = vmatpush2.msra.mxu0 0.0
  %979 = vmatprep.subr.mxu0 0.0
  %980 = vmatpush2.msra.mxu0 0.0
  %981 = vmatprep.subr.mxu0 0.0
  %982 = vmatpush2.msra.mxu0 0.0
  %983 = vmatprep.subr.mxu0 0.0
  %984 = vmatpush2.msra.mxu0 0.0
  %985 = vmatprep.subr.mxu0 0.0
  %986 = vmatpush2.msra.mxu0 0.0
  %987 = vmatprep.subr.mxu0 0.0
  %988 = vmatpush2.msra.mxu0 0.0
  %989 = vmatprep.subr.mxu0 0.0
  %990 = vmatpush2.msra.mxu0 0.0
  %991 = vmatprep.subr.mxu0 0.0
  %992 = vmatpush2.msra.mxu0 0.0
  %993 = vmatprep.subr.mxu0 0.0
  %994 = vmatpush2.msra.mxu0 0.0
  %995 = vmatprep.subr.mxu0 0.0
  %996 = vmatpush2.msra.mxu0 0.0
  %997 = vmatprep.subr.mxu0 0.0
  %998 = vmatpush2.msra.mxu0 0.0
  %999 = vmatprep.subr.mxu0 0.0
  %1000 = vmatpush2.msra.mxu0 0.0
  %1001 = vmatprep.subr.mxu0 0.0
  %1002 = vmatpush2.msra.mxu0 0.0
  %1003 = vmatprep.subr.mxu0 0.0
  %1004 = vmatpush2.msra.mxu0 0.0
  %1005 = vmatprep.subr.mxu0 0.0
  %1006 = vmatpush2.msra.mxu0 0.0
  %1007 = vmatprep.mubr.f32.mxu0 0.0
  %1008 = vmatmul.mubr.f32.gmra.mxu0 %v317
  %v1009 = vpop.f32.mrf.mxu0
  %v1010 = vadd.f32 %v942, %v1009
  %v1011 = vpop.f32.mrf.mxu0
  %1012 = vmatprep.mubr.f32.mxu0 0.0
  %1013 = vmatmul.mubr.f32.gmra.mxu0 %v320
  %v1014 = vpop.f32.mrf.mxu0
  %v1015 = vadd.f32 %v942, %v1014
  %v1016 = vpop.f32.mrf.mxu0
  %1017 = vdwg.mxu0
  %v1019 = vsel %vm75, %v840, 0
  %v1022 = vsel %vm75, %v845, 0
  %v1025 = vsel %vm75, %v925, 0
  %v1028 = vsel %vm75, %v930, 0
  %1030 = vmatprep.subr.mxu0 0.0
  %1031 = vmatpush1.xpose.msra.mxu0 0.0
  %1032 = vmatprep.subr.mxu0 0.0
  %1033 = vmatpush1.xpose.msra.mxu0 0.0
  %1034 = vmatprep.subr.mxu0 0.0
  %1035 = vmatpush1.xpose.msra.mxu0 0.0
  %1036 = vmatprep.subr.mxu0 0.0
  %1037 = vmatpush1.xpose.msra.mxu0 0.0
  %1038 = vmatprep.subr.mxu0 0.0
  %1039 = vmatpush1.xpose.msra.mxu0 0.0
  %1040 = vmatprep.subr.mxu0 0.0
  %1041 = vmatpush1.xpose.msra.mxu0 0.0
  %1042 = vmatprep.subr.mxu0 0.0
  %1043 = vmatpush1.xpose.msra.mxu0 0.0
  %1044 = vmatprep.subr.mxu0 0.0
  %1045 = vmatpush1.xpose.msra.mxu0 0.0
  %1046 = vmatprep.subr.mxu0 0.0
  %1047 = vmatpush1.xpose.msra.mxu0 0.0
  %1048 = vmatprep.subr.mxu0 0.0
  %1049 = vmatpush1.xpose.msra.mxu0 0.0
  %1050 = vmatprep.subr.mxu0 0.0
  %1051 = vmatpush1.xpose.msra.mxu0 0.0
  %1052 = vmatprep.subr.mxu0 0.0
  %1053 = vmatpush1.xpose.msra.mxu0 0.0
  %1054 = vmatprep.subr.mxu0 0.0
  %1055 = vmatpush1.xpose.msra.mxu0 0.0
  %1056 = vmatprep.subr.mxu0 0.0
  %1057 = vmatpush1.xpose.msra.mxu0 0.0
  %1058 = vmatprep.subr.mxu0 0.0
  %1059 = vmatpush1.xpose.msra.mxu0 %v1028
  %1060 = vmatprep.subr.mxu0 0.0
  %1061 = vmatpush1.xpose.msra.mxu0 %v1025
  %1062 = vmatprep.subr.mxu0 0.0
  %1063 = vmatpush2.xpose.msra.mxu0 0.0
  %1064 = vmatprep.subr.mxu0 0.0
  %1065 = vmatpush2.xpose.msra.mxu0 0.0
  %1066 = vmatprep.subr.mxu0 0.0
  %1067 = vmatpush2.xpose.msra.mxu0 0.0
  %1068 = vmatprep.subr.mxu0 0.0
  %1069 = vmatpush2.xpose.msra.mxu0 0.0
  %1070 = vmatprep.subr.mxu0 0.0
  %1071 = vmatpush2.xpose.msra.mxu0 0.0
  %1072 = vmatprep.subr.mxu0 0.0
  %1073 = vmatpush2.xpose.msra.mxu0 0.0
  %1074 = vmatprep.subr.mxu0 0.0
  %1075 = vmatpush2.xpose.msra.mxu0 0.0
  %1076 = vmatprep.subr.mxu0 0.0
  %1077 = vmatpush2.xpose.msra.mxu0 0.0
  %1078 = vmatprep.subr.mxu0 0.0
  %1079 = vmatpush2.xpose.msra.mxu0 0.0
  %1080 = vmatprep.subr.mxu0 0.0
  %1081 = vmatpush2.xpose.msra.mxu0 0.0
  %1082 = vmatprep.subr.mxu0 0.0
  %1083 = vmatpush2.xpose.msra.mxu0 0.0
  %1084 = vmatprep.subr.mxu0 0.0
  %1085 = vmatpush2.xpose.msra.mxu0 0.0
  %1086 = vmatprep.subr.mxu0 0.0
  %1087 = vmatpush2.xpose.msra.mxu0 0.0
  %1088 = vmatprep.subr.mxu0 0.0
  %1089 = vmatpush2.xpose.msra.mxu0 0.0
  %1090 = vmatprep.subr.mxu0 0.0
  %1091 = vmatpush2.xpose.msra.mxu0 0.0
  %1092 = vmatprep.subr.mxu0 0.0
  %1093 = vmatpush2.xpose.msra.mxu0 0.0
  %1094 = vmatprep.mubr.f32.mxu0 0.0
  %1095 = vmatmul.mubr.f32.gmra.mxu0 %v1019
  %v1096 = vpop.f32.mrf.mxu0
  %v1097 = vadd.f32 0.0, %v1096
  %v1098 = vpop.f32.mrf.mxu0
  %1099 = vmatprep.mubr.f32.mxu0 0.0
  %1100 = vmatmul.mubr.f32.gmra.mxu0 %v1022
  %v1101 = vpop.f32.mrf.mxu0
  %v1102 = vadd.f32 0.0, %v1101
  %v1103 = vpop.f32.mrf.mxu0
  %1104 = vdwg.mxu0
  %v1105 = vmul.f32 %v1097, 0.25
  %v1106 = vmul.f32 %v1102, 0.25
  %v1107 = vadd.f32 %v1105, %v305
  %v1108 = vadd.f32 %v1106, %v306
  %v1109 = vsel %vm75, %v1107, -inf
  %1110 = vmax.xlane.f32.xlu0 %v1109
  %v1111 = vpop.xlane.xlu0 %1110
  %v1112 = vsel %vm75, %v1108, -inf
  %1113 = vmax.xlane.f32.xlu0 %v1112
  %v1114 = vpop.xlane.xlu0 %1113
  %v1115 = vsub.f32 %v1107, %v1111
  %v1116 = vsub.f32 %v1108, %v1114
  %v1117 = vmul.f32 %v1115, 1.442695
  %v1118 = vpow.pop %v1117
  %v1119 = vmul.f32 %v1116, 1.442695
  %v1120 = vpow.pop %v1119
  %v1121 = vsel %vm75, %v1118, 0.0
  %1122 = vadd.xlane.f32.xlu0 %v1121
  %v1123 = vpop.xlane.xlu0 %1122
  %v1124 = vsel %vm75, %v1120, 0.0
  %1125 = vadd.xlane.f32.xlu0 %v1124
  %v1126 = vpop.xlane.xlu0 %1125
  %v1127 = vrcp.pop %v1123
  %v1128 = vmul.f32 %v1118, %v1127
  %v1129 = vrcp.pop %v1126
  %v1130 = vmul.f32 %v1120, %v1129
  %v1132 = vsel %vm75, %v1128, 0
  %v1135 = vsel %vm75, %v1130, 0
  %1137 = vmatprep.subr.mxu0 0.0
  %1138 = vmatpush1.msra.mxu0 0.0
  %1139 = vmatprep.subr.mxu0 0.0
  %1140 = vmatpush1.msra.mxu0 0.0
  %1141 = vmatprep.subr.mxu0 0.0
  %1142 = vmatpush1.msra.mxu0 0.0
  %1143 = vmatprep.subr.mxu0 0.0
  %1144 = vmatpush1.msra.mxu0 0.0
  %1145 = vmatprep.subr.mxu0 0.0
  %1146 = vmatpush1.msra.mxu0 0.0
  %1147 = vmatprep.subr.mxu0 0.0
  %1148 = vmatpush1.msra.mxu0 0.0
  %1149 = vmatprep.subr.mxu0 0.0
  %1150 = vmatpush1.msra.mxu0 0.0
  %1151 = vmatprep.subr.mxu0 0.0
  %1152 = vmatpush1.msra.mxu0 0.0
  %1153 = vmatprep.subr.mxu0 0.0
  %1154 = vmatpush1.msra.mxu0 0.0
  %1155 = vmatprep.subr.mxu0 0.0
  %1156 = vmatpush1.msra.mxu0 0.0
  %1157 = vmatprep.subr.mxu0 0.0
  %1158 = vmatpush1.msra.mxu0 0.0
  %1159 = vmatprep.subr.mxu0 0.0
  %1160 = vmatpush1.msra.mxu0 0.0
  %1161 = vmatprep.subr.mxu0 0.0
  %1162 = vmatpush1.msra.mxu0 0.0
  %1163 = vmatprep.subr.mxu0 0.0
  %1164 = vmatpush1.msra.mxu0 0.0
  %1165 = vmatprep.subr.mxu0 0.0
  %1166 = vmatpush1.msra.mxu0 %v1015
  %1167 = vmatprep.subr.mxu0 0.0
  %1168 = vmatpush1.msra.mxu0 %v1010
  %1169 = vmatprep.subr.mxu0 0.0
  %1170 = vmatpush2.msra.mxu0 0.0
  %1171 = vmatprep.subr.mxu0 0.0
  %1172 = vmatpush2.msra.mxu0 0.0
  %1173 = vmatprep.subr.mxu0 0.0
  %1174 = vmatpush2.msra.mxu0 0.0
  %1175 = vmatprep.subr.mxu0 0.0
  %1176 = vmatpush2.msra.mxu0 0.0
  %1177 = vmatprep.subr.mxu0 0.0
  %1178 = vmatpush2.msra.mxu0 0.0
  %1179 = vmatprep.subr.mxu0 0.0
  %1180 = vmatpush2.msra.mxu0 0.0
  %1181 = vmatprep.subr.mxu0 0.0
  %1182 = vmatpush2.msra.mxu0 0.0
  %1183 = vmatprep.subr.mxu0 0.0
  %1184 = vmatpush2.msra.mxu0 0.0
  %1185 = vmatprep.subr.mxu0 0.0
  %1186 = vmatpush2.msra.mxu0 0.0
  %1187 = vmatprep.subr.mxu0 0.0
  %1188 = vmatpush2.msra.mxu0 0.0
  %1189 = vmatprep.subr.mxu0 0.0
  %1190 = vmatpush2.msra.mxu0 0.0
  %1191 = vmatprep.subr.mxu0 0.0
  %1192 = vmatpush2.msra.mxu0 0.0
  %1193 = vmatprep.subr.mxu0 0.0
  %1194 = vmatpush2.msra.mxu0 0.0
  %1195 = vmatprep.subr.mxu0 0.0
  %1196 = vmatpush2.msra.mxu0 0.0
  %1197 = vmatprep.subr.mxu0 0.0
  %1198 = vmatpush2.msra.mxu0 0.0
  %1199 = vmatprep.subr.mxu0 0.0
  %1200 = vmatpush2.msra.mxu0 0.0
  %1201 = vmatprep.mubr.f32.mxu0 0.0
  %1202 = vmatmul.mubr.f32.gmra.mxu0 %v1132
  %v1203 = vpop.f32.mrf.mxu0
  %v1204 = vadd.f32 0.0, %v1203
  %v1205 = vpop.f32.mrf.mxu0
  %1206 = vmatprep.mubr.f32.mxu0 0.0
  %1207 = vmatmul.mubr.f32.gmra.mxu0 %v1135
  %v1208 = vpop.f32.mrf.mxu0
  %v1209 = vadd.f32 0.0, %v1208
  %v1210 = vpop.f32.mrf.mxu0
  %1211 = vdwg.mxu0
  %s1212 = scalar_lea.vmem %s5, 16
  %v1213 = vld [vmem:[%s1212] sm:$0xff]
  %v1214 = vld [vmem:[%s1212 + $0x8] sm:$0xff]
  %v1216 = vsel %vm75, %v1204, 0
  %v1219 = vsel %vm75, %v1209, 0
  %1221 = vmatprep.subr.mxu0 0.0
  %1222 = vmatpush1.msra.mxu0 0.0
  %1223 = vmatprep.subr.mxu0 0.0
  %1224 = vmatpush1.msra.mxu0 0.0
  %1225 = vmatprep.subr.mxu0 0.0
  %1226 = vmatpush1.msra.mxu0 0.0
  %1227 = vmatprep.subr.mxu0 0.0
  %1228 = vmatpush1.msra.mxu0 0.0
  %1229 = vmatprep.subr.mxu0 0.0
  %1230 = vmatpush1.msra.mxu0 0.0
  %1231 = vmatprep.subr.mxu0 0.0
  %1232 = vmatpush1.msra.mxu0 0.0
  %1233 = vmatprep.subr.mxu0 0.0
  %1234 = vmatpush1.msra.mxu0 0.0
  %1235 = vmatprep.subr.mxu0 0.0
  %1236 = vmatpush1.msra.mxu0 0.0
  %1237 = vmatprep.subr.mxu0 0.0
  %1238 = vmatpush1.msra.mxu0 0.0
  %1239 = vmatprep.subr.mxu0 0.0
  %1240 = vmatpush1.msra.mxu0 0.0
  %1241 = vmatprep.subr.mxu0 0.0
  %1242 = vmatpush1.msra.mxu0 0.0
  %1243 = vmatprep.subr.mxu0 0.0
  %1244 = vmatpush1.msra.mxu0 0.0
  %1245 = vmatprep.subr.mxu0 0.0
  %1246 = vmatpush1.msra.mxu0 0.0
  %1247 = vmatprep.subr.mxu0 0.0
  %1248 = vmatpush1.msra.mxu0 0.0
  %1249 = vmatprep.subr.mxu0 0.0
  %1250 = vmatpush1.msra.mxu0 %v1214
  %1251 = vmatprep.subr.mxu0 0.0
  %1252 = vmatpush1.msra.mxu0 %v1213
  %1253 = vmatprep.subr.mxu0 0.0
  %1254 = vmatpush2.msra.mxu0 0.0
  %1255 = vmatprep.subr.mxu0 0.0
  %1256 = vmatpush2.msra.mxu0 0.0
  %1257 = vmatprep.subr.mxu0 0.0
  %1258 = vmatpush2.msra.mxu0 0.0
  %1259 = vmatprep.subr.mxu0 0.0
  %1260 = vmatpush2.msra.mxu0 0.0
  %1261 = vmatprep.subr.mxu0 0.0
  %1262 = vmatpush2.msra.mxu0 0.0
  %1263 = vmatprep.subr.mxu0 0.0
  %1264 = vmatpush2.msra.mxu0 0.0
  %1265 = vmatprep.subr.mxu0 0.0
  %1266 = vmatpush2.msra.mxu0 0.0
  %1267 = vmatprep.subr.mxu0 0.0
  %1268 = vmatpush2.msra.mxu0 0.0
  %1269 = vmatprep.subr.mxu0 0.0
  %1270 = vmatpush2.msra.mxu0 0.0
  %1271 = vmatprep.subr.mxu0 0.0
  %1272 = vmatpush2.msra.mxu0 0.0
  %1273 = vmatprep.subr.mxu0 0.0
  %1274 = vmatpush2.msra.mxu0 0.0
  %1275 = vmatprep.subr.mxu0 0.0
  %1276 = vmatpush2.msra.mxu0 0.0
  %1277 = vmatprep.subr.mxu0 0.0
  %1278 = vmatpush2.msra.mxu0 0.0
  %1279 = vmatprep.subr.mxu0 0.0
  %1280 = vmatpush2.msra.mxu0 0.0
  %1281 = vmatprep.subr.mxu0 0.0
  %1282 = vmatpush2.msra.mxu0 0.0
  %1283 = vmatprep.subr.mxu0 0.0
  %1284 = vmatpush2.msra.mxu0 0.0
  %1285 = vmatprep.mubr.f32.mxu0 0.0
  %1286 = vmatmul.mubr.f32.gmra.mxu0 %v1216
  %v1287 = vpop.f32.mrf.mxu0
  %v1288 = vadd.f32 0.0, %v1287
  %v1289 = vpop.f32.mrf.mxu0
  %1290 = vmatprep.mubr.f32.mxu0 0.0
  %1291 = vmatmul.mubr.f32.gmra.mxu0 %v1219
  %v1292 = vpop.f32.mrf.mxu0
  %v1293 = vadd.f32 0.0, %v1292
  %v1294 = vpop.f32.mrf.mxu0
  %1295 = vdwg.mxu0
  %v1297 = vsel %vm75, %v753, 0
  %v1300 = vsel %vm75, %v758, 0
  %1302 = vmatprep.subr.mxu0 0.0
  %1303 = vmatpush1.msra.mxu0 0.0
  %1304 = vmatprep.subr.mxu0 0.0
  %1305 = vmatpush1.msra.mxu0 0.0
  %1306 = vmatprep.subr.mxu0 0.0
  %1307 = vmatpush1.msra.mxu0 0.0
  %1308 = vmatprep.subr.mxu0 0.0
  %1309 = vmatpush1.msra.mxu0 0.0
  %1310 = vmatprep.subr.mxu0 0.0
  %1311 = vmatpush1.msra.mxu0 0.0
  %1312 = vmatprep.subr.mxu0 0.0
  %1313 = vmatpush1.msra.mxu0 0.0
  %1314 = vmatprep.subr.mxu0 0.0
  %1315 = vmatpush1.msra.mxu0 0.0
  %1316 = vmatprep.subr.mxu0 0.0
  %1317 = vmatpush1.msra.mxu0 0.0
  %1318 = vmatprep.subr.mxu0 0.0
  %1319 = vmatpush1.msra.mxu0 0.0
  %1320 = vmatprep.subr.mxu0 0.0
  %1321 = vmatpush1.msra.mxu0 0.0
  %1322 = vmatprep.subr.mxu0 0.0
  %1323 = vmatpush1.msra.mxu0 0.0
  %1324 = vmatprep.subr.mxu0 0.0
  %1325 = vmatpush1.msra.mxu0 0.0
  %1326 = vmatprep.subr.mxu0 0.0
  %1327 = vmatpush1.msra.mxu0 0.0
  %1328 = vmatprep.subr.mxu0 0.0
  %1329 = vmatpush1.msra.mxu0 0.0
  %1330 = vmatprep.subr.mxu0 0.0
  %1331 = vmatpush1.msra.mxu0 %v762
  %1332 = vmatprep.subr.mxu0 0.0
  %1333 = vmatpush1.msra.mxu0 %v761
  %1334 = vmatprep.subr.mxu0 0.0
  %1335 = vmatpush2.msra.mxu0 0.0
  %1336 = vmatprep.subr.mxu0 0.0
  %1337 = vmatpush2.msra.mxu0 0.0
  %1338 = vmatprep.subr.mxu0 0.0
  %1339 = vmatpush2.msra.mxu0 0.0
  %1340 = vmatprep.subr.mxu0 0.0
  %1341 = vmatpush2.msra.mxu0 0.0
  %1342 = vmatprep.subr.mxu0 0.0
  %1343 = vmatpush2.msra.mxu0 0.0
  %1344 = vmatprep.subr.mxu0 0.0
  %1345 = vmatpush2.msra.mxu0 0.0
  %1346 = vmatprep.subr.mxu0 0.0
  %1347 = vmatpush2.msra.mxu0 0.0
  %1348 = vmatprep.subr.mxu0 0.0
  %1349 = vmatpush2.msra.mxu0 0.0
  %1350 = vmatprep.subr.mxu0 0.0
  %1351 = vmatpush2.msra.mxu0 0.0
  %1352 = vmatprep.subr.mxu0 0.0
  %1353 = vmatpush2.msra.mxu0 0.0
  %1354 = vmatprep.subr.mxu0 0.0
  %1355 = vmatpush2.msra.mxu0 0.0
  %1356 = vmatprep.subr.mxu0 0.0
  %1357 = vmatpush2.msra.mxu0 0.0
  %1358 = vmatprep.subr.mxu0 0.0
  %1359 = vmatpush2.msra.mxu0 0.0
  %1360 = vmatprep.subr.mxu0 0.0
  %1361 = vmatpush2.msra.mxu0 0.0
  %1362 = vmatprep.subr.mxu0 0.0
  %1363 = vmatpush2.msra.mxu0 0.0
  %1364 = vmatprep.subr.mxu0 0.0
  %1365 = vmatpush2.msra.mxu0 0.0
  %1366 = vmatprep.mubr.f32.mxu0 0.0
  %1367 = vmatmul.mubr.f32.gmra.mxu0 %v1297
  %v1368 = vpop.f32.mrf.mxu0
  %v1369 = vadd.f32 %v1288, %v1368
  %v1370 = vpop.f32.mrf.mxu0
  %1371 = vmatprep.mubr.f32.mxu0 0.0
  %1372 = vmatmul.mubr.f32.gmra.mxu0 %v1300
  %v1373 = vpop.f32.mrf.mxu0
  %v1374 = vadd.f32 %v1293, %v1373
  %v1375 = vpop.f32.mrf.mxu0
  %1376 = vdwg.mxu0
  %v1377 = vld [vmem:[%s3 + $0x18] sm:$0x1]
  %v1378 = vlaneseq
  %v1379 = vshrl.u32 %v1378, 7
  %v1380 = vsub.s32 0, %v1379
  %v1381 = vrot.slane %v1377, %v1380
  %v1382 = vadd.f32 %v1369, %v1381
  %v1383 = vadd.f32 %v1374, %v1381
  %v1384 = vadd.f32 %v1382, %v290
  %v1385 = vadd.f32 %v1383, %v291
  %v1386 = vld [vmem:[%s3 + $0x1b] sm:$0x1]
  %v1387 = vld [vmem:[%s3 + $0x1c] sm:$0x1]
  %v1388 = vsel %vm252, %v1384, 0.0
  %1389 = vadd.xlane.f32.xlu0 %v1388
  %v1390 = vpop.xlane.xlu0 %1389
  %v1391 = vsel %vm252, %v1385, 0.0
  %1392 = vadd.xlane.f32.xlu0 %v1391
  %v1393 = vpop.xlane.xlu0 %1392
  %v1394 = vmul.f32 %v1390, %v259
  %v1395 = vmul.f32 %v1393, %v259
  %v1396 = vsub.f32 %v1384, %v1394
  %v1397 = vsub.f32 %v1385, %v1395
  %v1398 = vmul.f32 %v1396, %v1396
  %v1399 = vmul.f32 %v1397, %v1397
  %v1400 = vsel %vm252, %v1398, 0.0
  %1401 = vadd.xlane.f32.xlu0 %v1400
  %v1402 = vpop.xlane.xlu0 %1401
  %v1403 = vsel %vm252, %v1399, 0.0
  %1404 = vadd.xlane.f32.xlu0 %v1403
  %v1405 = vpop.xlane.xlu0 %1404
  %v1406 = vmul.f32 %v1402, %v259
  %v1407 = vmul.f32 %v1405, %v259
  %v1408 = vadd.f32 %v1406, 1e-12
  %v1409 = vadd.f32 %v1407, 1e-12
  %v1410 = vrsqrt.pop %v1408
  %v1411 = vrsqrt.pop %v1409
  %v1412 = vmul.f32 %v1396, %v1410
  %v1413 = vmul.f32 %v1397, %v1411
  %v1414 = vlaneseq
  %v1415 = vshrl.u32 %v1414, 7
  %v1416 = vsub.s32 0, %v1415
  %v1417 = vrot.slane %v1386, %v1416
  %v1418 = vmul.f32 %v1412, %v1417
  %v1419 = vmul.f32 %v1413, %v1417
  %v1420 = vlaneseq
  %v1421 = vshrl.u32 %v1420, 7
  %v1422 = vsub.s32 0, %v1421
  %v1423 = vrot.slane %v1387, %v1422
  %v1424 = vadd.f32 %v1418, %v1423
  %v1425 = vadd.f32 %v1419, %v1423
  %v1426 = vld [vmem:[%s6] sm:$0xff]
  %v1427 = vld [vmem:[%s6 + $0x8] sm:$0xff]
  %v1428 = vld [vmem:[%s6 + $0x10] sm:$0xff]
  %v1429 = vld [vmem:[%s6 + $0x18] sm:$0xff]
  %v1430 = vld [vmem:[%s3 + $0x19] sm:$0x1]
  %v1431 = vlaneseq
  %v1432 = vshrl.u32 %v1431, 7
  %v1433 = vsub.s32 0, %v1432
  %v1434 = vrot.slane %v1430, %v1433
  %v1436 = vsel %vm252, %v1424, 0
  %v1439 = vsel %vm252, %v1425, 0
  %1441 = vmatprep.subr.mxu0 0.0
  %1442 = vmatpush1.msra.mxu0 0.0
  %1443 = vmatprep.subr.mxu0 0.0
  %1444 = vmatpush1.msra.mxu0 0.0
  %1445 = vmatprep.subr.mxu0 0.0
  %1446 = vmatpush1.msra.mxu0 0.0
  %1447 = vmatprep.subr.mxu0 0.0
  %1448 = vmatpush1.msra.mxu0 0.0
  %1449 = vmatprep.subr.mxu0 0.0
  %1450 = vmatpush1.msra.mxu0 0.0
  %1451 = vmatprep.subr.mxu0 0.0
  %1452 = vmatpush1.msra.mxu0 0.0
  %1453 = vmatprep.subr.mxu0 0.0
  %1454 = vmatpush1.msra.mxu0 0.0
  %1455 = vmatprep.subr.mxu0 0.0
  %1456 = vmatpush1.msra.mxu0 0.0
  %1457 = vmatprep.subr.mxu0 0.0
  %1458 = vmatpush1.msra.mxu0 0.0
  %1459 = vmatprep.subr.mxu0 0.0
  %1460 = vmatpush1.msra.mxu0 0.0
  %1461 = vmatprep.subr.mxu0 0.0
  %1462 = vmatpush1.msra.mxu0 0.0
  %1463 = vmatprep.subr.mxu0 0.0
  %1464 = vmatpush1.msra.mxu0 0.0
  %1465 = vmatprep.subr.mxu0 0.0
  %1466 = vmatpush1.msra.mxu0 %v1429
  %1467 = vmatprep.subr.mxu0 0.0
  %1468 = vmatpush1.msra.mxu0 %v1428
  %1469 = vmatprep.subr.mxu0 0.0
  %1470 = vmatpush1.msra.mxu0 %v1427
  %1471 = vmatprep.subr.mxu0 0.0
  %1472 = vmatpush1.msra.mxu0 %v1426
  %1473 = vmatprep.subr.mxu0 0.0
  %1474 = vmatpush2.msra.mxu0 0.0
  %1475 = vmatprep.subr.mxu0 0.0
  %1476 = vmatpush2.msra.mxu0 0.0
  %1477 = vmatprep.subr.mxu0 0.0
  %1478 = vmatpush2.msra.mxu0 0.0
  %1479 = vmatprep.subr.mxu0 0.0
  %1480 = vmatpush2.msra.mxu0 0.0
  %1481 = vmatprep.subr.mxu0 0.0
  %1482 = vmatpush2.msra.mxu0 0.0
  %1483 = vmatprep.subr.mxu0 0.0
  %1484 = vmatpush2.msra.mxu0 0.0
  %1485 = vmatprep.subr.mxu0 0.0
  %1486 = vmatpush2.msra.mxu0 0.0
  %1487 = vmatprep.subr.mxu0 0.0
  %1488 = vmatpush2.msra.mxu0 0.0
  %1489 = vmatprep.subr.mxu0 0.0
  %1490 = vmatpush2.msra.mxu0 0.0
  %1491 = vmatprep.subr.mxu0 0.0
  %1492 = vmatpush2.msra.mxu0 0.0
  %1493 = vmatprep.subr.mxu0 0.0
  %1494 = vmatpush2.msra.mxu0 0.0
  %1495 = vmatprep.subr.mxu0 0.0
  %1496 = vmatpush2.msra.mxu0 0.0
  %1497 = vmatprep.subr.mxu0 0.0
  %1498 = vmatpush2.msra.mxu0 0.0
  %1499 = vmatprep.subr.mxu0 0.0
  %1500 = vmatpush2.msra.mxu0 0.0
  %1501 = vmatprep.subr.mxu0 0.0
  %1502 = vmatpush2.msra.mxu0 0.0
  %1503 = vmatprep.subr.mxu0 0.0
  %1504 = vmatpush2.msra.mxu0 0.0
  %1505 = vmatprep.mubr.f32.mxu0 0.0
  %1506 = vmatmul.mubr.f32.gmra.mxu0 %v1436
  %v1507 = vpop.f32.mrf.mxu0
  %v1508 = vadd.f32 %v1434, %v1507
  %v1509 = vpop.f32.mrf.mxu0
  %1510 = vmatprep.mubr.f32.mxu0 0.0
  %1511 = vmatmul.mubr.f32.gmra.mxu0 %v1439
  %v1512 = vpop.f32.mrf.mxu0
  %v1513 = vadd.f32 %v1434, %v1512
  %v1514 = vpop.f32.mrf.mxu0
  %1515 = vdwg.mxu0
  %v1516 = vmul.f32 %v1508, 0.5
  %v1517 = vmul.f32 %v1513, 0.5
  %v1518 = vmul.f32 %v1508, 0.044715
  %v1519 = vmul.f32 %v1513, 0.044715
  %v1520 = vmul.f32 %v1518, %v1508
  %v1521 = vmul.f32 %v1519, %v1513
  %v1522 = vmul.f32 %v1520, %v1508
  %v1523 = vmul.f32 %v1521, %v1513
  %v1524 = vadd.f32 %v1508, %v1522
  %v1525 = vadd.f32 %v1513, %v1523
  %v1526 = vmul.f32 %v1524, 0.7978846
  %v1527 = vmul.f32 %v1525, 0.7978846
  %v1528 = vtanh.pop %v1526
  %v1529 = vtanh.pop %v1527
  %v1530 = vadd.f32 %v1528, 1.0
  %v1531 = vadd.f32 %v1529, 1.0
  %v1532 = vmul.f32 %v1516, %v1530
  %v1533 = vmul.f32 %v1517, %v1531
  %v1534 = vld [vmem:[%s7] sm:$0xff]
  %v1535 = vld [vmem:[%s7 + $0x8] sm:$0xff]
  %v1536 = vld [vmem:[%s7 + $0x10] sm:$0xff]
  %v1537 = vld [vmem:[%s7 + $0x18] sm:$0xff]
  %v1538 = vld [vmem:[%s7 + $0x20] sm:$0xff]
  %v1539 = vld [vmem:[%s7 + $0x28] sm:$0xff]
  %v1540 = vld [vmem:[%s7 + $0x30] sm:$0xff]
  %v1541 = vld [vmem:[%s7 + $0x38] sm:$0xff]
  %v1542 = vld [vmem:[%s3 + $0x1a] sm:$0x1]
  %v1543 = vlaneseq
  %v1544 = vshrl.u32 %v1543, 7
  %v1545 = vsub.s32 0, %v1544
  %v1546 = vrot.slane %v1542, %v1545
  %vm1547 = vcmask 523264
  %v1549 = vsel %vm1547, %v1532, 0
  %v1552 = vsel %vm1547, %v1533, 0
  %1554 = vmatprep.subr.mxu0 0.0
  %1555 = vmatpush1.msra.mxu0 0.0
  %1556 = vmatprep.subr.mxu0 0.0
  %1557 = vmatpush1.msra.mxu0 0.0
  %1558 = vmatprep.subr.mxu0 0.0
  %1559 = vmatpush1.msra.mxu0 0.0
  %1560 = vmatprep.subr.mxu0 0.0
  %1561 = vmatpush1.msra.mxu0 0.0
  %1562 = vmatprep.subr.mxu0 0.0
  %1563 = vmatpush1.msra.mxu0 0.0
  %1564 = vmatprep.subr.mxu0 0.0
  %1565 = vmatpush1.msra.mxu0 0.0
  %1566 = vmatprep.subr.mxu0 0.0
  %1567 = vmatpush1.msra.mxu0 0.0
  %1568 = vmatprep.subr.mxu0 0.0
  %1569 = vmatpush1.msra.mxu0 0.0
  %1570 = vmatprep.subr.mxu0 0.0
  %1571 = vmatpush1.msra.mxu0 %v1541
  %1572 = vmatprep.subr.mxu0 0.0
  %1573 = vmatpush1.msra.mxu0 %v1540
  %1574 = vmatprep.subr.mxu0 0.0
  %1575 = vmatpush1.msra.mxu0 %v1539
  %1576 = vmatprep.subr.mxu0 0.0
  %1577 = vmatpush1.msra.mxu0 %v1538
  %1578 = vmatprep.subr.mxu0 0.0
  %1579 = vmatpush1.msra.mxu0 %v1537
  %1580 = vmatprep.subr.mxu0 0.0
  %1581 = vmatpush1.msra.mxu0 %v1536
  %1582 = vmatprep.subr.mxu0 0.0
  %1583 = vmatpush1.msra.mxu0 %v1535
  %1584 = vmatprep.subr.mxu0 0.0
  %1585 = vmatpush1.msra.mxu0 %v1534
  %1586 = vmatprep.subr.mxu0 0.0
  %1587 = vmatpush2.msra.mxu0 0.0
  %1588 = vmatprep.subr.mxu0 0.0
  %1589 = vmatpush2.msra.mxu0 0.0
  %1590 = vmatprep.subr.mxu0 0.0
  %1591 = vmatpush2.msra.mxu0 0.0
  %1592 = vmatprep.subr.mxu0 0.0
  %1593 = vmatpush2.msra.mxu0 0.0
  %1594 = vmatprep.subr.mxu0 0.0
  %1595 = vmatpush2.msra.mxu0 0.0
  %1596 = vmatprep.subr.mxu0 0.0
  %1597 = vmatpush2.msra.mxu0 0.0
  %1598 = vmatprep.subr.mxu0 0.0
  %1599 = vmatpush2.msra.mxu0 0.0
  %1600 = vmatprep.subr.mxu0 0.0
  %1601 = vmatpush2.msra.mxu0 0.0
  %1602 = vmatprep.subr.mxu0 0.0
  %1603 = vmatpush2.msra.mxu0 0.0
  %1604 = vmatprep.subr.mxu0 0.0
  %1605 = vmatpush2.msra.mxu0 0.0
  %1606 = vmatprep.subr.mxu0 0.0
  %1607 = vmatpush2.msra.mxu0 0.0
  %1608 = vmatprep.subr.mxu0 0.0
  %1609 = vmatpush2.msra.mxu0 0.0
  %1610 = vmatprep.subr.mxu0 0.0
  %1611 = vmatpush2.msra.mxu0 0.0
  %1612 = vmatprep.subr.mxu0 0.0
  %1613 = vmatpush2.msra.mxu0 0.0
  %1614 = vmatprep.subr.mxu0 0.0
  %1615 = vmatpush2.msra.mxu0 0.0
  %1616 = vmatprep.subr.mxu0 0.0
  %1617 = vmatpush2.msra.mxu0 0.0
  %1618 = vmatprep.mubr.f32.mxu0 0.0
  %1619 = vmatmul.mubr.f32.gmra.mxu0 %v1549
  %v1620 = vpop.f32.mrf.mxu0
  %v1621 = vadd.f32 %v1546, %v1620
  %v1622 = vpop.f32.mrf.mxu0
  %1623 = vmatprep.mubr.f32.mxu0 0.0
  %1624 = vmatmul.mubr.f32.gmra.mxu0 %v1552
  %v1625 = vpop.f32.mrf.mxu0
  %v1626 = vadd.f32 %v1546, %v1625
  %v1627 = vpop.f32.mrf.mxu0
  %1628 = vdwg.mxu0
  %v1629 = vadd.f32 %v1621, %v1424
  %v1630 = vadd.f32 %v1626, %v1425
  %v1631 = vld [vmem:[%s3 + $0x1d] sm:$0x1]
  %v1632 = vld [vmem:[%s3 + $0x1e] sm:$0x1]
  %v1633 = vsel %vm252, %v1629, 0.0
  %1634 = vadd.xlane.f32.xlu0 %v1633
  %v1635 = vpop.xlane.xlu0 %1634
  %v1636 = vsel %vm252, %v1630, 0.0
  %1637 = vadd.xlane.f32.xlu0 %v1636
  %v1638 = vpop.xlane.xlu0 %1637
  %v1639 = vmul.f32 %v1635, %v259
  %v1640 = vmul.f32 %v1638, %v259
  %v1641 = vsub.f32 %v1629, %v1639
  %v1642 = vsub.f32 %v1630, %v1640
  %v1643 = vmul.f32 %v1641, %v1641
  %v1644 = vmul.f32 %v1642, %v1642
  %v1645 = vsel %vm252, %v1643, 0.0
  %1646 = vadd.xlane.f32.xlu0 %v1645
  %v1647 = vpop.xlane.xlu0 %1646
  %v1648 = vsel %vm252, %v1644, 0.0
  %1649 = vadd.xlane.f32.xlu0 %v1648
  %v1650 = vpop.xlane.xlu0 %1649
  %v1651 = vmul.f32 %v1647, %v259
  %v1652 = vmul.f32 %v1650, %v259
  %v1653 = vadd.f32 %v1651, 1e-12
  %v1654 = vadd.f32 %v1652, 1e-12
  %v1655 = vrsqrt.pop %v1653
  %v1656 = vrsqrt.pop %v1654
  %v1657 = vmul.f32 %v1641, %v1655
  %v1658 = vmul.f32 %v1642, %v1656
  %v1659 = vlaneseq
  %v1660 = vshrl.u32 %v1659, 7
  %v1661 = vsub.s32 0, %v1660
  %v1662 = vrot.slane %v1631, %v1661
  %v1663 = vmul.f32 %v1657, %v1662
  %v1664 = vmul.f32 %v1658, %v1662
  %v1665 = vlaneseq
  %v1666 = vshrl.u32 %v1665, 7
  %v1667 = vsub.s32 0, %v1666
  %v1668 = vrot.slane %v1632, %v1667
  %v1669 = vadd.f32 %v1663, %v1668
  %v1670 = vadd.f32 %v1664, %v1668
  %s1671 = scalar_lea.vmem %s4, 192
  %v1672 = vld [vmem:[%s1671] sm:$0xff]
  %v1673 = vld [vmem:[%s1671 + $0x8] sm:$0xff]
  %v1674 = vld [vmem:[%s1671 + $0x10] sm:$0xff]
  %v1675 = vld [vmem:[%s1671 + $0x18] sm:$0xff]
  %v1676 = vld [vmem:[%s3 + $0x2f] sm:$0x1]
  %v1677 = vlaneseq
  %v1678 = vshrl.u32 %v1677, 7
  %v1679 = vsub.s32 0, %v1678
  %v1680 = vrot.slane %v1676, %v1679
  %v1682 = vsel %vm252, %v1669, 0
  %v1685 = vsel %vm252, %v1670, 0
  %1687 = vmatprep.subr.mxu0 0.0
  %1688 = vmatpush1.msra.mxu0 0.0
  %1689 = vmatprep.subr.mxu0 0.0
  %1690 = vmatpush1.msra.mxu0 0.0
  %1691 = vmatprep.subr.mxu0 0.0
  %1692 = vmatpush1.msra.mxu0 0.0
  %1693 = vmatprep.subr.mxu0 0.0
  %1694 = vmatpush1.msra.mxu0 0.0
  %1695 = vmatprep.subr.mxu0 0.0
  %1696 = vmatpush1.msra.mxu0 0.0
  %1697 = vmatprep.subr.mxu0 0.0
  %1698 = vmatpush1.msra.mxu0 0.0
  %1699 = vmatprep.subr.mxu0 0.0
  %1700 = vmatpush1.msra.mxu0 0.0
  %1701 = vmatprep.subr.mxu0 0.0
  %1702 = vmatpush1.msra.mxu0 0.0
  %1703 = vmatprep.subr.mxu0 0.0
  %1704 = vmatpush1.msra.mxu0 0.0
  %1705 = vmatprep.subr.mxu0 0.0
  %1706 = vmatpush1.msra.mxu0 0.0
  %1707 = vmatprep.subr.mxu0 0.0
  %1708 = vmatpush1.msra.mxu0 0.0
  %1709 = vmatprep.subr.mxu0 0.0
  %1710 = vmatpush1.msra.mxu0 0.0
  %1711 = vmatprep.subr.mxu0 0.0
  %1712 = vmatpush1.msra.mxu0 %v1675
  %1713 = vmatprep.subr.mxu0 0.0
  %1714 = vmatpush1.msra.mxu0 %v1674
  %1715 = vmatprep.subr.mxu0 0.0
  %1716 = vmatpush1.msra.mxu0 %v1673
  %1717 = vmatprep.subr.mxu0 0.0
  %1718 = vmatpush1.msra.mxu0 %v1672
  %1719 = vmatprep.subr.mxu0 0.0
  %1720 = vmatpush2.msra.mxu0 0.0
  %1721 = vmatprep.subr.mxu0 0.0
  %1722 = vmatpush2.msra.mxu0 0.0
  %1723 = vmatprep.subr.mxu0 0.0
  %1724 = vmatpush2.msra.mxu0 0.0
  %1725 = vmatprep.subr.mxu0 0.0
  %1726 = vmatpush2.msra.mxu0 0.0
  %1727 = vmatprep.subr.mxu0 0.0
  %1728 = vmatpush2.msra.mxu0 0.0
  %1729 = vmatprep.subr.mxu0 0.0
  %1730 = vmatpush2.msra.mxu0 0.0
  %1731 = vmatprep.subr.mxu0 0.0
  %1732 = vmatpush2.msra.mxu0 0.0
  %1733 = vmatprep.subr.mxu0 0.0
  %1734 = vmatpush2.msra.mxu0 0.0
  %1735 = vmatprep.subr.mxu0 0.0
  %1736 = vmatpush2.msra.mxu0 0.0
  %1737 = vmatprep.subr.mxu0 0.0
  %1738 = vmatpush2.msra.mxu0 0.0
  %1739 = vmatprep.subr.mxu0 0.0
  %1740 = vmatpush2.msra.mxu0 0.0
  %1741 = vmatprep.subr.mxu0 0.0
  %1742 = vmatpush2.msra.mxu0 0.0
  %1743 = vmatprep.subr.mxu0 0.0
  %1744 = vmatpush2.msra.mxu0 0.0
  %1745 = vmatprep.subr.mxu0 0.0
  %1746 = vmatpush2.msra.mxu0 0.0
  %1747 = vmatprep.subr.mxu0 0.0
  %1748 = vmatpush2.msra.mxu0 0.0
  %1749 = vmatprep.subr.mxu0 0.0
  %1750 = vmatpush2.msra.mxu0 0.0
  %1751 = vmatprep.mubr.f32.mxu0 0.0
  %1752 = vmatmul.mubr.f32.gmra.mxu0 %v1682
  %v1753 = vpop.f32.mrf.mxu0
  %v1754 = vadd.f32 %v1680, %v1753
  %v1755 = vpop.f32.mrf.mxu0
  %1756 = vmatprep.mubr.f32.mxu0 0.0
  %1757 = vmatmul.mubr.f32.gmra.mxu0 %v1685
  %v1758 = vpop.f32.mrf.mxu0
  %v1759 = vadd.f32 %v1680, %v1758
  %v1760 = vpop.f32.mrf.mxu0
  %1761 = vdwg.mxu0
  %s1762 = scalar_lea.vmem %s4, 224
  %v1763 = vld [vmem:[%s1762] sm:$0xff]
  %v1764 = vld [vmem:[%s1762 + $0x8] sm:$0xff]
  %v1765 = vld [vmem:[%s1762 + $0x10] sm:$0xff]
  %v1766 = vld [vmem:[%s1762 + $0x18] sm:$0xff]
  %v1767 = vld [vmem:[%s3 + $0x30] sm:$0x1]
  %v1768 = vlaneseq
  %v1769 = vshrl.u32 %v1768, 7
  %v1770 = vsub.s32 0, %v1769
  %v1771 = vrot.slane %v1767, %v1770
  %1772 = vmatprep.subr.mxu0 0.0
  %1773 = vmatpush1.msra.mxu0 0.0
  %1774 = vmatprep.subr.mxu0 0.0
  %1775 = vmatpush1.msra.mxu0 0.0
  %1776 = vmatprep.subr.mxu0 0.0
  %1777 = vmatpush1.msra.mxu0 0.0
  %1778 = vmatprep.subr.mxu0 0.0
  %1779 = vmatpush1.msra.mxu0 0.0
  %1780 = vmatprep.subr.mxu0 0.0
  %1781 = vmatpush1.msra.mxu0 0.0
  %1782 = vmatprep.subr.mxu0 0.0
  %1783 = vmatpush1.msra.mxu0 0.0
  %1784 = vmatprep.subr.mxu0 0.0
  %1785 = vmatpush1.msra.mxu0 0.0
  %1786 = vmatprep.subr.mxu0 0.0
  %1787 = vmatpush1.msra.mxu0 0.0
  %1788 = vmatprep.subr.mxu0 0.0
  %1789 = vmatpush1.msra.mxu0 0.0
  %1790 = vmatprep.subr.mxu0 0.0
  %1791 = vmatpush1.msra.mxu0 0.0
  %1792 = vmatprep.subr.mxu0 0.0
  %1793 = vmatpush1.msra.mxu0 0.0
  %1794 = vmatprep.subr.mxu0 0.0
  %1795 = vmatpush1.msra.mxu0 0.0
  %1796 = vmatprep.subr.mxu0 0.0
  %1797 = vmatpush1.msra.mxu0 %v1766
  %1798 = vmatprep.subr.mxu0 0.0
  %1799 = vmatpush1.msra.mxu0 %v1765
  %1800 = vmatprep.subr.mxu0 0.0
  %1801 = vmatpush1.msra.mxu0 %v1764
  %1802 = vmatprep.subr.mxu0 0.0
  %1803 = vmatpush1.msra.mxu0 %v1763
  %1804 = vmatprep.subr.mxu0 0.0
  %1805 = vmatpush2.msra.mxu0 0.0
  %1806 = vmatprep.subr.mxu0 0.0
  %1807 = vmatpush2.msra.mxu0 0.0
  %1808 = vmatprep.subr.mxu0 0.0
  %1809 = vmatpush2.msra.mxu0 0.0
  %1810 = vmatprep.subr.mxu0 0.0
  %1811 = vmatpush2.msra.mxu0 0.0
  %1812 = vmatprep.subr.mxu0 0.0
  %1813 = vmatpush2.msra.mxu0 0.0
  %1814 = vmatprep.subr.mxu0 0.0
  %1815 = vmatpush2.msra.mxu0 0.0
  %1816 = vmatprep.subr.mxu0 0.0
  %1817 = vmatpush2.msra.mxu0 0.0
  %1818 = vmatprep.subr.mxu0 0.0
  %1819 = vmatpush2.msra.mxu0 0.0
  %1820 = vmatprep.subr.mxu0 0.0
  %1821 = vmatpush2.msra.mxu0 0.0
  %1822 = vmatprep.subr.mxu0 0.0
  %1823 = vmatpush2.msra.mxu0 0.0
  %1824 = vmatprep.subr.mxu0 0.0
  %1825 = vmatpush2.msra.mxu0 0.0
  %1826 = vmatprep.subr.mxu0 0.0
  %1827 = vmatpush2.msra.mxu0 0.0
  %1828 = vmatprep.subr.mxu0 0.0
  %1829 = vmatpush2.msra.mxu0 0.0
  %1830 = vmatprep.subr.mxu0 0.0
  %1831 = vmatpush2.msra.mxu0 0.0
  %1832 = vmatprep.subr.mxu0 0.0
  %1833 = vmatpush2.msra.mxu0 0.0
  %1834 = vmatprep.subr.mxu0 0.0
  %1835 = vmatpush2.msra.mxu0 0.0
  %1836 = vmatprep.mubr.f32.mxu0 0.0
  %1837 = vmatmul.mubr.f32.gmra.mxu0 %v1682
  %v1838 = vpop.f32.mrf.mxu0
  %v1839 = vadd.f32 %v1771, %v1838
  %v1840 = vpop.f32.mrf.mxu0
  %1841 = vmatprep.mubr.f32.mxu0 0.0
  %1842 = vmatmul.mubr.f32.gmra.mxu0 %v1685
  %v1843 = vpop.f32.mrf.mxu0
  %v1844 = vadd.f32 %v1771, %v1843
  %v1845 = vpop.f32.mrf.mxu0
  %1846 = vdwg.mxu0
  %s1847 = scalar_lea.vmem %s4, 256
  %v1848 = vld [vmem:[%s1847] sm:$0xff]
  %v1849 = vld [vmem:[%s1847 + $0x8] sm:$0xff]
  %v1850 = vld [vmem:[%s1847 + $0x10] sm:$0xff]
  %v1851 = vld [vmem:[%s1847 + $0x18] sm:$0xff]
  %v1852 = vld [vmem:[%s3 + $0x31] sm:$0x1]
  %v1853 = vlaneseq
  %v1854 = vshrl.u32 %v1853, 7
  %v1855 = vsub.s32 0, %v1854
  %v1856 = vrot.slane %v1852, %v1855
  %1857 = vmatprep.subr.mxu0 0.0
  %1858 = vmatpush1.msra.mxu0 0.0
  %1859 = vmatprep.subr.mxu0 0.0
  %1860 = vmatpush1.msra.mxu0 0.0
  %1861 = vmatprep.subr.mxu0 0.0
  %1862 = vmatpush1.msra.mxu0 0.0
  %1863 = vmatprep.subr.mxu0 0.0
  %1864 = vmatpush1.msra.mxu0 0.0
  %1865 = vmatprep.subr.mxu0 0.0
  %1866 = vmatpush1.msra.mxu0 0.0
  %1867 = vmatprep.subr.mxu0 0.0
  %1868 = vmatpush1.msra.mxu0 0.0
  %1869 = vmatprep.subr.mxu0 0.0
  %1870 = vmatpush1.msra.mxu0 0.0
  %1871 = vmatprep.subr.mxu0 0.0
  %1872 = vmatpush1.msra.mxu0 0.0
  %1873 = vmatprep.subr.mxu0 0.0
  %1874 = vmatpush1.msra.mxu0 0.0
  %1875 = vmatprep.subr.mxu0 0.0
  %1876 = vmatpush1.msra.mxu0 0.0
  %1877 = vmatprep.subr.mxu0 0.0
  %1878 = vmatpush1.msra.mxu0 0.0
  %1879 = vmatprep.subr.mxu0 0.0
  %1880 = vmatpush1.msra.mxu0 0.0
  %1881 = vmatprep.subr.mxu0 0.0
  %1882 = vmatpush1.msra.mxu0 %v1851
  %1883 = vmatprep.subr.mxu0 0.0
  %1884 = vmatpush1.msra.mxu0 %v1850
  %1885 = vmatprep.subr.mxu0 0.0
  %1886 = vmatpush1.msra.mxu0 %v1849
  %1887 = vmatprep.subr.mxu0 0.0
  %1888 = vmatpush1.msra.mxu0 %v1848
  %1889 = vmatprep.subr.mxu0 0.0
  %1890 = vmatpush2.msra.mxu0 0.0
  %1891 = vmatprep.subr.mxu0 0.0
  %1892 = vmatpush2.msra.mxu0 0.0
  %1893 = vmatprep.subr.mxu0 0.0
  %1894 = vmatpush2.msra.mxu0 0.0
  %1895 = vmatprep.subr.mxu0 0.0
  %1896 = vmatpush2.msra.mxu0 0.0
  %1897 = vmatprep.subr.mxu0 0.0
  %1898 = vmatpush2.msra.mxu0 0.0
  %1899 = vmatprep.subr.mxu0 0.0
  %1900 = vmatpush2.msra.mxu0 0.0
  %1901 = vmatprep.subr.mxu0 0.0
  %1902 = vmatpush2.msra.mxu0 0.0
  %1903 = vmatprep.subr.mxu0 0.0
  %1904 = vmatpush2.msra.mxu0 0.0
  %1905 = vmatprep.subr.mxu0 0.0
  %1906 = vmatpush2.msra.mxu0 0.0
  %1907 = vmatprep.subr.mxu0 0.0
  %1908 = vmatpush2.msra.mxu0 0.0
  %1909 = vmatprep.subr.mxu0 0.0
  %1910 = vmatpush2.msra.mxu0 0.0
  %1911 = vmatprep.subr.mxu0 0.0
  %1912 = vmatpush2.msra.mxu0 0.0
  %1913 = vmatprep.subr.mxu0 0.0
  %1914 = vmatpush2.msra.mxu0 0.0
  %1915 = vmatprep.subr.mxu0 0.0
  %1916 = vmatpush2.msra.mxu0 0.0
  %1917 = vmatprep.subr.mxu0 0.0
  %1918 = vmatpush2.msra.mxu0 0.0
  %1919 = vmatprep.subr.mxu0 0.0
  %1920 = vmatpush2.msra.mxu0 0.0
  %1921 = vmatprep.mubr.f32.mxu0 0.0
  %1922 = vmatmul.mubr.f32.gmra.mxu0 %v1682
  %v1923 = vpop.f32.mrf.mxu0
  %v1924 = vadd.f32 %v1856, %v1923
  %v1925 = vpop.f32.mrf.mxu0
  %1926 = vmatprep.mubr.f32.mxu0 0.0
  %1927 = vmatmul.mubr.f32.gmra.mxu0 %v1685
  %v1928 = vpop.f32.mrf.mxu0
  %v1929 = vadd.f32 %v1856, %v1928
  %v1930 = vpop.f32.mrf.mxu0
  %1931 = vdwg.mxu0
  %v1933 = vsel %vm75, %v1754, 0
  %v1936 = vsel %vm75, %v1759, 0
  %v1939 = vsel %vm75, %v1839, 0
  %v1942 = vsel %vm75, %v1844, 0
  %1944 = vmatprep.subr.mxu0 0.0
  %1945 = vmatpush1.xpose.msra.mxu0 0.0
  %1946 = vmatprep.subr.mxu0 0.0
  %1947 = vmatpush1.xpose.msra.mxu0 0.0
  %1948 = vmatprep.subr.mxu0 0.0
  %1949 = vmatpush1.xpose.msra.mxu0 0.0
  %1950 = vmatprep.subr.mxu0 0.0
  %1951 = vmatpush1.xpose.msra.mxu0 0.0
  %1952 = vmatprep.subr.mxu0 0.0
  %1953 = vmatpush1.xpose.msra.mxu0 0.0
  %1954 = vmatprep.subr.mxu0 0.0
  %1955 = vmatpush1.xpose.msra.mxu0 0.0
  %1956 = vmatprep.subr.mxu0 0.0
  %1957 = vmatpush1.xpose.msra.mxu0 0.0
  %1958 = vmatprep.subr.mxu0 0.0
  %1959 = vmatpush1.xpose.msra.mxu0 0.0
  %1960 = vmatprep.subr.mxu0 0.0
  %1961 = vmatpush1.xpose.msra.mxu0 0.0
  %1962 = vmatprep.subr.mxu0 0.0
  %1963 = vmatpush1.xpose.msra.mxu0 0.0
  %1964 = vmatprep.subr.mxu0 0.0
  %1965 = vmatpush1.xpose.msra.mxu0 0.0
  %1966 = vmatprep.subr.mxu0 0.0
  %1967 = vmatpush1.xpose.msra.mxu0 0.0
  %1968 = vmatprep.subr.mxu0 0.0
  %1969 = vmatpush1.xpose.msra.mxu0 0.0
  %1970 = vmatprep.subr.mxu0 0.0
  %1971 = vmatpush1.xpose.msra.mxu0 0.0
  %1972 = vmatprep.subr.mxu0 0.0
  %1973 = vmatpush1.xpose.msra.mxu0 %v1942
  %1974 = vmatprep.subr.mxu0 0.0
  %1975 = vmatpush1.xpose.msra.mxu0 %v1939
  %1976 = vmatprep.subr.mxu0 0.0
  %1977 = vmatpush2.xpose.msra.mxu0 0.0
  %1978 = vmatprep.subr.mxu0 0.0
  %1979 = vmatpush2.xpose.msra.mxu0 0.0
  %1980 = vmatprep.subr.mxu0 0.0
  %1981 = vmatpush2.xpose.msra.mxu0 0.0
  %1982 = vmatprep.subr.mxu0 0.0
  %1983 = vmatpush2.xpose.msra.mxu0 0.0
  %1984 = vmatprep.subr.mxu0 0.0
  %1985 = vmatpush2.xpose.msra.mxu0 0.0
  %1986 = vmatprep.subr.mxu0 0.0
  %1987 = vmatpush2.xpose.msra.mxu0 0.0
  %1988 = vmatprep.subr.mxu0 0.0
  %1989 = vmatpush2.xpose.msra.mxu0 0.0
  %1990 = vmatprep.subr.mxu0 0.0
  %1991 = vmatpush2.xpose.msra.mxu0 0.0
  %1992 = vmatprep.subr.mxu0 0.0
  %1993 = vmatpush2.xpose.msra.mxu0 0.0
  %1994 = vmatprep.subr.mxu0 0.0
  %1995 = vmatpush2.xpose.msra.mxu0 0.0
  %1996 = vmatprep.subr.mxu0 0.0
  %1997 = vmatpush2.xpose.msra.mxu0 0.0
  %1998 = vmatprep.subr.mxu0 0.0
  %1999 = vmatpush2.xpose.msra.mxu0 0.0
  %2000 = vmatprep.subr.mxu0 0.0
  %2001 = vmatpush2.xpose.msra.mxu0 0.0
  %2002 = vmatprep.subr.mxu0 0.0
  %2003 = vmatpush2.xpose.msra.mxu0 0.0
  %2004 = vmatprep.subr.mxu0 0.0
  %2005 = vmatpush2.xpose.msra.mxu0 0.0
  %2006 = vmatprep.subr.mxu0 0.0
  %2007 = vmatpush2.xpose.msra.mxu0 0.0
  %2008 = vmatprep.mubr.f32.mxu0 0.0
  %2009 = vmatmul.mubr.f32.gmra.mxu0 %v1933
  %v2010 = vpop.f32.mrf.mxu0
  %v2011 = vadd.f32 0.0, %v2010
  %v2012 = vpop.f32.mrf.mxu0
  %2013 = vmatprep.mubr.f32.mxu0 0.0
  %2014 = vmatmul.mubr.f32.gmra.mxu0 %v1936
  %v2015 = vpop.f32.mrf.mxu0
  %v2016 = vadd.f32 0.0, %v2015
  %v2017 = vpop.f32.mrf.mxu0
  %2018 = vdwg.mxu0
  %v2019 = vmul.f32 %v2011, 0.25
  %v2020 = vmul.f32 %v2016, 0.25
  %v2021 = vadd.f32 %v2019, %v305
  %v2022 = vadd.f32 %v2020, %v306
  %v2023 = vsel %vm75, %v2021, -inf
  %2024 = vmax.xlane.f32.xlu0 %v2023
  %v2025 = vpop.xlane.xlu0 %2024
  %v2026 = vsel %vm75, %v2022, -inf
  %2027 = vmax.xlane.f32.xlu0 %v2026
  %v2028 = vpop.xlane.xlu0 %2027
  %v2029 = vsub.f32 %v2021, %v2025
  %v2030 = vsub.f32 %v2022, %v2028
  %v2031 = vmul.f32 %v2029, 1.442695
  %v2032 = vpow.pop %v2031
  %v2033 = vmul.f32 %v2030, 1.442695
  %v2034 = vpow.pop %v2033
  %v2035 = vsel %vm75, %v2032, 0.0
  %2036 = vadd.xlane.f32.xlu0 %v2035
  %v2037 = vpop.xlane.xlu0 %2036
  %v2038 = vsel %vm75, %v2034, 0.0
  %2039 = vadd.xlane.f32.xlu0 %v2038
  %v2040 = vpop.xlane.xlu0 %2039
  %v2041 = vrcp.pop %v2037
  %v2042 = vmul.f32 %v2032, %v2041
  %v2043 = vrcp.pop %v2040
  %v2044 = vmul.f32 %v2034, %v2043
  %v2046 = vsel %vm75, %v2042, 0
  %v2049 = vsel %vm75, %v2044, 0
  %2051 = vmatprep.subr.mxu0 0.0
  %2052 = vmatpush1.msra.mxu0 0.0
  %2053 = vmatprep.subr.mxu0 0.0
  %2054 = vmatpush1.msra.mxu0 0.0
  %2055 = vmatprep.subr.mxu0 0.0
  %2056 = vmatpush1.msra.mxu0 0.0
  %2057 = vmatprep.subr.mxu0 0.0
  %2058 = vmatpush1.msra.mxu0 0.0
  %2059 = vmatprep.subr.mxu0 0.0
  %2060 = vmatpush1.msra.mxu0 0.0
  %2061 = vmatprep.subr.mxu0 0.0
  %2062 = vmatpush1.msra.mxu0 0.0
  %2063 = vmatprep.subr.mxu0 0.0
  %2064 = vmatpush1.msra.mxu0 0.0
  %2065 = vmatprep.subr.mxu0 0.0
  %2066 = vmatpush1.msra.mxu0 0.0
  %2067 = vmatprep.subr.mxu0 0.0
  %2068 = vmatpush1.msra.mxu0 0.0
  %2069 = vmatprep.subr.mxu0 0.0
  %2070 = vmatpush1.msra.mxu0 0.0
  %2071 = vmatprep.subr.mxu0 0.0
  %2072 = vmatpush1.msra.mxu0 0.0
  %2073 = vmatprep.subr.mxu0 0.0
  %2074 = vmatpush1.msra.mxu0 0.0
  %2075 = vmatprep.subr.mxu0 0.0
  %2076 = vmatpush1.msra.mxu0 0.0
  %2077 = vmatprep.subr.mxu0 0.0
  %2078 = vmatpush1.msra.mxu0 0.0
  %2079 = vmatprep.subr.mxu0 0.0
  %2080 = vmatpush1.msra.mxu0 %v1929
  %2081 = vmatprep.subr.mxu0 0.0
  %2082 = vmatpush1.msra.mxu0 %v1924
  %2083 = vmatprep.subr.mxu0 0.0
  %2084 = vmatpush2.msra.mxu0 0.0
  %2085 = vmatprep.subr.mxu0 0.0
  %2086 = vmatpush2.msra.mxu0 0.0
  %2087 = vmatprep.subr.mxu0 0.0
  %2088 = vmatpush2.msra.mxu0 0.0
  %2089 = vmatprep.subr.mxu0 0.0
  %2090 = vmatpush2.msra.mxu0 0.0
  %2091 = vmatprep.subr.mxu0 0.0
  %2092 = vmatpush2.msra.mxu0 0.0
  %2093 = vmatprep.subr.mxu0 0.0
  %2094 = vmatpush2.msra.mxu0 0.0
  %2095 = vmatprep.subr.mxu0 0.0
  %2096 = vmatpush2.msra.mxu0 0.0
  %2097 = vmatprep.subr.mxu0 0.0
  %2098 = vmatpush2.msra.mxu0 0.0
  %2099 = vmatprep.subr.mxu0 0.0
  %2100 = vmatpush2.msra.mxu0 0.0
  %2101 = vmatprep.subr.mxu0 0.0
  %2102 = vmatpush2.msra.mxu0 0.0
  %2103 = vmatprep.subr.mxu0 0.0
  %2104 = vmatpush2.msra.mxu0 0.0
  %2105 = vmatprep.subr.mxu0 0.0
  %2106 = vmatpush2.msra.mxu0 0.0
  %2107 = vmatprep.subr.mxu0 0.0
  %2108 = vmatpush2.msra.mxu0 0.0
  %2109 = vmatprep.subr.mxu0 0.0
  %2110 = vmatpush2.msra.mxu0 0.0
  %2111 = vmatprep.subr.mxu0 0.0
  %2112 = vmatpush2.msra.mxu0 0.0
  %2113 = vmatprep.subr.mxu0 0.0
  %2114 = vmatpush2.msra.mxu0 0.0
  %2115 = vmatprep.mubr.f32.mxu0 0.0
  %2116 = vmatmul.mubr.f32.gmra.mxu0 %v2046
  %v2117 = vpop.f32.mrf.mxu0
  %v2118 = vadd.f32 0.0, %v2117
  %v2119 = vpop.f32.mrf.mxu0
  %2120 = vmatprep.mubr.f32.mxu0 0.0
  %2121 = vmatmul.mubr.f32.gmra.mxu0 %v2049
  %v2122 = vpop.f32.mrf.mxu0
  %v2123 = vadd.f32 0.0, %v2122
  %v2124 = vpop.f32.mrf.mxu0
  %2125 = vdwg.mxu0
  %s2126 = scalar_lea.vmem %s5, 32
  %v2127 = vld [vmem:[%s2126] sm:$0xff]
  %v2128 = vld [vmem:[%s2126 + $0x8] sm:$0xff]
  %s2129 = scalar_lea.vmem %s4, 288
  %v2130 = vld [vmem:[%s2129] sm:$0xff]
  %v2131 = vld [vmem:[%s2129 + $0x8] sm:$0xff]
  %v2132 = vld [vmem:[%s2129 + $0x10] sm:$0xff]
  %v2133 = vld [vmem:[%s2129 + $0x18] sm:$0xff]
  %v2134 = vld [vmem:[%s3 + $0x32] sm:$0x1]
  %v2135 = vlaneseq
  %v2136 = vshrl.u32 %v2135, 7
  %v2137 = vsub.s32 0, %v2136
  %v2138 = vrot.slane %v2134, %v2137
  %2139 = vmatprep.subr.mxu0 0.0
  %2140 = vmatpush1.msra.mxu0 0.0
  %2141 = vmatprep.subr.mxu0 0.0
  %2142 = vmatpush1.msra.mxu0 0.0
  %2143 = vmatprep.subr.mxu0 0.0
  %2144 = vmatpush1.msra.mxu0 0.0
  %2145 = vmatprep.subr.mxu0 0.0
  %2146 = vmatpush1.msra.mxu0 0.0
  %2147 = vmatprep.subr.mxu0 0.0
  %2148 = vmatpush1.msra.mxu0 0.0
  %2149 = vmatprep.subr.mxu0 0.0
  %2150 = vmatpush1.msra.mxu0 0.0
  %2151 = vmatprep.subr.mxu0 0.0
  %2152 = vmatpush1.msra.mxu0 0.0
  %2153 = vmatprep.subr.mxu0 0.0
  %2154 = vmatpush1.msra.mxu0 0.0
  %2155 = vmatprep.subr.mxu0 0.0
  %2156 = vmatpush1.msra.mxu0 0.0
  %2157 = vmatprep.subr.mxu0 0.0
  %2158 = vmatpush1.msra.mxu0 0.0
  %2159 = vmatprep.subr.mxu0 0.0
  %2160 = vmatpush1.msra.mxu0 0.0
  %2161 = vmatprep.subr.mxu0 0.0
  %2162 = vmatpush1.msra.mxu0 0.0
  %2163 = vmatprep.subr.mxu0 0.0
  %2164 = vmatpush1.msra.mxu0 %v2133
  %2165 = vmatprep.subr.mxu0 0.0
  %2166 = vmatpush1.msra.mxu0 %v2132
  %2167 = vmatprep.subr.mxu0 0.0
  %2168 = vmatpush1.msra.mxu0 %v2131
  %2169 = vmatprep.subr.mxu0 0.0
  %2170 = vmatpush1.msra.mxu0 %v2130
  %2171 = vmatprep.subr.mxu0 0.0
  %2172 = vmatpush2.msra.mxu0 0.0
  %2173 = vmatprep.subr.mxu0 0.0
  %2174 = vmatpush2.msra.mxu0 0.0
  %2175 = vmatprep.subr.mxu0 0.0
  %2176 = vmatpush2.msra.mxu0 0.0
  %2177 = vmatprep.subr.mxu0 0.0
  %2178 = vmatpush2.msra.mxu0 0.0
  %2179 = vmatprep.subr.mxu0 0.0
  %2180 = vmatpush2.msra.mxu0 0.0
  %2181 = vmatprep.subr.mxu0 0.0
  %2182 = vmatpush2.msra.mxu0 0.0
  %2183 = vmatprep.subr.mxu0 0.0
  %2184 = vmatpush2.msra.mxu0 0.0
  %2185 = vmatprep.subr.mxu0 0.0
  %2186 = vmatpush2.msra.mxu0 0.0
  %2187 = vmatprep.subr.mxu0 0.0
  %2188 = vmatpush2.msra.mxu0 0.0
  %2189 = vmatprep.subr.mxu0 0.0
  %2190 = vmatpush2.msra.mxu0 0.0
  %2191 = vmatprep.subr.mxu0 0.0
  %2192 = vmatpush2.msra.mxu0 0.0
  %2193 = vmatprep.subr.mxu0 0.0
  %2194 = vmatpush2.msra.mxu0 0.0
  %2195 = vmatprep.subr.mxu0 0.0
  %2196 = vmatpush2.msra.mxu0 0.0
  %2197 = vmatprep.subr.mxu0 0.0
  %2198 = vmatpush2.msra.mxu0 0.0
  %2199 = vmatprep.subr.mxu0 0.0
  %2200 = vmatpush2.msra.mxu0 0.0
  %2201 = vmatprep.subr.mxu0 0.0
  %2202 = vmatpush2.msra.mxu0 0.0
  %2203 = vmatprep.mubr.f32.mxu0 0.0
  %2204 = vmatmul.mubr.f32.gmra.mxu0 %v1682
  %v2205 = vpop.f32.mrf.mxu0
  %v2206 = vadd.f32 %v2138, %v2205
  %v2207 = vpop.f32.mrf.mxu0
  %2208 = vmatprep.mubr.f32.mxu0 0.0
  %2209 = vmatmul.mubr.f32.gmra.mxu0 %v1685
  %v2210 = vpop.f32.mrf.mxu0
  %v2211 = vadd.f32 %v2138, %v2210
  %v2212 = vpop.f32.mrf.mxu0
  %2213 = vdwg.mxu0
  %s2214 = scalar_lea.vmem %s4, 320
  %v2215 = vld [vmem:[%s2214] sm:$0xff]
  %v2216 = vld [vmem:[%s2214 + $0x8] sm:$0xff]
  %v2217 = vld [vmem:[%s2214 + $0x10] sm:$0xff]
  %v2218 = vld [vmem:[%s2214 + $0x18] sm:$0xff]
  %v2219 = vld [vmem:[%s3 + $0x33] sm:$0x1]
  %v2220 = vlaneseq
  %v2221 = vshrl.u32 %v2220, 7
  %v2222 = vsub.s32 0, %v2221
  %v2223 = vrot.slane %v2219, %v2222
  %2224 = vmatprep.subr.mxu0 0.0
  %2225 = vmatpush1.msra.mxu0 0.0
  %2226 = vmatprep.subr.mxu0 0.0
  %2227 = vmatpush1.msra.mxu0 0.0
  %2228 = vmatprep.subr.mxu0 0.0
  %2229 = vmatpush1.msra.mxu0 0.0
  %2230 = vmatprep.subr.mxu0 0.0
  %2231 = vmatpush1.msra.mxu0 0.0
  %2232 = vmatprep.subr.mxu0 0.0
  %2233 = vmatpush1.msra.mxu0 0.0
  %2234 = vmatprep.subr.mxu0 0.0
  %2235 = vmatpush1.msra.mxu0 0.0
  %2236 = vmatprep.subr.mxu0 0.0
  %2237 = vmatpush1.msra.mxu0 0.0
  %2238 = vmatprep.subr.mxu0 0.0
  %2239 = vmatpush1.msra.mxu0 0.0
  %2240 = vmatprep.subr.mxu0 0.0
  %2241 = vmatpush1.msra.mxu0 0.0
  %2242 = vmatprep.subr.mxu0 0.0
  %2243 = vmatpush1.msra.mxu0 0.0
  %2244 = vmatprep.subr.mxu0 0.0
  %2245 = vmatpush1.msra.mxu0 0.0
  %2246 = vmatprep.subr.mxu0 0.0
  %2247 = vmatpush1.msra.mxu0 0.0
  %2248 = vmatprep.subr.mxu0 0.0
  %2249 = vmatpush1.msra.mxu0 %v2218
  %2250 = vmatprep.subr.mxu0 0.0
  %2251 = vmatpush1.msra.mxu0 %v2217
  %2252 = vmatprep.subr.mxu0 0.0
  %2253 = vmatpush1.msra.mxu0 %v2216
  %2254 = vmatprep.subr.mxu0 0.0
  %2255 = vmatpush1.msra.mxu0 %v2215
  %2256 = vmatprep.subr.mxu0 0.0
  %2257 = vmatpush2.msra.mxu0 0.0
  %2258 = vmatprep.subr.mxu0 0.0
  %2259 = vmatpush2.msra.mxu0 0.0
  %2260 = vmatprep.subr.mxu0 0.0
  %2261 = vmatpush2.msra.mxu0 0.0
  %2262 = vmatprep.subr.mxu0 0.0
  %2263 = vmatpush2.msra.mxu0 0.0
  %2264 = vmatprep.subr.mxu0 0.0
  %2265 = vmatpush2.msra.mxu0 0.0
  %2266 = vmatprep.subr.mxu0 0.0
  %2267 = vmatpush2.msra.mxu0 0.0
  %2268 = vmatprep.subr.mxu0 0.0
  %2269 = vmatpush2.msra.mxu0 0.0
  %2270 = vmatprep.subr.mxu0 0.0
  %2271 = vmatpush2.msra.mxu0 0.0
  %2272 = vmatprep.subr.mxu0 0.0
  %2273 = vmatpush2.msra.mxu0 0.0
  %2274 = vmatprep.subr.mxu0 0.0
  %2275 = vmatpush2.msra.mxu0 0.0
  %2276 = vmatprep.subr.mxu0 0.0
  %2277 = vmatpush2.msra.mxu0 0.0
  %2278 = vmatprep.subr.mxu0 0.0
  %2279 = vmatpush2.msra.mxu0 0.0
  %2280 = vmatprep.subr.mxu0 0.0
  %2281 = vmatpush2.msra.mxu0 0.0
  %2282 = vmatprep.subr.mxu0 0.0
  %2283 = vmatpush2.msra.mxu0 0.0
  %2284 = vmatprep.subr.mxu0 0.0
  %2285 = vmatpush2.msra.mxu0 0.0
  %2286 = vmatprep.subr.mxu0 0.0
  %2287 = vmatpush2.msra.mxu0 0.0
  %2288 = vmatprep.mubr.f32.mxu0 0.0
  %2289 = vmatmul.mubr.f32.gmra.mxu0 %v1682
  %v2290 = vpop.f32.mrf.mxu0
  %v2291 = vadd.f32 %v2223, %v2290
  %v2292 = vpop.f32.mrf.mxu0
  %2293 = vmatprep.mubr.f32.mxu0 0.0
  %2294 = vmatmul.mubr.f32.gmra.mxu0 %v1685
  %v2295 = vpop.f32.mrf.mxu0
  %v2296 = vadd.f32 %v2223, %v2295
  %v2297 = vpop.f32.mrf.mxu0
  %2298 = vdwg.mxu0
  %s2299 = scalar_lea.vmem %s4, 352
  %v2300 = vld [vmem:[%s2299] sm:$0xff]
  %v2301 = vld [vmem:[%s2299 + $0x8] sm:$0xff]
  %v2302 = vld [vmem:[%s2299 + $0x10] sm:$0xff]
  %v2303 = vld [vmem:[%s2299 + $0x18] sm:$0xff]
  %v2304 = vld [vmem:[%s3 + $0x34] sm:$0x1]
  %v2305 = vlaneseq
  %v2306 = vshrl.u32 %v2305, 7
  %v2307 = vsub.s32 0, %v2306
  %v2308 = vrot.slane %v2304, %v2307
  %2309 = vmatprep.subr.mxu0 0.0
  %2310 = vmatpush1.msra.mxu0 0.0
  %2311 = vmatprep.subr.mxu0 0.0
  %2312 = vmatpush1.msra.mxu0 0.0
  %2313 = vmatprep.subr.mxu0 0.0
  %2314 = vmatpush1.msra.mxu0 0.0
  %2315 = vmatprep.subr.mxu0 0.0
  %2316 = vmatpush1.msra.mxu0 0.0
  %2317 = vmatprep.subr.mxu0 0.0
  %2318 = vmatpush1.msra.mxu0 0.0
  %2319 = vmatprep.subr.mxu0 0.0
  %2320 = vmatpush1.msra.mxu0 0.0
  %2321 = vmatprep.subr.mxu0 0.0
  %2322 = vmatpush1.msra.mxu0 0.0
  %2323 = vmatprep.subr.mxu0 0.0
  %2324 = vmatpush1.msra.mxu0 0.0
  %2325 = vmatprep.subr.mxu0 0.0
  %2326 = vmatpush1.msra.mxu0 0.0
  %2327 = vmatprep.subr.mxu0 0.0
  %2328 = vmatpush1.msra.mxu0 0.0
  %2329 = vmatprep.subr.mxu0 0.0
  %2330 = vmatpush1.msra.mxu0 0.0
  %2331 = vmatprep.subr.mxu0 0.0
  %2332 = vmatpush1.msra.mxu0 0.0
  %2333 = vmatprep.subr.mxu0 0.0
  %2334 = vmatpush1.msra.mxu0 %v2303
  %2335 = vmatprep.subr.mxu0 0.0
  %2336 = vmatpush1.msra.mxu0 %v2302
  %2337 = vmatprep.subr.mxu0 0.0
  %2338 = vmatpush1.msra.mxu0 %v2301
  %2339 = vmatprep.subr.mxu0 0.0
  %2340 = vmatpush1.msra.mxu0 %v2300
  %2341 = vmatprep.subr.mxu0 0.0
  %2342 = vmatpush2.msra.mxu0 0.0
  %2343 = vmatprep.subr.mxu0 0.0
  %2344 = vmatpush2.msra.mxu0 0.0
  %2345 = vmatprep.subr.mxu0 0.0
  %2346 = vmatpush2.msra.mxu0 0.0
  %2347 = vmatprep.subr.mxu0 0.0
  %2348 = vmatpush2.msra.mxu0 0.0
  %2349 = vmatprep.subr.mxu0 0.0
  %2350 = vmatpush2.msra.mxu0 0.0
  %2351 = vmatprep.subr.mxu0 0.0
  %2352 = vmatpush2.msra.mxu0 0.0
  %2353 = vmatprep.subr.mxu0 0.0
  %2354 = vmatpush2.msra.mxu0 0.0
  %2355 = vmatprep.subr.mxu0 0.0
  %2356 = vmatpush2.msra.mxu0 0.0
  %2357 = vmatprep.subr.mxu0 0.0
  %2358 = vmatpush2.msra.mxu0 0.0
  %2359 = vmatprep.subr.mxu0 0.0
  %2360 = vmatpush2.msra.mxu0 0.0
  %2361 = vmatprep.subr.mxu0 0.0
  %2362 = vmatpush2.msra.mxu0 0.0
  %2363 = vmatprep.subr.mxu0 0.0
  %2364 = vmatpush2.msra.mxu0 0.0
  %2365 = vmatprep.subr.mxu0 0.0
  %2366 = vmatpush2.msra.mxu0 0.0
  %2367 = vmatprep.subr.mxu0 0.0
  %2368 = vmatpush2.msra.mxu0 0.0
  %2369 = vmatprep.subr.mxu0 0.0
  %2370 = vmatpush2.msra.mxu0 0.0
  %2371 = vmatprep.subr.mxu0 0.0
  %2372 = vmatpush2.msra.mxu0 0.0
  %2373 = vmatprep.mubr.f32.mxu0 0.0
  %2374 = vmatmul.mubr.f32.gmra.mxu0 %v1682
  %v2375 = vpop.f32.mrf.mxu0
  %v2376 = vadd.f32 %v2308, %v2375
  %v2377 = vpop.f32.mrf.mxu0
  %2378 = vmatprep.mubr.f32.mxu0 0.0
  %2379 = vmatmul.mubr.f32.gmra.mxu0 %v1685
  %v2380 = vpop.f32.mrf.mxu0
  %v2381 = vadd.f32 %v2308, %v2380
  %v2382 = vpop.f32.mrf.mxu0
  %2383 = vdwg.mxu0
  %v2385 = vsel %vm75, %v2206, 0
  %v2388 = vsel %vm75, %v2211, 0
  %v2391 = vsel %vm75, %v2291, 0
  %v2394 = vsel %vm75, %v2296, 0
  %2396 = vmatprep.subr.mxu0 0.0
  %2397 = vmatpush1.xpose.msra.mxu0 0.0
  %2398 = vmatprep.subr.mxu0 0.0
  %2399 = vmatpush1.xpose.msra.mxu0 0.0
  %2400 = vmatprep.subr.mxu0 0.0
  %2401 = vmatpush1.xpose.msra.mxu0 0.0
  %2402 = vmatprep.subr.mxu0 0.0
  %2403 = vmatpush1.xpose.msra.mxu0 0.0
  %2404 = vmatprep.subr.mxu0 0.0
  %2405 = vmatpush1.xpose.msra.mxu0 0.0
  %2406 = vmatprep.subr.mxu0 0.0
  %2407 = vmatpush1.xpose.msra.mxu0 0.0
  %2408 = vmatprep.subr.mxu0 0.0
  %2409 = vmatpush1.xpose.msra.mxu0 0.0
  %2410 = vmatprep.subr.mxu0 0.0
  %2411 = vmatpush1.xpose.msra.mxu0 0.0
  %2412 = vmatprep.subr.mxu0 0.0
  %2413 = vmatpush1.xpose.msra.mxu0 0.0
  %2414 = vmatprep.subr.mxu0 0.0
  %2415 = vmatpush1.xpose.msra.mxu0 0.0
  %2416 = vmatprep.subr.mxu0 0.0
  %2417 = vmatpush1.xpose.msra.mxu0 0.0
  %2418 = vmatprep.subr.mxu0 0.0
  %2419 = vmatpush1.xpose.msra.mxu0 0.0
  %2420 = vmatprep.subr.mxu0 0.0
  %2421 = vmatpush1.xpose.msra.mxu0 0.0
  %2422 = vmatprep.subr.mxu0 0.0
  %2423 = vmatpush1.xpose.msra.mxu0 0.0
  %2424 = vmatprep.subr.mxu0 0.0
  %2425 = vmatpush1.xpose.msra.mxu0 %v2394
  %2426 = vmatprep.subr.mxu0 0.0
  %2427 = vmatpush1.xpose.msra.mxu0 %v2391
  %2428 = vmatprep.subr.mxu0 0.0
  %2429 = vmatpush2.xpose.msra.mxu0 0.0
  %2430 = vmatprep.subr.mxu0 0.0
  %2431 = vmatpush2.xpose.msra.mxu0 0.0
  %2432 = vmatprep.subr.mxu0 0.0
  %2433 = vmatpush2.xpose.msra.mxu0 0.0
  %2434 = vmatprep.subr.mxu0 0.0
  %2435 = vmatpush2.xpose.msra.mxu0 0.0
  %2436 = vmatprep.subr.mxu0 0.0
  %2437 = vmatpush2.xpose.msra.mxu0 0.0
  %2438 = vmatprep.subr.mxu0 0.0
  %2439 = vmatpush2.xpose.msra.mxu0 0.0
  %2440 = vmatprep.subr.mxu0 0.0
  %2441 = vmatpush2.xpose.msra.mxu0 0.0
  %2442 = vmatprep.subr.mxu0 0.0
  %2443 = vmatpush2.xpose.msra.mxu0 0.0
  %2444 = vmatprep.subr.mxu0 0.0
  %2445 = vmatpush2.xpose.msra.mxu0 0.0
  %2446 = vmatprep.subr.mxu0 0.0
  %2447 = vmatpush2.xpose.msra.mxu0 0.0
  %2448 = vmatprep.subr.mxu0 0.0
  %2449 = vmatpush2.xpose.msra.mxu0 0.0
  %2450 = vmatprep.subr.mxu0 0.0
  %2451 = vmatpush2.xpose.msra.mxu0 0.0
  %2452 = vmatprep.subr.mxu0 0.0
  %2453 = vmatpush2.xpose.msra.mxu0 0.0
  %2454 = vmatprep.subr.mxu0 0.0
  %2455 = vmatpush2.xpose.msra.mxu0 0.0
  %2456 = vmatprep.subr.mxu0 0.0
  %2457 = vmatpush2.xpose.msra.mxu0 0.0
  %2458 = vmatprep.subr.mxu0 0.0
  %2459 = vmatpush2.xpose.msra.mxu0 0.0
  %2460 = vmatprep.mubr.f32.mxu0 0.0
  %2461 = vmatmul.mubr.f32.gmra.mxu0 %v2385
  %v2462 = vpop.f32.mrf.mxu0
  %v2463 = vadd.f32 0.0, %v2462
  %v2464 = vpop.f32.mrf.mxu0
  %2465 = vmatprep.mubr.f32.mxu0 0.0
  %2466 = vmatmul.mubr.f32.gmra.mxu0 %v2388
  %v2467 = vpop.f32.mrf.mxu0
  %v2468 = vadd.f32 0.0, %v2467
  %v2469 = vpop.f32.mrf.mxu0
  %2470 = vdwg.mxu0
  %v2471 = vmul.f32 %v2463, 0.25
  %v2472 = vmul.f32 %v2468, 0.25
  %v2473 = vadd.f32 %v2471, %v305
  %v2474 = vadd.f32 %v2472, %v306
  %v2475 = vsel %vm75, %v2473, -inf
  %2476 = vmax.xlane.f32.xlu0 %v2475
  %v2477 = vpop.xlane.xlu0 %2476
  %v2478 = vsel %vm75, %v2474, -inf
  %2479 = vmax.xlane.f32.xlu0 %v2478
  %v2480 = vpop.xlane.xlu0 %2479
  %v2481 = vsub.f32 %v2473, %v2477
  %v2482 = vsub.f32 %v2474, %v2480
  %v2483 = vmul.f32 %v2481, 1.442695
  %v2484 = vpow.pop %v2483
  %v2485 = vmul.f32 %v2482, 1.442695
  %v2486 = vpow.pop %v2485
  %v2487 = vsel %vm75, %v2484, 0.0
  %2488 = vadd.xlane.f32.xlu0 %v2487
  %v2489 = vpop.xlane.xlu0 %2488
  %v2490 = vsel %vm75, %v2486, 0.0
  %2491 = vadd.xlane.f32.xlu0 %v2490
  %v2492 = vpop.xlane.xlu0 %2491
  %v2493 = vrcp.pop %v2489
  %v2494 = vmul.f32 %v2484, %v2493
  %v2495 = vrcp.pop %v2492
  %v2496 = vmul.f32 %v2486, %v2495
  %v2498 = vsel %vm75, %v2494, 0
  %v2501 = vsel %vm75, %v2496, 0
  %2503 = vmatprep.subr.mxu0 0.0
  %2504 = vmatpush1.msra.mxu0 0.0
  %2505 = vmatprep.subr.mxu0 0.0
  %2506 = vmatpush1.msra.mxu0 0.0
  %2507 = vmatprep.subr.mxu0 0.0
  %2508 = vmatpush1.msra.mxu0 0.0
  %2509 = vmatprep.subr.mxu0 0.0
  %2510 = vmatpush1.msra.mxu0 0.0
  %2511 = vmatprep.subr.mxu0 0.0
  %2512 = vmatpush1.msra.mxu0 0.0
  %2513 = vmatprep.subr.mxu0 0.0
  %2514 = vmatpush1.msra.mxu0 0.0
  %2515 = vmatprep.subr.mxu0 0.0
  %2516 = vmatpush1.msra.mxu0 0.0
  %2517 = vmatprep.subr.mxu0 0.0
  %2518 = vmatpush1.msra.mxu0 0.0
  %2519 = vmatprep.subr.mxu0 0.0
  %2520 = vmatpush1.msra.mxu0 0.0
  %2521 = vmatprep.subr.mxu0 0.0
  %2522 = vmatpush1.msra.mxu0 0.0
  %2523 = vmatprep.subr.mxu0 0.0
  %2524 = vmatpush1.msra.mxu0 0.0
  %2525 = vmatprep.subr.mxu0 0.0
  %2526 = vmatpush1.msra.mxu0 0.0
  %2527 = vmatprep.subr.mxu0 0.0
  %2528 = vmatpush1.msra.mxu0 0.0
  %2529 = vmatprep.subr.mxu0 0.0
  %2530 = vmatpush1.msra.mxu0 0.0
  %2531 = vmatprep.subr.mxu0 0.0
  %2532 = vmatpush1.msra.mxu0 %v2381
  %2533 = vmatprep.subr.mxu0 0.0
  %2534 = vmatpush1.msra.mxu0 %v2376
  %2535 = vmatprep.subr.mxu0 0.0
  %2536 = vmatpush2.msra.mxu0 0.0
  %2537 = vmatprep.subr.mxu0 0.0
  %2538 = vmatpush2.msra.mxu0 0.0
  %2539 = vmatprep.subr.mxu0 0.0
  %2540 = vmatpush2.msra.mxu0 0.0
  %2541 = vmatprep.subr.mxu0 0.0
  %2542 = vmatpush2.msra.mxu0 0.0
  %2543 = vmatprep.subr.mxu0 0.0
  %2544 = vmatpush2.msra.mxu0 0.0
  %2545 = vmatprep.subr.mxu0 0.0
  %2546 = vmatpush2.msra.mxu0 0.0
  %2547 = vmatprep.subr.mxu0 0.0
  %2548 = vmatpush2.msra.mxu0 0.0
  %2549 = vmatprep.subr.mxu0 0.0
  %2550 = vmatpush2.msra.mxu0 0.0
  %2551 = vmatprep.subr.mxu0 0.0
  %2552 = vmatpush2.msra.mxu0 0.0
  %2553 = vmatprep.subr.mxu0 0.0
  %2554 = vmatpush2.msra.mxu0 0.0
  %2555 = vmatprep.subr.mxu0 0.0
  %2556 = vmatpush2.msra.mxu0 0.0
  %2557 = vmatprep.subr.mxu0 0.0
  %2558 = vmatpush2.msra.mxu0 0.0
  %2559 = vmatprep.subr.mxu0 0.0
  %2560 = vmatpush2.msra.mxu0 0.0
  %2561 = vmatprep.subr.mxu0 0.0
  %2562 = vmatpush2.msra.mxu0 0.0
  %2563 = vmatprep.subr.mxu0 0.0
  %2564 = vmatpush2.msra.mxu0 0.0
  %2565 = vmatprep.subr.mxu0 0.0
  %2566 = vmatpush2.msra.mxu0 0.0
  %2567 = vmatprep.mubr.f32.mxu0 0.0
  %2568 = vmatmul.mubr.f32.gmra.mxu0 %v2498
  %v2569 = vpop.f32.mrf.mxu0
  %v2570 = vadd.f32 0.0, %v2569
  %v2571 = vpop.f32.mrf.mxu0
  %2572 = vmatprep.mubr.f32.mxu0 0.0
  %2573 = vmatmul.mubr.f32.gmra.mxu0 %v2501
  %v2574 = vpop.f32.mrf.mxu0
  %v2575 = vadd.f32 0.0, %v2574
  %v2576 = vpop.f32.mrf.mxu0
  %2577 = vdwg.mxu0
  %s2578 = scalar_lea.vmem %s5, 48
  %v2579 = vld [vmem:[%s2578] sm:$0xff]
  %v2580 = vld [vmem:[%s2578 + $0x8] sm:$0xff]
  %v2582 = vsel %vm75, %v2570, 0
  %v2585 = vsel %vm75, %v2575, 0
  %2587 = vmatprep.subr.mxu0 0.0
  %2588 = vmatpush1.msra.mxu0 0.0
  %2589 = vmatprep.subr.mxu0 0.0
  %2590 = vmatpush1.msra.mxu0 0.0
  %2591 = vmatprep.subr.mxu0 0.0
  %2592 = vmatpush1.msra.mxu0 0.0
  %2593 = vmatprep.subr.mxu0 0.0
  %2594 = vmatpush1.msra.mxu0 0.0
  %2595 = vmatprep.subr.mxu0 0.0
  %2596 = vmatpush1.msra.mxu0 0.0
  %2597 = vmatprep.subr.mxu0 0.0
  %2598 = vmatpush1.msra.mxu0 0.0
  %2599 = vmatprep.subr.mxu0 0.0
  %2600 = vmatpush1.msra.mxu0 0.0
  %2601 = vmatprep.subr.mxu0 0.0
  %2602 = vmatpush1.msra.mxu0 0.0
  %2603 = vmatprep.subr.mxu0 0.0
  %2604 = vmatpush1.msra.mxu0 0.0
  %2605 = vmatprep.subr.mxu0 0.0
  %2606 = vmatpush1.msra.mxu0 0.0
  %2607 = vmatprep.subr.mxu0 0.0
  %2608 = vmatpush1.msra.mxu0 0.0
  %2609 = vmatprep.subr.mxu0 0.0
  %2610 = vmatpush1.msra.mxu0 0.0
  %2611 = vmatprep.subr.mxu0 0.0
  %2612 = vmatpush1.msra.mxu0 0.0
  %2613 = vmatprep.subr.mxu0 0.0
  %2614 = vmatpush1.msra.mxu0 0.0
  %2615 = vmatprep.subr.mxu0 0.0
  %2616 = vmatpush1.msra.mxu0 %v2580
  %2617 = vmatprep.subr.mxu0 0.0
  %2618 = vmatpush1.msra.mxu0 %v2579
  %2619 = vmatprep.subr.mxu0 0.0
  %2620 = vmatpush2.msra.mxu0 0.0
  %2621 = vmatprep.subr.mxu0 0.0
  %2622 = vmatpush2.msra.mxu0 0.0
  %2623 = vmatprep.subr.mxu0 0.0
  %2624 = vmatpush2.msra.mxu0 0.0
  %2625 = vmatprep.subr.mxu0 0.0
  %2626 = vmatpush2.msra.mxu0 0.0
  %2627 = vmatprep.subr.mxu0 0.0
  %2628 = vmatpush2.msra.mxu0 0.0
  %2629 = vmatprep.subr.mxu0 0.0
  %2630 = vmatpush2.msra.mxu0 0.0
  %2631 = vmatprep.subr.mxu0 0.0
  %2632 = vmatpush2.msra.mxu0 0.0
  %2633 = vmatprep.subr.mxu0 0.0
  %2634 = vmatpush2.msra.mxu0 0.0
  %2635 = vmatprep.subr.mxu0 0.0
  %2636 = vmatpush2.msra.mxu0 0.0
  %2637 = vmatprep.subr.mxu0 0.0
  %2638 = vmatpush2.msra.mxu0 0.0
  %2639 = vmatprep.subr.mxu0 0.0
  %2640 = vmatpush2.msra.mxu0 0.0
  %2641 = vmatprep.subr.mxu0 0.0
  %2642 = vmatpush2.msra.mxu0 0.0
  %2643 = vmatprep.subr.mxu0 0.0
  %2644 = vmatpush2.msra.mxu0 0.0
  %2645 = vmatprep.subr.mxu0 0.0
  %2646 = vmatpush2.msra.mxu0 0.0
  %2647 = vmatprep.subr.mxu0 0.0
  %2648 = vmatpush2.msra.mxu0 0.0
  %2649 = vmatprep.subr.mxu0 0.0
  %2650 = vmatpush2.msra.mxu0 0.0
  %2651 = vmatprep.mubr.f32.mxu0 0.0
  %2652 = vmatmul.mubr.f32.gmra.mxu0 %v2582
  %v2653 = vpop.f32.mrf.mxu0
  %v2654 = vadd.f32 0.0, %v2653
  %v2655 = vpop.f32.mrf.mxu0
  %2656 = vmatprep.mubr.f32.mxu0 0.0
  %2657 = vmatmul.mubr.f32.gmra.mxu0 %v2585
  %v2658 = vpop.f32.mrf.mxu0
  %v2659 = vadd.f32 0.0, %v2658
  %v2660 = vpop.f32.mrf.mxu0
  %2661 = vdwg.mxu0
  %v2663 = vsel %vm75, %v2118, 0
  %v2666 = vsel %vm75, %v2123, 0
  %2668 = vmatprep.subr.mxu0 0.0
  %2669 = vmatpush1.msra.mxu0 0.0
  %2670 = vmatprep.subr.mxu0 0.0
  %2671 = vmatpush1.msra.mxu0 0.0
  %2672 = vmatprep.subr.mxu0 0.0
  %2673 = vmatpush1.msra.mxu0 0.0
  %2674 = vmatprep.subr.mxu0 0.0
  %2675 = vmatpush1.msra.mxu0 0.0
  %2676 = vmatprep.subr.mxu0 0.0
  %2677 = vmatpush1.msra.mxu0 0.0
  %2678 = vmatprep.subr.mxu0 0.0
  %2679 = vmatpush1.msra.mxu0 0.0
  %2680 = vmatprep.subr.mxu0 0.0
  %2681 = vmatpush1.msra.mxu0 0.0
  %2682 = vmatprep.subr.mxu0 0.0
  %2683 = vmatpush1.msra.mxu0 0.0
  %2684 = vmatprep.subr.mxu0 0.0
  %2685 = vmatpush1.msra.mxu0 0.0
  %2686 = vmatprep.subr.mxu0 0.0
  %2687 = vmatpush1.msra.mxu0 0.0
  %2688 = vmatprep.subr.mxu0 0.0
  %2689 = vmatpush1.msra.mxu0 0.0
  %2690 = vmatprep.subr.mxu0 0.0
  %2691 = vmatpush1.msra.mxu0 0.0
  %2692 = vmatprep.subr.mxu0 0.0
  %2693 = vmatpush1.msra.mxu0 0.0
  %2694 = vmatprep.subr.mxu0 0.0
  %2695 = vmatpush1.msra.mxu0 0.0
  %2696 = vmatprep.subr.mxu0 0.0
  %2697 = vmatpush1.msra.mxu0 %v2128
  %2698 = vmatprep.subr.mxu0 0.0
  %2699 = vmatpush1.msra.mxu0 %v2127
  %2700 = vmatprep.subr.mxu0 0.0
  %2701 = vmatpush2.msra.mxu0 0.0
  %2702 = vmatprep.subr.mxu0 0.0
  %2703 = vmatpush2.msra.mxu0 0.0
  %2704 = vmatprep.subr.mxu0 0.0
  %2705 = vmatpush2.msra.mxu0 0.0
  %2706 = vmatprep.subr.mxu0 0.0
  %2707 = vmatpush2.msra.mxu0 0.0
  %2708 = vmatprep.subr.mxu0 0.0
  %2709 = vmatpush2.msra.mxu0 0.0
  %2710 = vmatprep.subr.mxu0 0.0
  %2711 = vmatpush2.msra.mxu0 0.0
  %2712 = vmatprep.subr.mxu0 0.0
  %2713 = vmatpush2.msra.mxu0 0.0
  %2714 = vmatprep.subr.mxu0 0.0
  %2715 = vmatpush2.msra.mxu0 0.0
  %2716 = vmatprep.subr.mxu0 0.0
  %2717 = vmatpush2.msra.mxu0 0.0
  %2718 = vmatprep.subr.mxu0 0.0
  %2719 = vmatpush2.msra.mxu0 0.0
  %2720 = vmatprep.subr.mxu0 0.0
  %2721 = vmatpush2.msra.mxu0 0.0
  %2722 = vmatprep.subr.mxu0 0.0
  %2723 = vmatpush2.msra.mxu0 0.0
  %2724 = vmatprep.subr.mxu0 0.0
  %2725 = vmatpush2.msra.mxu0 0.0
  %2726 = vmatprep.subr.mxu0 0.0
  %2727 = vmatpush2.msra.mxu0 0.0
  %2728 = vmatprep.subr.mxu0 0.0
  %2729 = vmatpush2.msra.mxu0 0.0
  %2730 = vmatprep.subr.mxu0 0.0
  %2731 = vmatpush2.msra.mxu0 0.0
  %2732 = vmatprep.mubr.f32.mxu0 0.0
  %2733 = vmatmul.mubr.f32.gmra.mxu0 %v2663
  %v2734 = vpop.f32.mrf.mxu0
  %v2735 = vadd.f32 %v2654, %v2734
  %v2736 = vpop.f32.mrf.mxu0
  %2737 = vmatprep.mubr.f32.mxu0 0.0
  %2738 = vmatmul.mubr.f32.gmra.mxu0 %v2666
  %v2739 = vpop.f32.mrf.mxu0
  %v2740 = vadd.f32 %v2659, %v2739
  %v2741 = vpop.f32.mrf.mxu0
  %2742 = vdwg.mxu0
  %v2743 = vld [vmem:[%s3 + $0x28] sm:$0x1]
  %v2744 = vlaneseq
  %v2745 = vshrl.u32 %v2744, 7
  %v2746 = vsub.s32 0, %v2745
  %v2747 = vrot.slane %v2743, %v2746
  %v2748 = vadd.f32 %v2735, %v2747
  %v2749 = vadd.f32 %v2740, %v2747
  %v2750 = vadd.f32 %v2748, %v1669
  %v2751 = vadd.f32 %v2749, %v1670
  %v2752 = vld [vmem:[%s3 + $0x2b] sm:$0x1]
  %v2753 = vld [vmem:[%s3 + $0x2c] sm:$0x1]
  %v2754 = vsel %vm252, %v2750, 0.0
  %2755 = vadd.xlane.f32.xlu0 %v2754
  %v2756 = vpop.xlane.xlu0 %2755
  %v2757 = vsel %vm252, %v2751, 0.0
  %2758 = vadd.xlane.f32.xlu0 %v2757
  %v2759 = vpop.xlane.xlu0 %2758
  %v2760 = vmul.f32 %v2756, %v259
  %v2761 = vmul.f32 %v2759, %v259
  %v2762 = vsub.f32 %v2750, %v2760
  %v2763 = vsub.f32 %v2751, %v2761
  %v2764 = vmul.f32 %v2762, %v2762
  %v2765 = vmul.f32 %v2763, %v2763
  %v2766 = vsel %vm252, %v2764, 0.0
  %2767 = vadd.xlane.f32.xlu0 %v2766
  %v2768 = vpop.xlane.xlu0 %2767
  %v2769 = vsel %vm252, %v2765, 0.0
  %2770 = vadd.xlane.f32.xlu0 %v2769
  %v2771 = vpop.xlane.xlu0 %2770
  %v2772 = vmul.f32 %v2768, %v259
  %v2773 = vmul.f32 %v2771, %v259
  %v2774 = vadd.f32 %v2772, 1e-12
  %v2775 = vadd.f32 %v2773, 1e-12
  %v2776 = vrsqrt.pop %v2774
  %v2777 = vrsqrt.pop %v2775
  %v2778 = vmul.f32 %v2762, %v2776
  %v2779 = vmul.f32 %v2763, %v2777
  %v2780 = vlaneseq
  %v2781 = vshrl.u32 %v2780, 7
  %v2782 = vsub.s32 0, %v2781
  %v2783 = vrot.slane %v2752, %v2782
  %v2784 = vmul.f32 %v2778, %v2783
  %v2785 = vmul.f32 %v2779, %v2783
  %v2786 = vlaneseq
  %v2787 = vshrl.u32 %v2786, 7
  %v2788 = vsub.s32 0, %v2787
  %v2789 = vrot.slane %v2753, %v2788
  %v2790 = vadd.f32 %v2784, %v2789
  %v2791 = vadd.f32 %v2785, %v2789
  %s2792 = scalar_lea.vmem %s6, 32
  %v2793 = vld [vmem:[%s2792] sm:$0xff]
  %v2794 = vld [vmem:[%s2792 + $0x8] sm:$0xff]
  %v2795 = vld [vmem:[%s2792 + $0x10] sm:$0xff]
  %v2796 = vld [vmem:[%s2792 + $0x18] sm:$0xff]
  %v2797 = vld [vmem:[%s3 + $0x29] sm:$0x1]
  %v2798 = vlaneseq
  %v2799 = vshrl.u32 %v2798, 7
  %v2800 = vsub.s32 0, %v2799
  %v2801 = vrot.slane %v2797, %v2800
  %v2803 = vsel %vm252, %v2790, 0
  %v2806 = vsel %vm252, %v2791, 0
  %2808 = vmatprep.subr.mxu0 0.0
  %2809 = vmatpush1.msra.mxu0 0.0
  %2810 = vmatprep.subr.mxu0 0.0
  %2811 = vmatpush1.msra.mxu0 0.0
  %2812 = vmatprep.subr.mxu0 0.0
  %2813 = vmatpush1.msra.mxu0 0.0
  %2814 = vmatprep.subr.mxu0 0.0
  %2815 = vmatpush1.msra.mxu0 0.0
  %2816 = vmatprep.subr.mxu0 0.0
  %2817 = vmatpush1.msra.mxu0 0.0
  %2818 = vmatprep.subr.mxu0 0.0
  %2819 = vmatpush1.msra.mxu0 0.0
  %2820 = vmatprep.subr.mxu0 0.0
  %2821 = vmatpush1.msra.mxu0 0.0
  %2822 = vmatprep.subr.mxu0 0.0
  %2823 = vmatpush1.msra.mxu0 0.0
  %2824 = vmatprep.subr.mxu0 0.0
  %2825 = vmatpush1.msra.mxu0 0.0
  %2826 = vmatprep.subr.mxu0 0.0
  %2827 = vmatpush1.msra.mxu0 0.0
  %2828 = vmatprep.subr.mxu0 0.0
  %2829 = vmatpush1.msra.mxu0 0.0
  %2830 = vmatprep.subr.mxu0 0.0
  %2831 = vmatpush1.msra.mxu0 0.0
  %2832 = vmatprep.subr.mxu0 0.0
  %2833 = vmatpush1.msra.mxu0 %v2796
  %2834 = vmatprep.subr.mxu0 0.0
  %2835 = vmatpush1.msra.mxu0 %v2795
  %2836 = vmatprep.subr.mxu0 0.0
  %2837 = vmatpush1.msra.mxu0 %v2794
  %2838 = vmatprep.subr.mxu0 0.0
  %2839 = vmatpush1.msra.mxu0 %v2793
  %2840 = vmatprep.subr.mxu0 0.0
  %2841 = vmatpush2.msra.mxu0 0.0
  %2842 = vmatprep.subr.mxu0 0.0
  %2843 = vmatpush2.msra.mxu0 0.0
  %2844 = vmatprep.subr.mxu0 0.0
  %2845 = vmatpush2.msra.mxu0 0.0
  %2846 = vmatprep.subr.mxu0 0.0
  %2847 = vmatpush2.msra.mxu0 0.0
  %2848 = vmatprep.subr.mxu0 0.0
  %2849 = vmatpush2.msra.mxu0 0.0
  %2850 = vmatprep.subr.mxu0 0.0
  %2851 = vmatpush2.msra.mxu0 0.0
  %2852 = vmatprep.subr.mxu0 0.0
  %2853 = vmatpush2.msra.mxu0 0.0
  %2854 = vmatprep.subr.mxu0 0.0
  %2855 = vmatpush2.msra.mxu0 0.0
  %2856 = vmatprep.subr.mxu0 0.0
  %2857 = vmatpush2.msra.mxu0 0.0
  %2858 = vmatprep.subr.mxu0 0.0
  %2859 = vmatpush2.msra.mxu0 0.0
  %2860 = vmatprep.subr.mxu0 0.0
  %2861 = vmatpush2.msra.mxu0 0.0
  %2862 = vmatprep.subr.mxu0 0.0
  %2863 = vmatpush2.msra.mxu0 0.0
  %2864 = vmatprep.subr.mxu0 0.0
  %2865 = vmatpush2.msra.mxu0 0.0
  %2866 = vmatprep.subr.mxu0 0.0
  %2867 = vmatpush2.msra.mxu0 0.0
  %2868 = vmatprep.subr.mxu0 0.0
  %2869 = vmatpush2.msra.mxu0 0.0
  %2870 = vmatprep.subr.mxu0 0.0
  %2871 = vmatpush2.msra.mxu0 0.0
  %2872 = vmatprep.mubr.f32.mxu0 0.0
  %2873 = vmatmul.mubr.f32.gmra.mxu0 %v2803
  %v2874 = vpop.f32.mrf.mxu0
  %v2875 = vadd.f32 %v2801, %v2874
  %v2876 = vpop.f32.mrf.mxu0
  %2877 = vmatprep.mubr.f32.mxu0 0.0
  %2878 = vmatmul.mubr.f32.gmra.mxu0 %v2806
  %v2879 = vpop.f32.mrf.mxu0
  %v2880 = vadd.f32 %v2801, %v2879
  %v2881 = vpop.f32.mrf.mxu0
  %2882 = vdwg.mxu0
  %v2883 = vmul.f32 %v2875, 0.5
  %v2884 = vmul.f32 %v2880, 0.5
  %v2885 = vmul.f32 %v2875, 0.044715
  %v2886 = vmul.f32 %v2880, 0.044715
  %v2887 = vmul.f32 %v2885, %v2875
  %v2888 = vmul.f32 %v2886, %v2880
  %v2889 = vmul.f32 %v2887, %v2875
  %v2890 = vmul.f32 %v2888, %v2880
  %v2891 = vadd.f32 %v2875, %v2889
  %v2892 = vadd.f32 %v2880, %v2890
  %v2893 = vmul.f32 %v2891, 0.7978846
  %v2894 = vmul.f32 %v2892, 0.7978846
  %v2895 = vtanh.pop %v2893
  %v2896 = vtanh.pop %v2894
  %v2897 = vadd.f32 %v2895, 1.0
  %v2898 = vadd.f32 %v2896, 1.0
  %v2899 = vmul.f32 %v2883, %v2897
  %v2900 = vmul.f32 %v2884, %v2898
  %s2901 = scalar_lea.vmem %s7, 64
  %v2902 = vld [vmem:[%s2901] sm:$0xff]
  %v2903 = vld [vmem:[%s2901 + $0x8] sm:$0xff]
  %v2904 = vld [vmem:[%s2901 + $0x10] sm:$0xff]
  %v2905 = vld [vmem:[%s2901 + $0x18] sm:$0xff]
  %v2906 = vld [vmem:[%s2901 + $0x20] sm:$0xff]
  %v2907 = vld [vmem:[%s2901 + $0x28] sm:$0xff]
  %v2908 = vld [vmem:[%s2901 + $0x30] sm:$0xff]
  %v2909 = vld [vmem:[%s2901 + $0x38] sm:$0xff]
  %v2910 = vld [vmem:[%s3 + $0x2a] sm:$0x1]
  %v2911 = vlaneseq
  %v2912 = vshrl.u32 %v2911, 7
  %v2913 = vsub.s32 0, %v2912
  %v2914 = vrot.slane %v2910, %v2913
  %v2916 = vsel %vm1547, %v2899, 0
  %v2919 = vsel %vm1547, %v2900, 0
  %2921 = vmatprep.subr.mxu0 0.0
  %2922 = vmatpush1.msra.mxu0 0.0
  %2923 = vmatprep.subr.mxu0 0.0
  %2924 = vmatpush1.msra.mxu0 0.0
  %2925 = vmatprep.subr.mxu0 0.0
  %2926 = vmatpush1.msra.mxu0 0.0
  %2927 = vmatprep.subr.mxu0 0.0
  %2928 = vmatpush1.msra.mxu0 0.0
  %2929 = vmatprep.subr.mxu0 0.0
  %2930 = vmatpush1.msra.mxu0 0.0
  %2931 = vmatprep.subr.mxu0 0.0
  %2932 = vmatpush1.msra.mxu0 0.0
  %2933 = vmatprep.subr.mxu0 0.0
  %2934 = vmatpush1.msra.mxu0 0.0
  %2935 = vmatprep.subr.mxu0 0.0
  %2936 = vmatpush1.msra.mxu0 0.0
  %2937 = vmatprep.subr.mxu0 0.0
  %2938 = vmatpush1.msra.mxu0 %v2909
  %2939 = vmatprep.subr.mxu0 0.0
  %2940 = vmatpush1.msra.mxu0 %v2908
  %2941 = vmatprep.subr.mxu0 0.0
  %2942 = vmatpush1.msra.mxu0 %v2907
  %2943 = vmatprep.subr.mxu0 0.0
  %2944 = vmatpush1.msra.mxu0 %v2906
  %2945 = vmatprep.subr.mxu0 0.0
  %2946 = vmatpush1.msra.mxu0 %v2905
  %2947 = vmatprep.subr.mxu0 0.0
  %2948 = vmatpush1.msra.mxu0 %v2904
  %2949 = vmatprep.subr.mxu0 0.0
  %2950 = vmatpush1.msra.mxu0 %v2903
  %2951 = vmatprep.subr.mxu0 0.0
  %2952 = vmatpush1.msra.mxu0 %v2902
  %2953 = vmatprep.subr.mxu0 0.0
  %2954 = vmatpush2.msra.mxu0 0.0
  %2955 = vmatprep.subr.mxu0 0.0
  %2956 = vmatpush2.msra.mxu0 0.0
  %2957 = vmatprep.subr.mxu0 0.0
  %2958 = vmatpush2.msra.mxu0 0.0
  %2959 = vmatprep.subr.mxu0 0.0
  %2960 = vmatpush2.msra.mxu0 0.0
  %2961 = vmatprep.subr.mxu0 0.0
  %2962 = vmatpush2.msra.mxu0 0.0
  %2963 = vmatprep.subr.mxu0 0.0
  %2964 = vmatpush2.msra.mxu0 0.0
  %2965 = vmatprep.subr.mxu0 0.0
  %2966 = vmatpush2.msra.mxu0 0.0
  %2967 = vmatprep.subr.mxu0 0.0
  %2968 = vmatpush2.msra.mxu0 0.0
  %2969 = vmatprep.subr.mxu0 0.0
  %2970 = vmatpush2.msra.mxu0 0.0
  %2971 = vmatprep.subr.mxu0 0.0
  %2972 = vmatpush2.msra.mxu0 0.0
  %2973 = vmatprep.subr.mxu0 0.0
  %2974 = vmatpush2.msra.mxu0 0.0
  %2975 = vmatprep.subr.mxu0 0.0
  %2976 = vmatpush2.msra.mxu0 0.0
  %2977 = vmatprep.subr.mxu0 0.0
  %2978 = vmatpush2.msra.mxu0 0.0
  %2979 = vmatprep.subr.mxu0 0.0
  %2980 = vmatpush2.msra.mxu0 0.0
  %2981 = vmatprep.subr.mxu0 0.0
  %2982 = vmatpush2.msra.mxu0 0.0
  %2983 = vmatprep.subr.mxu0 0.0
  %2984 = vmatpush2.msra.mxu0 0.0
  %2985 = vmatprep.mubr.f32.mxu0 0.0
  %2986 = vmatmul.mubr.f32.gmra.mxu0 %v2916
  %v2987 = vpop.f32.mrf.mxu0
  %v2988 = vadd.f32 %v2914, %v2987
  %v2989 = vpop.f32.mrf.mxu0
  %2990 = vmatprep.mubr.f32.mxu0 0.0
  %2991 = vmatmul.mubr.f32.gmra.mxu0 %v2919
  %v2992 = vpop.f32.mrf.mxu0
  %v2993 = vadd.f32 %v2914, %v2992
  %v2994 = vpop.f32.mrf.mxu0
  %2995 = vdwg.mxu0
  %v2996 = vadd.f32 %v2988, %v2790
  %v2997 = vadd.f32 %v2993, %v2791
  %v2998 = vld [vmem:[%s3 + $0x2d] sm:$0x1]
  %v2999 = vld [vmem:[%s3 + $0x2e] sm:$0x1]
  %v3000 = vsel %vm252, %v2996, 0.0
  %3001 = vadd.xlane.f32.xlu0 %v3000
  %v3002 = vpop.xlane.xlu0 %3001
  %v3003 = vsel %vm252, %v2997, 0.0
  %3004 = vadd.xlane.f32.xlu0 %v3003
  %v3005 = vpop.xlane.xlu0 %3004
  %v3006 = vmul.f32 %v3002, %v259
  %v3007 = vmul.f32 %v3005, %v259
  %v3008 = vsub.f32 %v2996, %v3006
  %v3009 = vsub.f32 %v2997, %v3007
  %v3010 = vmul.f32 %v3008, %v3008
  %v3011 = vmul.f32 %v3009, %v3009
  %v3012 = vsel %vm252, %v3010, 0.0
  %3013 = vadd.xlane.f32.xlu0 %v3012
  %v3014 = vpop.xlane.xlu0 %3013
  %v3015 = vsel %vm252, %v3011, 0.0
  %3016 = vadd.xlane.f32.xlu0 %v3015
  %v3017 = vpop.xlane.xlu0 %3016
  %v3018 = vmul.f32 %v3014, %v259
  %v3019 = vmul.f32 %v3017, %v259
  %v3020 = vadd.f32 %v3018, 1e-12
  %v3021 = vadd.f32 %v3019, 1e-12
  %v3022 = vrsqrt.pop %v3020
  %v3023 = vrsqrt.pop %v3021
  %v3024 = vmul.f32 %v3008, %v3022
  %v3025 = vmul.f32 %v3009, %v3023
  %v3026 = vlaneseq
  %v3027 = vshrl.u32 %v3026, 7
  %v3028 = vsub.s32 0, %v3027
  %v3029 = vrot.slane %v2998, %v3028
  %v3030 = vmul.f32 %v3024, %v3029
  %v3031 = vmul.f32 %v3025, %v3029
  %v3032 = vlaneseq
  %v3033 = vshrl.u32 %v3032, 7
  %v3034 = vsub.s32 0, %v3033
  %v3035 = vrot.slane %v2999, %v3034
  %v3036 = vadd.f32 %v3030, %v3035
  %v3037 = vadd.f32 %v3031, %v3035
  %v3038 = vld [vmem:[%s8] sm:$0xff]
  %v3039 = vld [vmem:[%s8 + $0x8] sm:$0xff]
  %v3040 = vld [vmem:[%s8 + $0x10] sm:$0xff]
  %v3041 = vld [vmem:[%s8 + $0x18] sm:$0xff]
  %v3042 = vld [vmem:[%s3 + $0x3] sm:$0x1]
  %v3043 = vlaneseq
  %v3044 = vshrl.u32 %v3043, 7
  %v3045 = vsub.s32 0, %v3044
  %v3046 = vrot.slane %v3042, %v3045
  %v3048 = vsel %vm252, %v3036, 0
  %v3051 = vsel %vm252, %v3037, 0
  %3053 = vmatprep.subr.mxu0 0.0
  %3054 = vmatpush1.msra.mxu0 0.0
  %3055 = vmatprep.subr.mxu0 0.0
  %3056 = vmatpush1.msra.mxu0 0.0
  %3057 = vmatprep.subr.mxu0 0.0
  %3058 = vmatpush1.msra.mxu0 0.0
  %3059 = vmatprep.subr.mxu0 0.0
  %3060 = vmatpush1.msra.mxu0 0.0
  %3061 = vmatprep.subr.mxu0 0.0
  %3062 = vmatpush1.msra.mxu0 0.0
  %3063 = vmatprep.subr.mxu0 0.0
  %3064 = vmatpush1.msra.mxu0 0.0
  %3065 = vmatprep.subr.mxu0 0.0
  %3066 = vmatpush1.msra.mxu0 0.0
  %3067 = vmatprep.subr.mxu0 0.0
  %3068 = vmatpush1.msra.mxu0 0.0
  %3069 = vmatprep.subr.mxu0 0.0
  %3070 = vmatpush1.msra.mxu0 0.0
  %3071 = vmatprep.subr.mxu0 0.0
  %3072 = vmatpush1.msra.mxu0 0.0
  %3073 = vmatprep.subr.mxu0 0.0
  %3074 = vmatpush1.msra.mxu0 0.0
  %3075 = vmatprep.subr.mxu0 0.0
  %3076 = vmatpush1.msra.mxu0 0.0
  %3077 = vmatprep.subr.mxu0 0.0
  %3078 = vmatpush1.msra.mxu0 %v3041
  %3079 = vmatprep.subr.mxu0 0.0
  %3080 = vmatpush1.msra.mxu0 %v3040
  %3081 = vmatprep.subr.mxu0 0.0
  %3082 = vmatpush1.msra.mxu0 %v3039
  %3083 = vmatprep.subr.mxu0 0.0
  %3084 = vmatpush1.msra.mxu0 %v3038
  %3085 = vmatprep.subr.mxu0 0.0
  %3086 = vmatpush2.msra.mxu0 0.0
  %3087 = vmatprep.subr.mxu0 0.0
  %3088 = vmatpush2.msra.mxu0 0.0
  %3089 = vmatprep.subr.mxu0 0.0
  %3090 = vmatpush2.msra.mxu0 0.0
  %3091 = vmatprep.subr.mxu0 0.0
  %3092 = vmatpush2.msra.mxu0 0.0
  %3093 = vmatprep.subr.mxu0 0.0
  %3094 = vmatpush2.msra.mxu0 0.0
  %3095 = vmatprep.subr.mxu0 0.0
  %3096 = vmatpush2.msra.mxu0 0.0
  %3097 = vmatprep.subr.mxu0 0.0
  %3098 = vmatpush2.msra.mxu0 0.0
  %3099 = vmatprep.subr.mxu0 0.0
  %3100 = vmatpush2.msra.mxu0 0.0
  %3101 = vmatprep.subr.mxu0 0.0
  %3102 = vmatpush2.msra.mxu0 0.0
  %3103 = vmatprep.subr.mxu0 0.0
  %3104 = vmatpush2.msra.mxu0 0.0
  %3105 = vmatprep.subr.mxu0 0.0
  %3106 = vmatpush2.msra.mxu0 0.0
  %3107 = vmatprep.subr.mxu0 0.0
  %3108 = vmatpush2.msra.mxu0 0.0
  %3109 = vmatprep.subr.mxu0 0.0
  %3110 = vmatpush2.msra.mxu0 0.0
  %3111 = vmatprep.subr.mxu0 0.0
  %3112 = vmatpush2.msra.mxu0 0.0
  %3113 = vmatprep.subr.mxu0 0.0
  %3114 = vmatpush2.msra.mxu0 0.0
  %3115 = vmatprep.subr.mxu0 0.0
  %3116 = vmatpush2.msra.mxu0 0.0
  %3117 = vmatprep.mubr.f32.mxu0 0.0
  %3118 = vmatmul.mubr.f32.gmra.mxu0 %v3048
  %v3119 = vpop.f32.mrf.mxu0
  %v3120 = vadd.f32 %v3046, %v3119
  %v3121 = vpop.f32.mrf.mxu0
  %3122 = vmatprep.mubr.f32.mxu0 0.0
  %3123 = vmatmul.mubr.f32.gmra.mxu0 %v3051
  %v3124 = vpop.f32.mrf.mxu0
  %v3125 = vadd.f32 %v3046, %v3124
  %v3126 = vpop.f32.mrf.mxu0
  %3127 = vdwg.mxu0
  %3128 = vst [vmem:[%s9] sm:$0xff] %v3120
  %3129 = vst [vmem:[%s9 + $0x8] sm:$0xff] %v3125
  %3130 = vmax.xlane.f32.xlu0 %v3120
  %v3131 = vpop.xlane.xlu0 %3130
  %3132 = vmax.xlane.f32.xlu0 %v3125
  %v3133 = vpop.xlane.xlu0 %3132
  %v3134 = vsub.f32 %v3120, %v3131
  %v3135 = vsub.f32 %v3125, %v3133
  %v3136 = vmul.f32 %v3134, 1.442695
  %v3137 = vpow.pop %v3136
  %v3138 = vmul.f32 %v3135, 1.442695
  %v3139 = vpow.pop %v3138
  %3140 = vadd.xlane.f32.xlu0 %v3137
  %v3141 = vpop.xlane.xlu0 %3140
  %3142 = vadd.xlane.f32.xlu0 %v3139
  %v3143 = vpop.xlane.xlu0 %3142
  %v3144 = vlog2.pop %v3141
  %v3145 = vmul.f32 %v3144, 0.6931472
  %v3146 = vlog2.pop %v3143
  %v3147 = vmul.f32 %v3146, 0.6931472
  %v3148 = vadd.f32 %v3131, %v3145
  %v3149 = vadd.f32 %v3133, %v3147
  %3150 = vset.pattern.permute.xlu0 1
  %3151 = vperm.xlu0 %3150, %v32
  %v3152 = vpop.permute.xlu0 %3151
  %3153 = vset.pattern.permute.xlu0 1
  %3154 = vperm.xlu0 %3153, %v33
  %v3155 = vpop.permute.xlu0 %3154
  %vm3156 = vcmp.eq.s32.totalorder %v35, %v3152
  %vm3157 = vcmp.eq.s32.totalorder %v35, %v3155
  %v3158 = vsel %vm3156, 1, 0
  %v3159 = vsel %vm3157, 1, 0
  %v3160 = vcvt.s32.f32 %v3158
  %v3161 = vcvt.s32.f32 %v3159
  %v3162 = vmul.f32 %v3160, %v3120
  %v3163 = vmul.f32 %v3161, %v3125
  %3164 = vadd.xlane.f32.xlu0 %v3162
  %v3165 = vpop.xlane.xlu0 %3164
  %3166 = vadd.xlane.f32.xlu0 %v3163
  %v3167 = vpop.xlane.xlu0 %3166
  %vm3168 = vcmp.ne.s32.totalorder %v32, 4294967196
  %vm3169 = vcmp.ne.s32.totalorder %v33, 4294967196
  %v3170 = vsub.f32 %v3148, %v3165
  %v3171 = vsub.f32 %v3149, %v3167
  %v3172 = vsel %vm3168, %v3170, 0.0
  %v3173 = vsel %vm3169, %v3171, 0.0
  %vm3174 = vcmask 15368
  %v3175 = vsel %vm3174, %v3172, 0.0
  %v3176 = vsel %vm3174, %v3173, 0.0
  %v3177 = vadd.f32 %v3175, %v3176
  %v3178 = vrot.slane %v3177, 4
  %v3179 = vadd.f32 %v3177, %v3178
  %v3180 = vrot.slane %v3179, 2
  %v3181 = vadd.f32 %v3179, %v3180
  %v3182 = vrot.slane %v3181, 1
  %v3183 = vadd.f32 %v3181, %v3182
  %v3184 = vsel %vm3168, 1, 0
  %v3185 = vsel %vm3169, 1, 0
  %v3186 = vcvt.s32.f32 %v3184
  %v3187 = vcvt.s32.f32 %v3185
  %v3188 = vsel %vm3174, %v3186, 0.0
  %v3189 = vsel %vm3174, %v3187, 0.0
  %v3190 = vadd.f32 %v3188, %v3189
  %v3191 = vrot.slane %v3190, 4
  %v3192 = vadd.f32 %v3190, %v3191
  %v3193 = vrot.slane %v3192, 2
  %v3194 = vadd.f32 %v3192, %v3193
  %v3195 = vrot.slane %v3194, 1
  %v3196 = vadd.f32 %v3194, %v3195
  %v3197 = vrcp.pop %v3196
  %v3198 = vmul.f32 %v3183, %v3197
  %3200 = vset.pattern.permute.xlu0 1
  %3201 = vperm.xlu0 %3200, %v3198
  %v3202 = vpop.permute.xlu0 %3201
  %v3204 = vadd.f32 %v3202, 0.0
  %3205 = vst [vmem:[%s9 + $0x10] sm:$0x1] %v3204
  // Predicated region
  $region38: #{ner_forward.1} parent=0 // pred_check
    _
  $region39: #{ner_forward.1} parent=0 // pred_check_branch
    %3207 = sbr.rel (0) target = $region41
  $region40: #{ner_forward.1} parent=0 // pred_region
    _
  $region41: #{ner_forward.1} parent=0 // pred_fallthru
    _
  // Predicated region
  $region42: #{ner_forward.1} parent=0 // pred_check
    _
  $region43: #{ner_forward.1} parent=0 // pred_check_branch
    %3209 = sbr.rel (0) target = $region45
  $region44: #{ner_forward.1} parent=0 // pred_region
    _
  $region45: #{ner_forward.1} parent=0 // pred_fallthru
    _

</llo_original>
